<compile_context>
chip_gen: v7x
topology: tpu7x:2x2x1
jax: 0.10.0
libtpu: 0.0.40
codegen_flags: <defaults>
</compile_context>

<pallas_src>
import functools
import math

import jax
import jax.numpy as jnp
from jax import lax
from jax.experimental import pallas as pl
from jax.experimental.pallas import tpu as pltpu


def _compute_vmem_limit():
    cap = 64 * 1024 * 1024  # conservative fallback (v7x physical)
    try:
        info = pltpu.get_tpu_info()
        cap = int(getattr(info, "vmem_capacity_bytes", cap))
    except Exception:
        pass
    return int(min(cap - cap // 4, 96 * 1024 * 1024))


_VMEM_LIMIT = _compute_vmem_limit()
_W_RESIDENT_BYTES = 8 * 1024 * 1024   # keep weight resident if bf16 W <= 8 MiB


def _pick_tm(M):
    """Largest multiple-of-8 divisor of M giving >=2 grid steps (cap 512)."""
    if M < 16:
        return M
    cap = min(512, M // 2)
    for t in range(cap, 7, -1):
        if M % t == 0 and t % 8 == 0:
            return t
    return M


def _pick_tk(K):
    for t in (512, 256, 128):
        if K % t == 0 and t < K:
            return t
    return K


def _pick_bb(B):
    best = 1
    for bb in range(1, min(4, B) + 1):
        if B % bb == 0 and (B // bb) >= 2:
            best = bb
    return best


def _pick_tb(B):
    for tb in (64, 32, 16, 8):
        if B % tb == 0:
            return tb
    return B


# ----------------------------- Pallas kernels -----------------------------

def _linear_kernel(x_ref, w_ref, b_ref, *rest, has_ln, activation, has_res,
                   eps, n_k):
    # rest = [ln_gamma, ln_beta]? + [residual]? + out_ref + [acc_ref]?
    idx = 0
    if has_ln:
        g_ref, be_ref = rest[0], rest[1]
        idx = 2
    if has_res:
        res_ref = rest[idx]
        idx += 1
    o_ref = rest[idx]
    acc_ref = rest[idx + 1] if len(rest) > idx + 1 else None

    x = x_ref[...]
    if has_ln:                                       # LN fused (tk == K full)
        xf = x.astype(jnp.float32)
        mu = jnp.mean(xf, axis=-1, keepdims=True)
        var = jnp.mean(jnp.square(xf - mu), axis=-1, keepdims=True)
        x = (xf - mu) * lax.rsqrt(var + eps) * g_ref[...] + be_ref[...]

    part = jnp.dot(x.astype(jnp.bfloat16), w_ref[...],
                   preferred_element_type=jnp.float32)

    def epilogue(acc):
        y = acc + b_ref[...]
        if activation == "gelu":                     # exact GELU (erf), f32
            y = 0.5 * y * (1.0 + lax.erf(y * (1.0 / math.sqrt(2.0))))
        if has_res:
            y = y + res_ref[...].astype(jnp.float32)
        return y.astype(o_ref.dtype)

    if n_k == 1:
        # Straight-line path: resident weight, no pl.when, no scratch.
        o_ref[...] = epilogue(part)
    else:
        k = pl.program_id(1)
        acc = acc_ref if acc_ref is not None else o_ref   # accumulate in place

        @pl.when(k == 0)
        def _():
            acc[...] = part

        @pl.when(k > 0)
        def _():
            acc[...] += part

        @pl.when(k == pl.num_programs(1) - 1)
        def _():
            o_ref[...] = epilogue(acc[...])


def _attn_kernel(qkv_ref, o_ref, *, heads, s_real, scaling):
    # qkv_ref block: (bb, S_pad, 3E); output block: (bb, S_pad, E) lane-dense.
    bb, S, E3 = qkv_ref.shape
    E = E3 // 3
    D = E // heads
    key_ids = lax.broadcasted_iota(jnp.int32, (1, S), 1)
    needs_mask = s_real < S

    for b in range(bb):
        qkv = qkv_ref[b]                              # (S, 3E) bf16
        q = qkv[:, 0:E]                               # lane-aligned slabs
        kk = qkv[:, E:2 * E]
        v = qkv[:, 2 * E:3 * E]
        outs = []
        for h in range(heads):
            lo, hi = h * D, (h + 1) * D
            # Scores: contract the last dims directly (no transposed tile).
            s = lax.dot_general(q[:, lo:hi], kk[:, lo:hi],
                                dimension_numbers=(((1,), (1,)), ((), ())),
                                preferred_element_type=jnp.float32)   # (S, S)
            if needs_mask:
                s = jnp.where(key_ids < s_real, s, -1e30)   # mask padded keys
            s = s - jnp.max(s, axis=-1, keepdims=True)
            p = jnp.exp(s)
            # reference quirk: att = softmax(energy) / sqrt(emb_size)
            att = (p / (jnp.sum(p, axis=-1, keepdims=True) * scaling)
                   ).astype(v.dtype)
            outs.append(jnp.dot(att, v[:, lo:hi],
                                preferred_element_type=jnp.float32))
        # Single unmasked (S, E) store instead of 8 masked 16-lane stores.
        o_ref[b] = jnp.concatenate(outs, axis=-1).astype(o_ref.dtype)


def _classifier_kernel(x_ref, g_ref, be_ref, w_ref, hb_ref, o_ref, *,
                       s_real, eps):
    x = x_ref[...].astype(jnp.float32)                # (tb, S_pad, E)
    mu = jnp.mean(x, axis=-1, keepdims=True)
    var = jnp.mean(jnp.square(x - mu), axis=-1, keepdims=True)
    h = (x - mu) * lax.rsqrt(var + eps) * g_ref[...] + be_ref[...]
    S = x.shape[1]
    if s_real < S:                                    # drop padded rows
        row_ids = lax.broadcasted_iota(jnp.int32, (1, S, 1), 1)
        h = jnp.where(row_ids < s_real, h, 0.0)
    pooled = jnp.sum(h, axis=1) * (1.0 / s_real)      # (tb, E) mean over seq
    o_ref[...] = jnp.dot(pooled.astype(jnp.bfloat16), w_ref[...],
                         preferred_element_type=jnp.float32) + hb_ref[...]


# ----------------------------- Pallas wrappers -----------------------------

def pallas_linear(x, w, b, *, ln=None, residual=None, activation=None,
                  out_dtype=jnp.float32, eps=1e-5):
    """y = activation(LN?(x) @ w + b) (+ residual), out in out_dtype."""
    M, K = x.shape
    N = w.shape[1]
    has_ln = ln is not None
    has_res = residual is not None
    w = w.astype(jnp.bfloat16)

    tm = _pick_tm(M)
    gm = M // tm
    # Keep the weight VMEM-resident (single K block) whenever it fits; LN also
    # needs full rows.  Only genuinely huge K*N falls back to K tiling.
    resident = has_ln or (2 * K * N <= _W_RESIDENT_BYTES)
    tk = K if resident else _pick_tk(K)
    gk = K // tk

    inputs = [x, w, b.reshape(1, N)]
    extra_inputs = []
    if has_ln:
        g, be = ln
        extra_inputs += [g.reshape(1, K), be.reshape(1, K)]
    if has_res:
        extra_inputs.append(residual)

    kernel = functools.partial(_linear_kernel, has_ln=has_ln,
                               activation=activation, has_res=has_res,
                               eps=eps, n_k=gk)
    cost = pl.CostEstimate(
        flops=int(2 * M * N * K),
        transcendentals=int(M * N) if activation == "gelu" else 0,
        bytes_accessed=int(x.dtype.itemsize * M * K + 2 * K * N + 4 * N
                           + jnp.dtype(out_dtype).itemsize * M * N
                           + (4 * M * N if has_res else 0)))

    if gk == 1:
        grid = (gm,)
        in_specs = [
            pl.BlockSpec((tm, K), lambda i: (i, 0)),
            pl.BlockSpec((K, N), lambda i: (0, 0)),     # weight resident
            pl.BlockSpec((1, N), lambda i: (0, 0)),
        ]
        if has_ln:
            in_specs += [pl.BlockSpec((1, K), lambda i: (0, 0)),
                         pl.BlockSpec((1, K), lambda i: (0, 0))]
        if has_res:
            in_specs.append(pl.BlockSpec((tm, N), lambda i: (i, 0)))
        out_specs = pl.BlockSpec((tm, N), lambda i: (i, 0))
        dims = ("parallel",)
        scratch = []
    else:
        grid = (gm, gk)
        in_specs = [
            pl.BlockSpec((tm, tk), lambda i, k: (i, k)),
            pl.BlockSpec((tk, N), lambda i, k: (k, 0)),
            pl.BlockSpec((1, N), lambda i, k: (0, 0)),
        ]
        if has_ln:
            in_specs += [pl.BlockSpec((1, K), lambda i, k: (0, 0)),
                         pl.BlockSpec((1, K), lambda i, k: (0, 0))]
        if has_res:
            in_specs.append(pl.BlockSpec((tm, N), lambda i, k: (i, 0)))
        out_specs = pl.BlockSpec((tm, N), lambda i, k: (i, 0))
        dims = ("parallel", "arbitrary")
        # f32 output: accumulate directly into the resident o_ref block.
        scratch = ([] if out_dtype == jnp.float32
                   else [pltpu.VMEM((tm, N), jnp.float32)])

    return pl.pallas_call(
        kernel,
        out_shape=jax.ShapeDtypeStruct((M, N), out_dtype),
        grid=grid,
        in_specs=in_specs,
        out_specs=out_specs,
        scratch_shapes=scratch,
        compiler_params=pltpu.CompilerParams(
            dimension_semantics=dims,
            vmem_limit_bytes=_VMEM_LIMIT),
        cost_estimate=cost,
    )(*inputs, *extra_inputs)


def pallas_attention(qkv, heads, s_real, scaling, out_dtype=jnp.bfloat16):
    """Multi-head attention over fused QKV (B, S_pad, 3E) -> (B, S_pad, E)."""
    B, S, E3 = qkv.shape
    E = E3 // 3
    D = E // heads
    bb = _pick_bb(B)
    kernel = functools.partial(_attn_kernel, heads=heads, s_real=s_real,
                               scaling=scaling)
    cost = pl.CostEstimate(
        flops=int(4 * B * heads * S * S * D),
        transcendentals=int(B * heads * S * S),
        bytes_accessed=int(2 * B * S * (E3 + E)))
    return pl.pallas_call(
        kernel,
        out_shape=jax.ShapeDtypeStruct((B, S, E), out_dtype),
        grid=(B // bb,),
        in_specs=[pl.BlockSpec((bb, S, E3), lambda i: (i, 0, 0))],
        out_specs=pl.BlockSpec((bb, S, E), lambda i: (i, 0, 0)),
        compiler_params=pltpu.CompilerParams(
            dimension_semantics=("parallel",),
            vmem_limit_bytes=_VMEM_LIMIT),
        cost_estimate=cost,
    )(qkv)


def pallas_classifier(x, gamma, beta, w, b, *, s_real, eps=1e-5):
    """Fused LayerNorm -> masked mean over seq -> Linear head."""
    B, S, E = x.shape
    C = w.shape[1]
    tb = _pick_tb(B)
    kernel = functools.partial(_classifier_kernel, s_real=s_real, eps=eps)
    return pl.pallas_call(
        kernel,
        out_shape=jax.ShapeDtypeStruct((B, C), jnp.float32),
        grid=(B // tb,),
        in_specs=[
            pl.BlockSpec((tb, S, E), lambda i: (i, 0, 0)),
            pl.BlockSpec((1, E), lambda i: (0, 0)),
            pl.BlockSpec((1, E), lambda i: (0, 0)),
            pl.BlockSpec((E, C), lambda i: (0, 0)),
            pl.BlockSpec((1, C), lambda i: (0, 0)),
        ],
        out_specs=pl.BlockSpec((tb, C), lambda i: (i, 0)),
        compiler_params=pltpu.CompilerParams(
            dimension_semantics=("parallel",),
            vmem_limit_bytes=_VMEM_LIMIT),
    )(x, gamma.reshape(1, E), beta.reshape(1, E),
      w.astype(jnp.bfloat16), b.reshape(1, C))


# ----------------------------- parameter setup -----------------------------

def init_params(key, *, in_channels, patch_size, emb_size, img_size,
                n_blocks, heads, expansion, class_num):
    n_patches = (img_size // patch_size) ** 2
    keys = iter(jax.random.split(key, 8 + 8 * n_blocks))
    E = emb_size
    hidden = E * expansion

    def w(shape, scale=0.02, dtype=jnp.bfloat16):
        return (scale * jax.random.normal(next(keys), shape)).astype(dtype)

    params = {
        "patch_w": w((in_channels * patch_size * patch_size, E)),
        "patch_b": jnp.zeros((E,), jnp.float32),
        "cls": w((1, 1, E), 1.0, jnp.float32),             # torch.randn
        "pos": w((n_patches + 1, E), 1.0, jnp.float32),    # torch.randn
        "head_w": w((E, class_num)),
        "head_b": jnp.zeros((class_num,), jnp.float32),
        "cls_ln_g": jnp.ones((E,), jnp.float32),
        "cls_ln_b": jnp.zeros((E,), jnp.float32),
        "blocks": [],
    }
    for _ in range(n_blocks):
        blk = {
            "ln1_g": jnp.ones((E,), jnp.float32),
            "ln1_b": jnp.zeros((E,), jnp.float32),
            "ln2_g": jnp.ones((E,), jnp.float32),
            "ln2_b": jnp.zeros((E,), jnp.float32),
            # fused q|k|v weight: (E, 3E)
            "w_qkv": jnp.concatenate([w((E, E)), w((E, E)), w((E, E))], axis=1),
            "b_qkv": jnp.zeros((3 * E,), jnp.float32),
            "wo": w((E, E)), "bo": jnp.zeros((E,), jnp.float32),
            "w1": w((E, hidden)), "b1": jnp.zeros((hidden,), jnp.float32),
            "w2": w((hidden, E)), "b2": jnp.zeros((E,), jnp.float32),
        }
        params["blocks"].append(blk)
    return params


# ----------------------------- ViT forward -----------------------------

def vit_forward(x, params, *, patch_size, emb_size, heads):
    B, C, H, W = x.shape
    p = patch_size
    E = emb_size
    Hp, Wp = H // p, W // p
    n_patches = Hp * Wp
    S = n_patches + 1
    S_pad = ((S + 7) // 8) * 8                 # sublane-friendly seq length
    M = B * S_pad
    scaling = float(E) ** 0.5                  # reference: divide by sqrt(emb)

    # --- PatchEmbedding: Conv2d(k=p, stride=p) == patch-flatten + matmul ---
    patches = x.reshape(B, C, Hp, p, Wp, p).transpose(0, 2, 4, 1, 3, 5)
    patches = patches.reshape(B * n_patches, C * p * p)
    tok = pallas_linear(patches, params["patch_w"], params["patch_b"])
    tok = tok.reshape(B, n_patches, E)

    cls = jnp.broadcast_to(params["cls"], (B, 1, E))
    seq = jnp.concatenate([cls, tok], axis=1) + params["pos"]      # (B, S, E)
    if S_pad > S:
        seq = jnp.pad(seq, ((0, 0), (0, S_pad - S), (0, 0)))       # zero pad

    # --- Transformer encoder blocks ---
    for blk in params["blocks"]:
        xflat = seq.reshape(M, E)

        # res1 = x + proj(attn(ln1(x)))     (LN fused into the QKV matmul)
        qkv = pallas_linear(xflat, blk["w_qkv"], blk["b_qkv"],
                            ln=(blk["ln1_g"], blk["ln1_b"]),
                            out_dtype=jnp.bfloat16)
        attn = pallas_attention(qkv.reshape(B, S_pad, 3 * E), heads, S,
                                scaling, out_dtype=jnp.bfloat16)
        attn_out = pallas_linear(attn.reshape(M, E), blk["wo"], blk["bo"],
                                 residual=xflat, out_dtype=jnp.float32)

        # res2 = x + l2(gelu(l1(ln2(x))))   (LN + GELU fused into l1)
        f1 = pallas_linear(attn_out, blk["w1"], blk["b1"],
                           ln=(blk["ln2_g"], blk["ln2_b"]), activation="gelu",
                           out_dtype=jnp.bfloat16)
        f2 = pallas_linear(f1, blk["w2"], blk["b2"], residual=attn_out,
                           out_dtype=jnp.float32)

        seq = f2.reshape(B, S_pad, E)

    # --- MLPClassifier: LayerNorm -> mean over (real) seq -> Linear ---
    return pallas_classifier(seq, params["cls_ln_g"], params["cls_ln_b"],
                             params["head_w"], params["head_b"], s_real=S)


# ----------------------------- main -----------------------------

if __name__ == "__main__":
    # Small, self-consistent configuration (reference defaults scaled down).
    B, C, IMG, PATCH = 2, 3, 16, 4
    EMB, HEADS, EXP, N_BLOCKS, N_CLASS = 128, 8, 4, 2, 16

    key = jax.random.PRNGKey(0)
    k_x, k_p = jax.random.split(key)
    x = jax.random.normal(k_x, (B, C, IMG, IMG), dtype=jnp.float32)

    params = init_params(k_p, in_channels=C, patch_size=PATCH, emb_size=EMB,
                         img_size=IMG, n_blocks=N_BLOCKS, heads=HEADS,
                         expansion=EXP, class_num=N_CLASS)

    fwd = jax.jit(functools.partial(vit_forward, patch_size=PATCH,
                                    emb_size=EMB, heads=HEADS))
    out = fwd(x, params)
    jax.block_until_ready(out)
    assert out.shape == (B, N_CLASS) and out.dtype == jnp.float32
    assert bool(jnp.all(jnp.isfinite(out)))
    print("KERNEL_OK")
</pallas_src>

<mosaic_0001>
module attributes {stable_mosaic.version = 11 : i64} {
  func.func @_linear_kernel(%arg0: i32, %arg1: memref<16x48xf32, #tpu.memory_space<vmem>>, %arg2: memref<48x128xbf16, #tpu.memory_space<vmem>>, %arg3: memref<1x128xf32, #tpu.memory_space<vmem>>, %arg4: memref<16x128xf32, #tpu.memory_space<vmem>>) attributes {dimension_semantics = [#tpu.dimension_semantics<parallel>], iteration_bounds = array<i64: 2>, scalar_prefetch = 0 : i64, scratch_operands = 0 : i64, tpu.core_type = #tpu.core_type<tc>, window_params = [{transform_indices = @transform_0, window_bounds = array<i64: 16, 48>}, {pipeline_mode = #tpu.pipeline_mode<synchronous>, transform_indices = @transform_1, window_bounds = array<i64: 48, 128>}, {pipeline_mode = #tpu.pipeline_mode<synchronous>, transform_indices = @transform_2, window_bounds = array<i64: 1, 128>}, {transform_indices = @transform_3, window_bounds = array<i64: 16, 128>}]} {
    %c0 = arith.constant 0 : index
    %c0_0 = arith.constant 0 : index
    %0 = vector.load %arg1[%c0, %c0_0] : memref<16x48xf32, #tpu.memory_space<vmem>>, vector<16x48xf32>
    %1 = arith.truncf %0 : vector<16x48xf32> to vector<16x48xbf16>
    %c0_1 = arith.constant 0 : index
    %c0_2 = arith.constant 0 : index
    %2 = vector.load %arg2[%c0_1, %c0_2] : memref<48x128xbf16, #tpu.memory_space<vmem>>, vector<48x128xbf16>
    %cst = arith.constant dense<0.000000e+00> : vector<16x128xf32>
    %3 = tpu.matmul %1, %2, %cst {dimension_numbers = #tpu.dot_dimension_numbers<[1], [0], [0], [1], [0, 0, 1, 1], [], []>} : vector<16x48xbf16>, vector<48x128xbf16>, vector<16x128xf32> -> vector<16x128xf32>
    %c0_3 = arith.constant 0 : index
    %c0_4 = arith.constant 0 : index
    %4 = vector.load %arg3[%c0_3, %c0_4] : memref<1x128xf32, #tpu.memory_space<vmem>>, vector<1x128xf32>
    %5 = vector.broadcast %4 : vector<1x128xf32> to vector<16x128xf32>
    %6 = arith.addf %3, %5 : vector<16x128xf32>
    %c0_5 = arith.constant 0 : index
    %c0_6 = arith.constant 0 : index
    %7 = vector.load %arg4[%c0_5, %c0_6] : memref<16x128xf32, #tpu.memory_space<vmem>>, vector<16x128xf32>
    tpu.vector_store %arg4[%c0_5, %c0_6], %6 {strides = array<i32>} : memref<16x128xf32, #tpu.memory_space<vmem>>, vector<16x128xf32>,
    return
  }
  func.func @transform_0(%arg0: i32) -> (i32, i32) {
    %c0_i32 = arith.constant 0 : i32
    %c0_i32_0 = arith.constant 0 : i32
    return %arg0, %c0_i32 : i32, i32
  }
  func.func @transform_1(%arg0: i32) -> (i32, i32) {
    %c0_i32 = arith.constant 0 : i32
    %c0_i32_0 = arith.constant 0 : i32
    %c0_i32_1 = arith.constant 0 : i32
    return %c0_i32, %c0_i32_0 : i32, i32
  }
  func.func @transform_2(%arg0: i32) -> (i32, i32) {
    %c0_i32 = arith.constant 0 : i32
    %c0_i32_0 = arith.constant 0 : i32
    %c0_i32_1 = arith.constant 0 : i32
    return %c0_i32, %c0_i32_0 : i32, i32
  }
  func.func @transform_3(%arg0: i32) -> (i32, i32) {
    %c0_i32 = arith.constant 0 : i32
    %c0_i32_0 = arith.constant 0 : i32
    return %arg0, %c0_i32 : i32, i32
  }
}

module attributes {stable_mosaic.version = 11 : i64} {
  func.func @_linear_kernel(%arg0: i32, %arg1: memref<24x128xf32, #tpu.memory_space<vmem>>, %arg2: memref<128x384xbf16, #tpu.memory_space<vmem>>, %arg3: memref<1x384xf32, #tpu.memory_space<vmem>>, %arg4: memref<1x128xf32, #tpu.memory_space<vmem>>, %arg5: memref<1x128xf32, #tpu.memory_space<vmem>>, %arg6: memref<24x384xbf16, #tpu.memory_space<vmem>>) attributes {dimension_semantics = [#tpu.dimension_semantics<parallel>], iteration_bounds = array<i64: 2>, scalar_prefetch = 0 : i64, scratch_operands = 0 : i64, tpu.core_type = #tpu.core_type<tc>, window_params = [{transform_indices = @transform_0, window_bounds = array<i64: 24, 128>}, {pipeline_mode = #tpu.pipeline_mode<synchronous>, transform_indices = @transform_1, window_bounds = array<i64: 128, 384>}, {pipeline_mode = #tpu.pipeline_mode<synchronous>, transform_indices = @transform_2, window_bounds = array<i64: 1, 384>}, {pipeline_mode = #tpu.pipeline_mode<synchronous>, transform_indices = @transform_3, window_bounds = array<i64: 1, 128>}, {pipeline_mode = #tpu.pipeline_mode<synchronous>, transform_indices = @transform_4, window_bounds = array<i64: 1, 128>}, {transform_indices = @transform_5, window_bounds = array<i64: 24, 384>}]} {
    %c0 = arith.constant 0 : index
    %c0_0 = arith.constant 0 : index
    %0 = vector.load %arg1[%c0, %c0_0] : memref<24x128xf32, #tpu.memory_space<vmem>>, vector<24x128xf32>
    %cst = arith.constant dense<0.000000e+00> : vector<24xf32>
    %1 = vector.multi_reduction <add>, %0, %cst [1] : vector<24x128xf32> to vector<24xf32>
    %2 = vector.shape_cast %1 : vector<24xf32> to vector<24x1xf32>
    %cst_1 = arith.constant 1.280000e+02 : f32
    %3 = vector.broadcast %cst_1 : f32 to vector<24x1xf32>
    %4 = arith.divf %2, %3 : vector<24x1xf32>
    %5 = vector.broadcast %4 : vector<24x1xf32> to vector<24x128xf32>
    %6 = arith.subf %0, %5 : vector<24x128xf32>
    %7 = arith.mulf %6, %6 : vector<24x128xf32>
    %cst_2 = arith.constant dense<0.000000e+00> : vector<24xf32>
    %8 = vector.multi_reduction <add>, %7, %cst_2 [1] : vector<24x128xf32> to vector<24xf32>
    %9 = vector.shape_cast %8 : vector<24xf32> to vector<24x1xf32>
    %cst_3 = arith.constant 1.280000e+02 : f32
    %10 = vector.broadcast %cst_3 : f32 to vector<24x1xf32>
    %11 = arith.divf %9, %10 : vector<24x1xf32>
    %12 = vector.broadcast %4 : vector<24x1xf32> to vector<24x128xf32>
    %13 = arith.subf %0, %12 : vector<24x128xf32>
    %cst_4 = arith.constant 9.99999974E-6 : f32
    %14 = vector.broadcast %cst_4 : f32 to vector<24x1xf32>
    %15 = arith.addf %11, %14 : vector<24x1xf32>
    %16 = math.rsqrt %15 : vector<24x1xf32>
    %17 = vector.broadcast %16 : vector<24x1xf32> to vector<24x128xf32>
    %18 = arith.mulf %13, %17 : vector<24x128xf32>
    %c0_5 = arith.constant 0 : index
    %c0_6 = arith.constant 0 : index
    %19 = vector.load %arg4[%c0_5, %c0_6] : memref<1x128xf32, #tpu.memory_space<vmem>>, vector<1x128xf32>
    %20 = vector.broadcast %19 : vector<1x128xf32> to vector<24x128xf32>
    %21 = arith.mulf %18, %20 : vector<24x128xf32>
    %c0_7 = arith.constant 0 : index
    %c0_8 = arith.constant 0 : index
    %22 = vector.load %arg5[%c0_7, %c0_8] : memref<1x128xf32, #tpu.memory_space<vmem>>, vector<1x128xf32>
    %23 = vector.broadcast %22 : vector<1x128xf32> to vector<24x128xf32>
    %24 = arith.addf %21, %23 : vector<24x128xf32>
    %25 = arith.truncf %24 : vector<24x128xf32> to vector<24x128xbf16>
    %c0_9 = arith.constant 0 : index
    %c0_10 = arith.constant 0 : index
    %26 = vector.load %arg2[%c0_9, %c0_10] : memref<128x384xbf16, #tpu.memory_space<vmem>>, vector<128x384xbf16>
    %cst_11 = arith.constant dense<0.000000e+00> : vector<24x384xf32>
    %27 = tpu.matmul %25, %26, %cst_11 {dimension_numbers = #tpu.dot_dimension_numbers<[1], [0], [0], [1], [0, 0, 1, 1], [], []>} : vector<24x128xbf16>, vector<128x384xbf16>, vector<24x384xf32> -> vector<24x384xf32>
    %c0_12 = arith.constant 0 : index
    %c0_13 = arith.constant 0 : index
    %28 = vector.load %arg3[%c0_12, %c0_13] : memref<1x384xf32, #tpu.memory_space<vmem>>, vector<1x384xf32>
    %29 = vector.broadcast %28 : vector<1x384xf32> to vector<24x384xf32>
    %30 = arith.addf %27, %29 : vector<24x384xf32>
    %31 = arith.truncf %30 : vector<24x384xf32> to vector<24x384xbf16>
    %c0_14 = arith.constant 0 : index
    %c0_15 = arith.constant 0 : index
    %32 = vector.load %arg6[%c0_14, %c0_15] : memref<24x384xbf16, #tpu.memory_space<vmem>>, vector<24x384xbf16>
    tpu.vector_store %arg6[%c0_14, %c0_15], %31 {strides = array<i32>} : memref<24x384xbf16, #tpu.memory_space<vmem>>, vector<24x384xbf16>,
    return
  }
  func.func @transform_0(%arg0: i32) -> (i32, i32) {
    %c0_i32 = arith.constant 0 : i32
    %c0_i32_0 = arith.constant 0 : i32
    return %arg0, %c0_i32 : i32, i32
  }
  func.func @transform_1(%arg0: i32) -> (i32, i32) {
    %c0_i32 = arith.constant 0 : i32
    %c0_i32_0 = arith.constant 0 : i32
    %c0_i32_1 = arith.constant 0 : i32
    return %c0_i32, %c0_i32_0 : i32, i32
  }
  func.func @transform_2(%arg0: i32) -> (i32, i32) {
    %c0_i32 = arith.constant 0 : i32
    %c0_i32_0 = arith.constant 0 : i32
    %c0_i32_1 = arith.constant 0 : i32
    return %c0_i32, %c0_i32_0 : i32, i32
  }
  func.func @transform_3(%arg0: i32) -> (i32, i32) {
    %c0_i32 = arith.constant 0 : i32
    %c0_i32_0 = arith.constant 0 : i32
    %c0_i32_1 = arith.constant 0 : i32
    return %c0_i32, %c0_i32_0 : i32, i32
  }
  func.func @transform_4(%arg0: i32) -> (i32, i32) {
    %c0_i32 = arith.constant 0 : i32
    %c0_i32_0 = arith.constant 0 : i32
    %c0_i32_1 = arith.constant 0 : i32
    return %c0_i32, %c0_i32_0 : i32, i32
  }
  func.func @transform_5(%arg0: i32) -> (i32, i32) {
    %c0_i32 = arith.constant 0 : i32
    %c0_i32_0 = arith.constant 0 : i32
    return %arg0, %c0_i32 : i32, i32
  }
}

module attributes {stable_mosaic.version = 11 : i64} {
  func.func @_linear_kernel(%arg0: i32, %arg1: memref<24x128xbf16, #tpu.memory_space<vmem>>, %arg2: memref<128x128xbf16, #tpu.memory_space<vmem>>, %arg3: memref<1x128xf32, #tpu.memory_space<vmem>>, %arg4: memref<24x128xf32, #tpu.memory_space<vmem>>, %arg5: memref<24x128xf32, #tpu.memory_space<vmem>>) attributes {dimension_semantics = [#tpu.dimension_semantics<parallel>], iteration_bounds = array<i64: 2>, scalar_prefetch = 0 : i64, scratch_operands = 0 : i64, tpu.core_type = #tpu.core_type<tc>, window_params = [{transform_indices = @transform_0, window_bounds = array<i64: 24, 128>}, {pipeline_mode = #tpu.pipeline_mode<synchronous>, transform_indices = @transform_1, window_bounds = array<i64: 128, 128>}, {pipeline_mode = #tpu.pipeline_mode<synchronous>, transform_indices = @transform_2, window_bounds = array<i64: 1, 128>}, {transform_indices = @transform_3, window_bounds = array<i64: 24, 128>}, {transform_indices = @transform_4, window_bounds = array<i64: 24, 128>}]} {
    %c0 = arith.constant 0 : index
    %c0_0 = arith.constant 0 : index
    %0 = vector.load %arg1[%c0, %c0_0] : memref<24x128xbf16, #tpu.memory_space<vmem>>, vector<24x128xbf16>
    %c0_1 = arith.constant 0 : index
    %c0_2 = arith.constant 0 : index
    %1 = vector.load %arg2[%c0_1, %c0_2] : memref<128x128xbf16, #tpu.memory_space<vmem>>, vector<128x128xbf16>
    %cst = arith.constant dense<0.000000e+00> : vector<24x128xf32>
    %2 = tpu.matmul %0, %1, %cst {dimension_numbers = #tpu.dot_dimension_numbers<[1], [0], [0], [1], [0, 0, 1, 1], [], []>} : vector<24x128xbf16>, vector<128x128xbf16>, vector<24x128xf32> -> vector<24x128xf32>
    %c0_3 = arith.constant 0 : index
    %c0_4 = arith.constant 0 : index
    %3 = vector.load %arg3[%c0_3, %c0_4] : memref<1x128xf32, #tpu.memory_space<vmem>>, vector<1x128xf32>
    %4 = vector.broadcast %3 : vector<1x128xf32> to vector<24x128xf32>
    %5 = arith.addf %2, %4 : vector<24x128xf32>
    %c0_5 = arith.constant 0 : index
    %c0_6 = arith.constant 0 : index
    %6 = vector.load %arg4[%c0_5, %c0_6] : memref<24x128xf32, #tpu.memory_space<vmem>>, vector<24x128xf32>
    %7 = arith.addf %5, %6 : vector<24x128xf32>
    %c0_7 = arith.constant 0 : index
    %c0_8 = arith.constant 0 : index
    %8 = vector.load %arg5[%c0_7, %c0_8] : memref<24x128xf32, #tpu.memory_space<vmem>>, vector<24x128xf32>
    tpu.vector_store %arg5[%c0_7, %c0_8], %7 {strides = array<i32>} : memref<24x128xf32, #tpu.memory_space<vmem>>, vector<24x128xf32>,
    return
  }
  func.func @transform_0(%arg0: i32) -> (i32, i32) {
    %c0_i32 = arith.constant 0 : i32
    %c0_i32_0 = arith.constant 0 : i32
    return %arg0, %c0_i32 : i32, i32
  }
  func.func @transform_1(%arg0: i32) -> (i32, i32) {
    %c0_i32 = arith.constant 0 : i32
    %c0_i32_0 = arith.constant 0 : i32
    %c0_i32_1 = arith.constant 0 : i32
    return %c0_i32, %c0_i32_0 : i32, i32
  }
  func.func @transform_2(%arg0: i32) -> (i32, i32) {
    %c0_i32 = arith.constant 0 : i32
    %c0_i32_0 = arith.constant 0 : i32
    %c0_i32_1 = arith.constant 0 : i32
    return %c0_i32, %c0_i32_0 : i32, i32
  }
  func.func @transform_3(%arg0: i32) -> (i32, i32) {
    %c0_i32 = arith.constant 0 : i32
    %c0_i32_0 = arith.constant 0 : i32
    return %arg0, %c0_i32 : i32, i32
  }
  func.func @transform_4(%arg0: i32) -> (i32, i32) {
    %c0_i32 = arith.constant 0 : i32
    %c0_i32_0 = arith.constant 0 : i32
    return %arg0, %c0_i32 : i32, i32
  }
}

module attributes {stable_mosaic.version = 11 : i64} {
  func.func @_attn_kernel(%arg0: i32, %arg1: memref<1x24x384xbf16, #tpu.memory_space<vmem>>, %arg2: memref<1x24x128xbf16, #tpu.memory_space<vmem>>) attributes {dimension_semantics = [#tpu.dimension_semantics<parallel>], iteration_bounds = array<i64: 2>, scalar_prefetch = 0 : i64, scratch_operands = 0 : i64, tpu.core_type = #tpu.core_type<tc>, window_params = [{transform_indices = @transform_0, window_bounds = array<i64: 1, 24, 384>}, {transform_indices = @transform_1, window_bounds = array<i64: 1, 24, 128>}]} {
    %0 = tpu.iota {dimensions = array<i32: 1>} : vector<1x24xi32>
    %c0 = arith.constant 0 : index
    %c0_0 = arith.constant 0 : index
    %c0_1 = arith.constant 0 : index
    %1 = vector.load %arg1[%c0, %c0_0, %c0_1] : memref<1x24x384xbf16, #tpu.memory_space<vmem>>, vector<1x24x384xbf16>
    %2 = vector.shape_cast %1 : vector<1x24x384xbf16> to vector<24x384xbf16>
    %3 = vector.extract_strided_slice %2 {offsets = [0, 0], sizes = [24, 128], strides = [1, 1]} : vector<24x384xbf16> to vector<24x128xbf16>
    %4 = vector.extract_strided_slice %2 {offsets = [0, 128], sizes = [24, 128], strides = [1, 1]} : vector<24x384xbf16> to vector<24x128xbf16>
    %5 = vector.extract_strided_slice %2 {offsets = [0, 256], sizes = [24, 128], strides = [1, 1]} : vector<24x384xbf16> to vector<24x128xbf16>
    %6 = vector.extract_strided_slice %3 {offsets = [0, 0], sizes = [24, 16], strides = [1, 1]} : vector<24x128xbf16> to vector<24x16xbf16>
    %7 = vector.extract_strided_slice %4 {offsets = [0, 0], sizes = [24, 16], strides = [1, 1]} : vector<24x128xbf16> to vector<24x16xbf16>
    %cst = arith.constant dense<0.000000e+00> : vector<24x24xf32>
    %8 = tpu.matmul %6, %7, %cst {dimension_numbers = #tpu.dot_dimension_numbers<[1], [1], [0], [0], [0, 0, 1, 0], [], []>} : vector<24x16xbf16>, vector<24x16xbf16>, vector<24x24xf32> -> vector<24x24xf32>
    %c17_i32 = arith.constant 17 : i32
    %9 = vector.broadcast %c17_i32 : i32 to vector<1x24xi32>
    %10 = arith.cmpi slt, %0, %9 : vector<1x24xi32>
    %cst_2 = arith.constant -1.000000e+30 : f32
    %11 = vector.shape_cast %10 : vector<1x24xi1> to vector<1x24xi1>
    %12 = vector.broadcast %11 : vector<1x24xi1> to vector<24x24xi1>
    %13 = vector.broadcast %cst_2 : f32 to vector<24x24xf32>
    %14 = arith.select %12, %8, %13 : vector<24x24xi1>, vector<24x24xf32>
    %cst_3 = arith.constant dense<0xFF800000> : vector<24xf32>
    %15 = vector.multi_reduction <maximumf>, %14, %cst_3 [1] : vector<24x24xf32> to vector<24xf32>
    %16 = vector.shape_cast %15 : vector<24xf32> to vector<24x1xf32>
    %17 = vector.broadcast %16 : vector<24x1xf32> to vector<24x24xf32>
    %18 = arith.subf %14, %17 : vector<24x24xf32>
    %19 = math.exp %18 : vector<24x24xf32>
    %cst_4 = arith.constant dense<0.000000e+00> : vector<24xf32>
    %20 = vector.multi_reduction <add>, %19, %cst_4 [1] : vector<24x24xf32> to vector<24xf32>
    %21 = vector.shape_cast %20 : vector<24xf32> to vector<24x1xf32>
    %cst_5 = arith.constant 11.3137083 : f32
    %22 = vector.broadcast %cst_5 : f32 to vector<24x1xf32>
    %23 = arith.mulf %21, %22 : vector<24x1xf32>
    %24 = vector.broadcast %23 : vector<24x1xf32> to vector<24x24xf32>
    %25 = arith.divf %19, %24 : vector<24x24xf32>
    %26 = arith.truncf %25 : vector<24x24xf32> to vector<24x24xbf16>
    %27 = vector.extract_strided_slice %5 {offsets = [0, 0], sizes = [24, 16], strides = [1, 1]} : vector<24x128xbf16> to vector<24x16xbf16>
    %cst_6 = arith.constant dense<0.000000e+00> : vector<24x16xf32>
    %28 = tpu.matmul %26, %27, %cst_6 {dimension_numbers = #tpu.dot_dimension_numbers<[1], [0], [0], [1], [0, 0, 1, 1], [], []>} : vector<24x24xbf16>, vector<24x16xbf16>, vector<24x16xf32> -> vector<24x16xf32>
    %29 = vector.extract_strided_slice %3 {offsets = [0, 16], sizes = [24, 16], strides = [1, 1]} : vector<24x128xbf16> to vector<24x16xbf16>
    %30 = vector.extract_strided_slice %4 {offsets = [0, 16], sizes = [24, 16], strides = [1, 1]} : vector<24x128xbf16> to vector<24x16xbf16>
    %cst_7 = arith.constant dense<0.000000e+00> : vector<24x24xf32>
    %31 = tpu.matmul %29, %30, %cst_7 {dimension_numbers = #tpu.dot_dimension_numbers<[1], [1], [0], [0], [0, 0, 1, 0], [], []>} : vector<24x16xbf16>, vector<24x16xbf16>, vector<24x24xf32> -> vector<24x24xf32>
    %c17_i32_8 = arith.constant 17 : i32
    %32 = vector.broadcast %c17_i32_8 : i32 to vector<1x24xi32>
    %33 = arith.cmpi slt, %0, %32 : vector<1x24xi32>
    %cst_9 = arith.constant -1.000000e+30 : f32
    %34 = vector.shape_cast %33 : vector<1x24xi1> to vector<1x24xi1>
    %35 = vector.broadcast %34 : vector<1x24xi1> to vector<24x24xi1>
    %36 = vector.broadcast %cst_9 : f32 to vector<24x24xf32>
    %37 = arith.select %35, %31, %36 : vector<24x24xi1>, vector<24x24xf32>
    %cst_10 = arith.constant dense<0xFF800000> : vector<24xf32>
    %38 = vector.multi_reduction <maximumf>, %37, %cst_10 [1] : vector<24x24xf32> to vector<24xf32>
    %39 = vector.shape_cast %38 : vector<24xf32> to vector<24x1xf32>
    %40 = vector.broadcast %39 : vector<24x1xf32> to vector<24x24xf32>
    %41 = arith.subf %37, %40 : vector<24x24xf32>
    %42 = math.exp %41 : vector<24x24xf32>
    %cst_11 = arith.constant dense<0.000000e+00> : vector<24xf32>
    %43 = vector.multi_reduction <add>, %42, %cst_11 [1] : vector<24x24xf32> to vector<24xf32>
    %44 = vector.shape_cast %43 : vector<24xf32> to vector<24x1xf32>
    %cst_12 = arith.constant 11.3137083 : f32
    %45 = vector.broadcast %cst_12 : f32 to vector<24x1xf32>
    %46 = arith.mulf %44, %45 : vector<24x1xf32>
    %47 = vector.broadcast %46 : vector<24x1xf32> to vector<24x24xf32>
    %48 = arith.divf %42, %47 : vector<24x24xf32>
    %49 = arith.truncf %48 : vector<24x24xf32> to vector<24x24xbf16>
    %50 = vector.extract_strided_slice %5 {offsets = [0, 16], sizes = [24, 16], strides = [1, 1]} : vector<24x128xbf16> to vector<24x16xbf16>
    %cst_13 = arith.constant dense<0.000000e+00> : vector<24x16xf32>
    %51 = tpu.matmul %49, %50, %cst_13 {dimension_numbers = #tpu.dot_dimension_numbers<[1], [0], [0], [1], [0, 0, 1, 1], [], []>} : vector<24x24xbf16>, vector<24x16xbf16>, vector<24x16xf32> -> vector<24x16xf32>
    %52 = vector.extract_strided_slice %3 {offsets = [0, 32], sizes = [24, 16], strides = [1, 1]} : vector<24x128xbf16> to vector<24x16xbf16>
    %53 = vector.extract_strided_slice %4 {offsets = [0, 32], sizes = [24, 16], strides = [1, 1]} : vector<24x128xbf16> to vector<24x16xbf16>
    %cst_14 = arith.constant dense<0.000000e+00> : vector<24x24xf32>
    %54 = tpu.matmul %52, %53, %cst_14 {dimension_numbers = #tpu.dot_dimension_numbers<[1], [1], [0], [0], [0, 0, 1, 0], [], []>} : vector<24x16xbf16>, vector<24x16xbf16>, vector<24x24xf32> -> vector<24x24xf32>
    %c17_i32_15 = arith.constant 17 : i32
    %55 = vector.broadcast %c17_i32_15 : i32 to vector<1x24xi32>
    %56 = arith.cmpi slt, %0, %55 : vector<1x24xi32>
    %cst_16 = arith.constant -1.000000e+30 : f32
    %57 = vector.shape_cast %56 : vector<1x24xi1> to vector<1x24xi1>
    %58 = vector.broadcast %57 : vector<1x24xi1> to vector<24x24xi1>
    %59 = vector.broadcast %cst_16 : f32 to vector<24x24xf32>
    %60 = arith.select %58, %54, %59 : vector<24x24xi1>, vector<24x24xf32>
    %cst_17 = arith.constant dense<0xFF800000> : vector<24xf32>
    %61 = vector.multi_reduction <maximumf>, %60, %cst_17 [1] : vector<24x24xf32> to vector<24xf32>
    %62 = vector.shape_cast %61 : vector<24xf32> to vector<24x1xf32>
    %63 = vector.broadcast %62 : vector<24x1xf32> to vector<24x24xf32>
    %64 = arith.subf %60, %63 : vector<24x24xf32>
    %65 = math.exp %64 : vector<24x24xf32>
    %cst_18 = arith.constant dense<0.000000e+00> : vector<24xf32>
    %66 = vector.multi_reduction <add>, %65, %cst_18 [1] : vector<24x24xf32> to vector<24xf32>
    %67 = vector.shape_cast %66 : vector<24xf32> to vector<24x1xf32>
    %cst_19 = arith.constant 11.3137083 : f32
    %68 = vector.broadcast %cst_19 : f32 to vector<24x1xf32>
    %69 = arith.mulf %67, %68 : vector<24x1xf32>
    %70 = vector.broadcast %69 : vector<24x1xf32> to vector<24x24xf32>
    %71 = arith.divf %65, %70 : vector<24x24xf32>
    %72 = arith.truncf %71 : vector<24x24xf32> to vector<24x24xbf16>
    %73 = vector.extract_strided_slice %5 {offsets = [0, 32], sizes = [24, 16], strides = [1, 1]} : vector<24x128xbf16> to vector<24x16xbf16>
    %cst_20 = arith.constant dense<0.000000e+00> : vector<24x16xf32>
    %74 = tpu.matmul %72, %73, %cst_20 {dimension_numbers = #tpu.dot_dimension_numbers<[1], [0], [0], [1], [0, 0, 1, 1], [], []>} : vector<24x24xbf16>, vector<24x16xbf16>, vector<24x16xf32> -> vector<24x16xf32>
    %75 = vector.extract_strided_slice %3 {offsets = [0, 48], sizes = [24, 16], strides = [1, 1]} : vector<24x128xbf16> to vector<24x16xbf16>
    %76 = vector.extract_strided_slice %4 {offsets = [0, 48], sizes = [24, 16], strides = [1, 1]} : vector<24x128xbf16> to vector<24x16xbf16>
    %cst_21 = arith.constant dense<0.000000e+00> : vector<24x24xf32>
    %77 = tpu.matmul %75, %76, %cst_21 {dimension_numbers = #tpu.dot_dimension_numbers<[1], [1], [0], [0], [0, 0, 1, 0], [], []>} : vector<24x16xbf16>, vector<24x16xbf16>, vector<24x24xf32> -> vector<24x24xf32>
    %c17_i32_22 = arith.constant 17 : i32
    %78 = vector.broadcast %c17_i32_22 : i32 to vector<1x24xi32>
    %79 = arith.cmpi slt, %0, %78 : vector<1x24xi32>
    %cst_23 = arith.constant -1.000000e+30 : f32
    %80 = vector.shape_cast %79 : vector<1x24xi1> to vector<1x24xi1>
    %81 = vector.broadcast %80 : vector<1x24xi1> to vector<24x24xi1>
    %82 = vector.broadcast %cst_23 : f32 to vector<24x24xf32>
    %83 = arith.select %81, %77, %82 : vector<24x24xi1>, vector<24x24xf32>
    %cst_24 = arith.constant dense<0xFF800000> : vector<24xf32>
    %84 = vector.multi_reduction <maximumf>, %83, %cst_24 [1] : vector<24x24xf32> to vector<24xf32>
    %85 = vector.shape_cast %84 : vector<24xf32> to vector<24x1xf32>
    %86 = vector.broadcast %85 : vector<24x1xf32> to vector<24x24xf32>
    %87 = arith.subf %83, %86 : vector<24x24xf32>
    %88 = math.exp %87 : vector<24x24xf32>
    %cst_25 = arith.constant dense<0.000000e+00> : vector<24xf32>
    %89 = vector.multi_reduction <add>, %88, %cst_25 [1] : vector<24x24xf32> to vector<24xf32>
    %90 = vector.shape_cast %89 : vector<24xf32> to vector<24x1xf32>
    %cst_26 = arith.constant 11.3137083 : f32
    %91 = vector.broadcast %cst_26 : f32 to vector<24x1xf32>
    %92 = arith.mulf %90, %91 : vector<24x1xf32>
    %93 = vector.broadcast %92 : vector<24x1xf32> to vector<24x24xf32>
    %94 = arith.divf %88, %93 : vector<24x24xf32>
    %95 = arith.truncf %94 : vector<24x24xf32> to vector<24x24xbf16>
    %96 = vector.extract_strided_slice %5 {offsets = [0, 48], sizes = [24, 16], strides = [1, 1]} : vector<24x128xbf16> to vector<24x16xbf16>
    %cst_27 = arith.constant dense<0.000000e+00> : vector<24x16xf32>
    %97 = tpu.matmul %95, %96, %cst_27 {dimension_numbers = #tpu.dot_dimension_numbers<[1], [0], [0], [1], [0, 0, 1, 1], [], []>} : vector<24x24xbf16>, vector<24x16xbf16>, vector<24x16xf32> -> vector<24x16xf32>
    %98 = vector.extract_strided_slice %3 {offsets = [0, 64], sizes = [24, 16], strides = [1, 1]} : vector<24x128xbf16> to vector<24x16xbf16>
    %99 = vector.extract_strided_slice %4 {offsets = [0, 64], sizes = [24, 16], strides = [1, 1]} : vector<24x128xbf16> to vector<24x16xbf16>
    %cst_28 = arith.constant dense<0.000000e+00> : vector<24x24xf32>
    %100 = tpu.matmul %98, %99, %cst_28 {dimension_numbers = #tpu.dot_dimension_numbers<[1], [1], [0], [0], [0, 0, 1, 0], [], []>} : vector<24x16xbf16>, vector<24x16xbf16>, vector<24x24xf32> -> vector<24x24xf32>
    %c17_i32_29 = arith.constant 17 : i32
    %101 = vector.broadcast %c17_i32_29 : i32 to vector<1x24xi32>
    %102 = arith.cmpi slt, %0, %101 : vector<1x24xi32>
    %cst_30 = arith.constant -1.000000e+30 : f32
    %103 = vector.shape_cast %102 : vector<1x24xi1> to vector<1x24xi1>
    %104 = vector.broadcast %103 : vector<1x24xi1> to vector<24x24xi1>
    %105 = vector.broadcast %cst_30 : f32 to vector<24x24xf32>
    %106 = arith.select %104, %100, %105 : vector<24x24xi1>, vector<24x24xf32>
    %cst_31 = arith.constant dense<0xFF800000> : vector<24xf32>
    %107 = vector.multi_reduction <maximumf>, %106, %cst_31 [1] : vector<24x24xf32> to vector<24xf32>
    %108 = vector.shape_cast %107 : vector<24xf32> to vector<24x1xf32>
    %109 = vector.broadcast %108 : vector<24x1xf32> to vector<24x24xf32>
    %110 = arith.subf %106, %109 : vector<24x24xf32>
    %111 = math.exp %110 : vector<24x24xf32>
    %cst_32 = arith.constant dense<0.000000e+00> : vector<24xf32>
    %112 = vector.multi_reduction <add>, %111, %cst_32 [1] : vector<24x24xf32> to vector<24xf32>
    %113 = vector.shape_cast %112 : vector<24xf32> to vector<24x1xf32>
    %cst_33 = arith.constant 11.3137083 : f32
    %114 = vector.broadcast %cst_33 : f32 to vector<24x1xf32>
    %115 = arith.mulf %113, %114 : vector<24x1xf32>
    %116 = vector.broadcast %115 : vector<24x1xf32> to vector<24x24xf32>
    %117 = arith.divf %111, %116 : vector<24x24xf32>
    %118 = arith.truncf %117 : vector<24x24xf32> to vector<24x24xbf16>
    %119 = vector.extract_strided_slice %5 {offsets = [0, 64], sizes = [24, 16], strides = [1, 1]} : vector<24x128xbf16> to vector<24x16xbf16>
    %cst_34 = arith.constant dense<0.000000e+00> : vector<24x16xf32>
    %120 = tpu.matmul %118, %119, %cst_34 {dimension_numbers = #tpu.dot_dimension_numbers<[1], [0], [0], [1], [0, 0, 1, 1], [], []>} : vector<24x24xbf16>, vector<24x16xbf16>, vector<24x16xf32> -> vector<24x16xf32>
    %121 = vector.extract_strided_slice %3 {offsets = [0, 80], sizes = [24, 16], strides = [1, 1]} : vector<24x128xbf16> to vector<24x16xbf16>
    %122 = vector.extract_strided_slice %4 {offsets = [0, 80], sizes = [24, 16], strides = [1, 1]} : vector<24x128xbf16> to vector<24x16xbf16>
    %cst_35 = arith.constant dense<0.000000e+00> : vector<24x24xf32>
    %123 = tpu.matmul %121, %122, %cst_35 {dimension_numbers = #tpu.dot_dimension_numbers<[1], [1], [0], [0], [0, 0, 1, 0], [], []>} : vector<24x16xbf16>, vector<24x16xbf16>, vector<24x24xf32> -> vector<24x24xf32>
    %c17_i32_36 = arith.constant 17 : i32
    %124 = vector.broadcast %c17_i32_36 : i32 to vector<1x24xi32>
    %125 = arith.cmpi slt, %0, %124 : vector<1x24xi32>
    %cst_37 = arith.constant -1.000000e+30 : f32
    %126 = vector.shape_cast %125 : vector<1x24xi1> to vector<1x24xi1>
    %127 = vector.broadcast %126 : vector<1x24xi1> to vector<24x24xi1>
    %128 = vector.broadcast %cst_37 : f32 to vector<24x24xf32>
    %129 = arith.select %127, %123, %128 : vector<24x24xi1>, vector<24x24xf32>
    %cst_38 = arith.constant dense<0xFF800000> : vector<24xf32>
    %130 = vector.multi_reduction <maximumf>, %129, %cst_38 [1] : vector<24x24xf32> to vector<24xf32>
    %131 = vector.shape_cast %130 : vector<24xf32> to vector<24x1xf32>
    %132 = vector.broadcast %131 : vector<24x1xf32> to vector<24x24xf32>
    %133 = arith.subf %129, %132 : vector<24x24xf32>
    %134 = math.exp %133 : vector<24x24xf32>
    %cst_39 = arith.constant dense<0.000000e+00> : vector<24xf32>
    %135 = vector.multi_reduction <add>, %134, %cst_39 [1] : vector<24x24xf32> to vector<24xf32>
    %136 = vector.shape_cast %135 : vector<24xf32> to vector<24x1xf32>
    %cst_40 = arith.constant 11.3137083 : f32
    %137 = vector.broadcast %cst_40 : f32 to vector<24x1xf32>
    %138 = arith.mulf %136, %137 : vector<24x1xf32>
    %139 = vector.broadcast %138 : vector<24x1xf32> to vector<24x24xf32>
    %140 = arith.divf %134, %139 : vector<24x24xf32>
    %141 = arith.truncf %140 : vector<24x24xf32> to vector<24x24xbf16>
    %142 = vector.extract_strided_slice %5 {offsets = [0, 80], sizes = [24, 16], strides = [1, 1]} : vector<24x128xbf16> to vector<24x16xbf16>
    %cst_41 = arith.constant dense<0.000000e+00> : vector<24x16xf32>
    %143 = tpu.matmul %141, %142, %cst_41 {dimension_numbers = #tpu.dot_dimension_numbers<[1], [0], [0], [1], [0, 0, 1, 1], [], []>} : vector<24x24xbf16>, vector<24x16xbf16>, vector<24x16xf32> -> vector<24x16xf32>
    %144 = vector.extract_strided_slice %3 {offsets = [0, 96], sizes = [24, 16], strides = [1, 1]} : vector<24x128xbf16> to vector<24x16xbf16>
    %145 = vector.extract_strided_slice %4 {offsets = [0, 96], sizes = [24, 16], strides = [1, 1]} : vector<24x128xbf16> to vector<24x16xbf16>
    %cst_42 = arith.constant dense<0.000000e+00> : vector<24x24xf32>
    %146 = tpu.matmul %144, %145, %cst_42 {dimension_numbers = #tpu.dot_dimension_numbers<[1], [1], [0], [0], [0, 0, 1, 0], [], []>} : vector<24x16xbf16>, vector<24x16xbf16>, vector<24x24xf32> -> vector<24x24xf32>
    %c17_i32_43 = arith.constant 17 : i32
    %147 = vector.broadcast %c17_i32_43 : i32 to vector<1x24xi32>
    %148 = arith.cmpi slt, %0, %147 : vector<1x24xi32>
    %cst_44 = arith.constant -1.000000e+30 : f32
    %149 = vector.shape_cast %148 : vector<1x24xi1> to vector<1x24xi1>
    %150 = vector.broadcast %149 : vector<1x24xi1> to vector<24x24xi1>
    %151 = vector.broadcast %cst_44 : f32 to vector<24x24xf32>
    %152 = arith.select %150, %146, %151 : vector<24x24xi1>, vector<24x24xf32>
    %cst_45 = arith.constant dense<0xFF800000> : vector<24xf32>
    %153 = vector.multi_reduction <maximumf>, %152, %cst_45 [1] : vector<24x24xf32> to vector<24xf32>
    %154 = vector.shape_cast %153 : vector<24xf32> to vector<24x1xf32>
    %155 = vector.broadcast %154 : vector<24x1xf32> to vector<24x24xf32>
    %156 = arith.subf %152, %155 : vector<24x24xf32>
    %157 = math.exp %156 : vector<24x24xf32>
    %cst_46 = arith.constant dense<0.000000e+00> : vector<24xf32>
    %158 = vector.multi_reduction <add>, %157, %cst_46 [1] : vector<24x24xf32> to vector<24xf32>
    %159 = vector.shape_cast %158 : vector<24xf32> to vector<24x1xf32>
    %cst_47 = arith.constant 11.3137083 : f32
    %160 = vector.broadcast %cst_47 : f32 to vector<24x1xf32>
    %161 = arith.mulf %159, %160 : vector<24x1xf32>
    %162 = vector.broadcast %161 : vector<24x1xf32> to vector<24x24xf32>
    %163 = arith.divf %157, %162 : vector<24x24xf32>
    %164 = arith.truncf %163 : vector<24x24xf32> to vector<24x24xbf16>
    %165 = vector.extract_strided_slice %5 {offsets = [0, 96], sizes = [24, 16], strides = [1, 1]} : vector<24x128xbf16> to vector<24x16xbf16>
    %cst_48 = arith.constant dense<0.000000e+00> : vector<24x16xf32>
    %166 = tpu.matmul %164, %165, %cst_48 {dimension_numbers = #tpu.dot_dimension_numbers<[1], [0], [0], [1], [0, 0, 1, 1], [], []>} : vector<24x24xbf16>, vector<24x16xbf16>, vector<24x16xf32> -> vector<24x16xf32>
    %167 = vector.extract_strided_slice %3 {offsets = [0, 112], sizes = [24, 16], strides = [1, 1]} : vector<24x128xbf16> to vector<24x16xbf16>
    %168 = vector.extract_strided_slice %4 {offsets = [0, 112], sizes = [24, 16], strides = [1, 1]} : vector<24x128xbf16> to vector<24x16xbf16>
    %cst_49 = arith.constant dense<0.000000e+00> : vector<24x24xf32>
    %169 = tpu.matmul %167, %168, %cst_49 {dimension_numbers = #tpu.dot_dimension_numbers<[1], [1], [0], [0], [0, 0, 1, 0], [], []>} : vector<24x16xbf16>, vector<24x16xbf16>, vector<24x24xf32> -> vector<24x24xf32>
    %c17_i32_50 = arith.constant 17 : i32
    %170 = vector.broadcast %c17_i32_50 : i32 to vector<1x24xi32>
    %171 = arith.cmpi slt, %0, %170 : vector<1x24xi32>
    %cst_51 = arith.constant -1.000000e+30 : f32
    %172 = vector.shape_cast %171 : vector<1x24xi1> to vector<1x24xi1>
    %173 = vector.broadcast %172 : vector<1x24xi1> to vector<24x24xi1>
    %174 = vector.broadcast %cst_51 : f32 to vector<24x24xf32>
    %175 = arith.select %173, %169, %174 : vector<24x24xi1>, vector<24x24xf32>
    %cst_52 = arith.constant dense<0xFF800000> : vector<24xf32>
    %176 = vector.multi_reduction <maximumf>, %175, %cst_52 [1] : vector<24x24xf32> to vector<24xf32>
    %177 = vector.shape_cast %176 : vector<24xf32> to vector<24x1xf32>
    %178 = vector.broadcast %177 : vector<24x1xf32> to vector<24x24xf32>
    %179 = arith.subf %175, %178 : vector<24x24xf32>
    %180 = math.exp %179 : vector<24x24xf32>
    %cst_53 = arith.constant dense<0.000000e+00> : vector<24xf32>
    %181 = vector.multi_reduction <add>, %180, %cst_53 [1] : vector<24x24xf32> to vector<24xf32>
    %182 = vector.shape_cast %181 : vector<24xf32> to vector<24x1xf32>
    %cst_54 = arith.constant 11.3137083 : f32
    %183 = vector.broadcast %cst_54 : f32 to vector<24x1xf32>
    %184 = arith.mulf %182, %183 : vector<24x1xf32>
    %185 = vector.broadcast %184 : vector<24x1xf32> to vector<24x24xf32>
    %186 = arith.divf %180, %185 : vector<24x24xf32>
    %187 = arith.truncf %186 : vector<24x24xf32> to vector<24x24xbf16>
    %188 = vector.extract_strided_slice %5 {offsets = [0, 112], sizes = [24, 16], strides = [1, 1]} : vector<24x128xbf16> to vector<24x16xbf16>
    %cst_55 = arith.constant dense<0.000000e+00> : vector<24x16xf32>
    %189 = tpu.matmul %187, %188, %cst_55 {dimension_numbers = #tpu.dot_dimension_numbers<[1], [0], [0], [1], [0, 0, 1, 1], [], []>} : vector<24x24xbf16>, vector<24x16xbf16>, vector<24x16xf32> -> vector<24x16xf32>
    %190 = tpu.concatenate %28, %51, %74, %97, %120, %143, %166, %189 in 1 : vector<24x16xf32>, vector<24x16xf32>, vector<24x16xf32>, vector<24x16xf32>, vector<24x16xf32>, vector<24x16xf32>, vector<24x16xf32>, vector<24x16xf32> -> vector<24x128xf32>
    %191 = arith.truncf %190 : vector<24x128xf32> to vector<24x128xbf16>
    %c0_56 = arith.constant 0 : index
    %c0_57 = arith.constant 0 : index
    %c0_58 = arith.constant 0 : index
    %192 = vector.load %arg2[%c0_56, %c0_57, %c0_58] : memref<1x24x128xbf16, #tpu.memory_space<vmem>>, vector<1x24x128xbf16>
    %193 = vector.shape_cast %192 : vector<1x24x128xbf16> to vector<24x128xbf16>
    %194 = vector.shape_cast %191 : vector<24x128xbf16> to vector<1x24x128xbf16>
    tpu.vector_store %arg2[%c0_56, %c0_57, %c0_58], %194 {strides = array<i32>} : memref<1x24x128xbf16, #tpu.memory_space<vmem>>, vector<1x24x128xbf16>,
    return
  }
  func.func @transform_0(%arg0: i32) -> (i32, i32, i32) {
    %c0_i32 = arith.constant 0 : i32
    %c0_i32_0 = arith.constant 0 : i32
    %c0_i32_1 = arith.constant 0 : i32
    return %arg0, %c0_i32, %c0_i32_0 : i32, i32, i32
  }
  func.func @transform_1(%arg0: i32) -> (i32, i32, i32) {
    %c0_i32 = arith.constant 0 : i32
    %c0_i32_0 = arith.constant 0 : i32
    %c0_i32_1 = arith.constant 0 : i32
    return %arg0, %c0_i32, %c0_i32_0 : i32, i32, i32
  }
}

module attributes {stable_mosaic.version = 11 : i64} {
  func.func @_linear_kernel(%arg0: i32, %arg1: memref<24x128xf32, #tpu.memory_space<vmem>>, %arg2: memref<128x512xbf16, #tpu.memory_space<vmem>>, %arg3: memref<1x512xf32, #tpu.memory_space<vmem>>, %arg4: memref<1x128xf32, #tpu.memory_space<vmem>>, %arg5: memref<1x128xf32, #tpu.memory_space<vmem>>, %arg6: memref<24x512xbf16, #tpu.memory_space<vmem>>) attributes {dimension_semantics = [#tpu.dimension_semantics<parallel>], iteration_bounds = array<i64: 2>, scalar_prefetch = 0 : i64, scratch_operands = 0 : i64, tpu.core_type = #tpu.core_type<tc>, window_params = [{transform_indices = @transform_0, window_bounds = array<i64: 24, 128>}, {pipeline_mode = #tpu.pipeline_mode<synchronous>, transform_indices = @transform_1, window_bounds = array<i64: 128, 512>}, {pipeline_mode = #tpu.pipeline_mode<synchronous>, transform_indices = @transform_2, window_bounds = array<i64: 1, 512>}, {pipeline_mode = #tpu.pipeline_mode<synchronous>, transform_indices = @transform_3, window_bounds = array<i64: 1, 128>}, {pipeline_mode = #tpu.pipeline_mode<synchronous>, transform_indices = @transform_4, window_bounds = array<i64: 1, 128>}, {transform_indices = @transform_5, window_bounds = array<i64: 24, 512>}]} {
    %c0 = arith.constant 0 : index
    %c0_0 = arith.constant 0 : index
    %0 = vector.load %arg1[%c0, %c0_0] : memref<24x128xf32, #tpu.memory_space<vmem>>, vector<24x128xf32>
    %cst = arith.constant dense<0.000000e+00> : vector<24xf32>
    %1 = vector.multi_reduction <add>, %0, %cst [1] : vector<24x128xf32> to vector<24xf32>
    %2 = vector.shape_cast %1 : vector<24xf32> to vector<24x1xf32>
    %cst_1 = arith.constant 1.280000e+02 : f32
    %3 = vector.broadcast %cst_1 : f32 to vector<24x1xf32>
    %4 = arith.divf %2, %3 : vector<24x1xf32>
    %5 = vector.broadcast %4 : vector<24x1xf32> to vector<24x128xf32>
    %6 = arith.subf %0, %5 : vector<24x128xf32>
    %7 = arith.mulf %6, %6 : vector<24x128xf32>
    %cst_2 = arith.constant dense<0.000000e+00> : vector<24xf32>
    %8 = vector.multi_reduction <add>, %7, %cst_2 [1] : vector<24x128xf32> to vector<24xf32>
    %9 = vector.shape_cast %8 : vector<24xf32> to vector<24x1xf32>
    %cst_3 = arith.constant 1.280000e+02 : f32
    %10 = vector.broadcast %cst_3 : f32 to vector<24x1xf32>
    %11 = arith.divf %9, %10 : vector<24x1xf32>
    %12 = vector.broadcast %4 : vector<24x1xf32> to vector<24x128xf32>
    %13 = arith.subf %0, %12 : vector<24x128xf32>
    %cst_4 = arith.constant 9.99999974E-6 : f32
    %14 = vector.broadcast %cst_4 : f32 to vector<24x1xf32>
    %15 = arith.addf %11, %14 : vector<24x1xf32>
    %16 = math.rsqrt %15 : vector<24x1xf32>
    %17 = vector.broadcast %16 : vector<24x1xf32> to vector<24x128xf32>
    %18 = arith.mulf %13, %17 : vector<24x128xf32>
    %c0_5 = arith.constant 0 : index
    %c0_6 = arith.constant 0 : index
    %19 = vector.load %arg4[%c0_5, %c0_6] : memref<1x128xf32, #tpu.memory_space<vmem>>, vector<1x128xf32>
    %20 = vector.broadcast %19 : vector<1x128xf32> to vector<24x128xf32>
    %21 = arith.mulf %18, %20 : vector<24x128xf32>
    %c0_7 = arith.constant 0 : index
    %c0_8 = arith.constant 0 : index
    %22 = vector.load %arg5[%c0_7, %c0_8] : memref<1x128xf32, #tpu.memory_space<vmem>>, vector<1x128xf32>
    %23 = vector.broadcast %22 : vector<1x128xf32> to vector<24x128xf32>
    %24 = arith.addf %21, %23 : vector<24x128xf32>
    %25 = arith.truncf %24 : vector<24x128xf32> to vector<24x128xbf16>
    %c0_9 = arith.constant 0 : index
    %c0_10 = arith.constant 0 : index
    %26 = vector.load %arg2[%c0_9, %c0_10] : memref<128x512xbf16, #tpu.memory_space<vmem>>, vector<128x512xbf16>
    %cst_11 = arith.constant dense<0.000000e+00> : vector<24x512xf32>
    %27 = tpu.matmul %25, %26, %cst_11 {dimension_numbers = #tpu.dot_dimension_numbers<[1], [0], [0], [1], [0, 0, 1, 1], [], []>} : vector<24x128xbf16>, vector<128x512xbf16>, vector<24x512xf32> -> vector<24x512xf32>
    %c0_12 = arith.constant 0 : index
    %c0_13 = arith.constant 0 : index
    %28 = vector.load %arg3[%c0_12, %c0_13] : memref<1x512xf32, #tpu.memory_space<vmem>>, vector<1x512xf32>
    %29 = vector.broadcast %28 : vector<1x512xf32> to vector<24x512xf32>
    %30 = arith.addf %27, %29 : vector<24x512xf32>
    %cst_14 = arith.constant 5.000000e-01 : f32
    %31 = vector.broadcast %cst_14 : f32 to vector<24x512xf32>
    %32 = arith.mulf %31, %30 : vector<24x512xf32>
    %cst_15 = arith.constant 0.707106769 : f32
    %33 = vector.broadcast %cst_15 : f32 to vector<24x512xf32>
    %34 = arith.mulf %30, %33 : vector<24x512xf32>
    %35 = math.erf %34 : vector<24x512xf32>
    %cst_16 = arith.constant 1.000000e+00 : f32
    %36 = vector.broadcast %cst_16 : f32 to vector<24x512xf32>
    %37 = arith.addf %36, %35 : vector<24x512xf32>
    %38 = arith.mulf %32, %37 : vector<24x512xf32>
    %39 = arith.truncf %38 : vector<24x512xf32> to vector<24x512xbf16>
    %c0_17 = arith.constant 0 : index
    %c0_18 = arith.constant 0 : index
    %40 = vector.load %arg6[%c0_17, %c0_18] : memref<24x512xbf16, #tpu.memory_space<vmem>>, vector<24x512xbf16>
    tpu.vector_store %arg6[%c0_17, %c0_18], %39 {strides = array<i32>} : memref<24x512xbf16, #tpu.memory_space<vmem>>, vector<24x512xbf16>,
    return
  }
  func.func @transform_0(%arg0: i32) -> (i32, i32) {
    %c0_i32 = arith.constant 0 : i32
    %c0_i32_0 = arith.constant 0 : i32
    return %arg0, %c0_i32 : i32, i32
  }
  func.func @transform_1(%arg0: i32) -> (i32, i32) {
    %c0_i32 = arith.constant 0 : i32
    %c0_i32_0 = arith.constant 0 : i32
    %c0_i32_1 = arith.constant 0 : i32
    return %c0_i32, %c0_i32_0 : i32, i32
  }
  func.func @transform_2(%arg0: i32) -> (i32, i32) {
    %c0_i32 = arith.constant 0 : i32
    %c0_i32_0 = arith.constant 0 : i32
    %c0_i32_1 = arith.constant 0 : i32
    return %c0_i32, %c0_i32_0 : i32, i32
  }
  func.func @transform_3(%arg0: i32) -> (i32, i32) {
    %c0_i32 = arith.constant 0 : i32
    %c0_i32_0 = arith.constant 0 : i32
    %c0_i32_1 = arith.constant 0 : i32
    return %c0_i32, %c0_i32_0 : i32, i32
  }
  func.func @transform_4(%arg0: i32) -> (i32, i32) {
    %c0_i32 = arith.constant 0 : i32
    %c0_i32_0 = arith.constant 0 : i32
    %c0_i32_1 = arith.constant 0 : i32
    return %c0_i32, %c0_i32_0 : i32, i32
  }
  func.func @transform_5(%arg0: i32) -> (i32, i32) {
    %c0_i32 = arith.constant 0 : i32
    %c0_i32_0 = arith.constant 0 : i32
    return %arg0, %c0_i32 : i32, i32
  }
}

module attributes {stable_mosaic.version = 11 : i64} {
  func.func @_linear_kernel(%arg0: i32, %arg1: memref<24x512xbf16, #tpu.memory_space<vmem>>, %arg2: memref<512x128xbf16, #tpu.memory_space<vmem>>, %arg3: memref<1x128xf32, #tpu.memory_space<vmem>>, %arg4: memref<24x128xf32, #tpu.memory_space<vmem>>, %arg5: memref<24x128xf32, #tpu.memory_space<vmem>>) attributes {dimension_semantics = [#tpu.dimension_semantics<parallel>], iteration_bounds = array<i64: 2>, scalar_prefetch = 0 : i64, scratch_operands = 0 : i64, tpu.core_type = #tpu.core_type<tc>, window_params = [{transform_indices = @transform_0, window_bounds = array<i64: 24, 512>}, {pipeline_mode = #tpu.pipeline_mode<synchronous>, transform_indices = @transform_1, window_bounds = array<i64: 512, 128>}, {pipeline_mode = #tpu.pipeline_mode<synchronous>, transform_indices = @transform_2, window_bounds = array<i64: 1, 128>}, {transform_indices = @transform_3, window_bounds = array<i64: 24, 128>}, {transform_indices = @transform_4, window_bounds = array<i64: 24, 128>}]} {
    %c0 = arith.constant 0 : index
    %c0_0 = arith.constant 0 : index
    %0 = vector.load %arg1[%c0, %c0_0] : memref<24x512xbf16, #tpu.memory_space<vmem>>, vector<24x512xbf16>
    %c0_1 = arith.constant 0 : index
    %c0_2 = arith.constant 0 : index
    %1 = vector.load %arg2[%c0_1, %c0_2] : memref<512x128xbf16, #tpu.memory_space<vmem>>, vector<512x128xbf16>
    %cst = arith.constant dense<0.000000e+00> : vector<24x128xf32>
    %2 = tpu.matmul %0, %1, %cst {dimension_numbers = #tpu.dot_dimension_numbers<[1], [0], [0], [1], [0, 0, 1, 1], [], []>} : vector<24x512xbf16>, vector<512x128xbf16>, vector<24x128xf32> -> vector<24x128xf32>
    %c0_3 = arith.constant 0 : index
    %c0_4 = arith.constant 0 : index
    %3 = vector.load %arg3[%c0_3, %c0_4] : memref<1x128xf32, #tpu.memory_space<vmem>>, vector<1x128xf32>
    %4 = vector.broadcast %3 : vector<1x128xf32> to vector<24x128xf32>
    %5 = arith.addf %2, %4 : vector<24x128xf32>
    %c0_5 = arith.constant 0 : index
    %c0_6 = arith.constant 0 : index
    %6 = vector.load %arg4[%c0_5, %c0_6] : memref<24x128xf32, #tpu.memory_space<vmem>>, vector<24x128xf32>
    %7 = arith.addf %5, %6 : vector<24x128xf32>
    %c0_7 = arith.constant 0 : index
    %c0_8 = arith.constant 0 : index
    %8 = vector.load %arg5[%c0_7, %c0_8] : memref<24x128xf32, #tpu.memory_space<vmem>>, vector<24x128xf32>
    tpu.vector_store %arg5[%c0_7, %c0_8], %7 {strides = array<i32>} : memref<24x128xf32, #tpu.memory_space<vmem>>, vector<24x128xf32>,
    return
  }
  func.func @transform_0(%arg0: i32) -> (i32, i32) {
    %c0_i32 = arith.constant 0 : i32
    %c0_i32_0 = arith.constant 0 : i32
    return %arg0, %c0_i32 : i32, i32
  }
  func.func @transform_1(%arg0: i32) -> (i32, i32) {
    %c0_i32 = arith.constant 0 : i32
    %c0_i32_0 = arith.constant 0 : i32
    %c0_i32_1 = arith.constant 0 : i32
    return %c0_i32, %c0_i32_0 : i32, i32
  }
  func.func @transform_2(%arg0: i32) -> (i32, i32) {
    %c0_i32 = arith.constant 0 : i32
    %c0_i32_0 = arith.constant 0 : i32
    %c0_i32_1 = arith.constant 0 : i32
    return %c0_i32, %c0_i32_0 : i32, i32
  }
  func.func @transform_3(%arg0: i32) -> (i32, i32) {
    %c0_i32 = arith.constant 0 : i32
    %c0_i32_0 = arith.constant 0 : i32
    return %arg0, %c0_i32 : i32, i32
  }
  func.func @transform_4(%arg0: i32) -> (i32, i32) {
    %c0_i32 = arith.constant 0 : i32
    %c0_i32_0 = arith.constant 0 : i32
    return %arg0, %c0_i32 : i32, i32
  }
}

module attributes {stable_mosaic.version = 11 : i64} {
  func.func @_classifier_kernel(%arg0: i32, %arg1: memref<2x24x128xf32, #tpu.memory_space<vmem>>, %arg2: memref<1x128xf32, #tpu.memory_space<vmem>>, %arg3: memref<1x128xf32, #tpu.memory_space<vmem>>, %arg4: memref<128x16xbf16, #tpu.memory_space<vmem>>, %arg5: memref<1x16xf32, #tpu.memory_space<vmem>>, %arg6: memref<2x16xf32, #tpu.memory_space<vmem>>) attributes {dimension_semantics = [#tpu.dimension_semantics<parallel>], iteration_bounds = array<i64: 1>, scalar_prefetch = 0 : i64, scratch_operands = 0 : i64, tpu.core_type = #tpu.core_type<tc>, window_params = [{transform_indices = @transform_0, window_bounds = array<i64: 2, 24, 128>}, {pipeline_mode = #tpu.pipeline_mode<synchronous>, transform_indices = @transform_1, window_bounds = array<i64: 1, 128>}, {pipeline_mode = #tpu.pipeline_mode<synchronous>, transform_indices = @transform_2, window_bounds = array<i64: 1, 128>}, {pipeline_mode = #tpu.pipeline_mode<synchronous>, transform_indices = @transform_3, window_bounds = array<i64: 128, 16>}, {pipeline_mode = #tpu.pipeline_mode<synchronous>, transform_indices = @transform_4, window_bounds = array<i64: 1, 16>}, {transform_indices = @transform_5, window_bounds = array<i64: 2, 16>}]} {
    %c0 = arith.constant 0 : index
    %c0_0 = arith.constant 0 : index
    %c0_1 = arith.constant 0 : index
    %0 = vector.load %arg1[%c0, %c0_0, %c0_1] : memref<2x24x128xf32, #tpu.memory_space<vmem>>, vector<2x24x128xf32>
    %cst = arith.constant dense<0.000000e+00> : vector<2x24xf32>
    %1 = vector.multi_reduction <add>, %0, %cst [2] : vector<2x24x128xf32> to vector<2x24xf32>
    %2 = vector.shape_cast %1 : vector<2x24xf32> to vector<2x24x1xf32>
    %cst_2 = arith.constant 1.280000e+02 : f32
    %3 = vector.broadcast %cst_2 : f32 to vector<2x24x1xf32>
    %4 = arith.divf %2, %3 : vector<2x24x1xf32>
    %5 = vector.broadcast %4 : vector<2x24x1xf32> to vector<2x24x128xf32>
    %6 = arith.subf %0, %5 : vector<2x24x128xf32>
    %7 = arith.mulf %6, %6 : vector<2x24x128xf32>
    %cst_3 = arith.constant dense<0.000000e+00> : vector<2x24xf32>
    %8 = vector.multi_reduction <add>, %7, %cst_3 [2] : vector<2x24x128xf32> to vector<2x24xf32>
    %9 = vector.shape_cast %8 : vector<2x24xf32> to vector<2x24x1xf32>
    %cst_4 = arith.constant 1.280000e+02 : f32
    %10 = vector.broadcast %cst_4 : f32 to vector<2x24x1xf32>
    %11 = arith.divf %9, %10 : vector<2x24x1xf32>
    %12 = vector.broadcast %4 : vector<2x24x1xf32> to vector<2x24x128xf32>
    %13 = arith.subf %0, %12 : vector<2x24x128xf32>
    %cst_5 = arith.constant 9.99999974E-6 : f32
    %14 = vector.broadcast %cst_5 : f32 to vector<2x24x1xf32>
    %15 = arith.addf %11, %14 : vector<2x24x1xf32>
    %16 = math.rsqrt %15 : vector<2x24x1xf32>
    %17 = vector.broadcast %16 : vector<2x24x1xf32> to vector<2x24x128xf32>
    %18 = arith.mulf %13, %17 : vector<2x24x128xf32>
    %c0_6 = arith.constant 0 : index
    %c0_7 = arith.constant 0 : index
    %19 = vector.load %arg2[%c0_6, %c0_7] : memref<1x128xf32, #tpu.memory_space<vmem>>, vector<1x128xf32>
    %20 = vector.shape_cast %19 : vector<1x128xf32> to vector<1x1x128xf32>
    %21 = vector.broadcast %20 : vector<1x1x128xf32> to vector<2x24x128xf32>
    %22 = arith.mulf %18, %21 : vector<2x24x128xf32>
    %c0_8 = arith.constant 0 : index
    %c0_9 = arith.constant 0 : index
    %23 = vector.load %arg3[%c0_8, %c0_9] : memref<1x128xf32, #tpu.memory_space<vmem>>, vector<1x128xf32>
    %24 = vector.shape_cast %23 : vector<1x128xf32> to vector<1x1x128xf32>
    %25 = vector.broadcast %24 : vector<1x1x128xf32> to vector<2x24x128xf32>
    %26 = arith.addf %22, %25 : vector<2x24x128xf32>
    %27 = tpu.iota {dimensions = array<i32: 1>} : vector<1x24x1xi32>
    %c17_i32 = arith.constant 17 : i32
    %28 = vector.broadcast %c17_i32 : i32 to vector<1x24x1xi32>
    %29 = arith.cmpi slt, %27, %28 : vector<1x24x1xi32>
    %cst_10 = arith.constant 0.000000e+00 : f32
    %30 = vector.shape_cast %29 : vector<1x24x1xi1> to vector<1x24x1xi1>
    %31 = vector.broadcast %30 : vector<1x24x1xi1> to vector<2x24x128xi1>
    %32 = vector.broadcast %cst_10 : f32 to vector<2x24x128xf32>
    %33 = arith.select %31, %26, %32 : vector<2x24x128xi1>, vector<2x24x128xf32>
    %cst_11 = arith.constant dense<0.000000e+00> : vector<2x128xf32>
    %34 = vector.multi_reduction <add>, %33, %cst_11 [1] : vector<2x24x128xf32> to vector<2x128xf32>
    %cst_12 = arith.constant 0.0588235296 : f32
    %35 = vector.broadcast %cst_12 : f32 to vector<2x128xf32>
    %36 = arith.mulf %34, %35 : vector<2x128xf32>
    %37 = arith.truncf %36 : vector<2x128xf32> to vector<2x128xbf16>
    %c0_13 = arith.constant 0 : index
    %c0_14 = arith.constant 0 : index
    %38 = vector.load %arg4[%c0_13, %c0_14] : memref<128x16xbf16, #tpu.memory_space<vmem>>, vector<128x16xbf16>
    %cst_15 = arith.constant dense<0.000000e+00> : vector<2x16xf32>
    %39 = tpu.matmul %37, %38, %cst_15 {dimension_numbers = #tpu.dot_dimension_numbers<[1], [0], [0], [1], [0, 0, 1, 1], [], []>} : vector<2x128xbf16>, vector<128x16xbf16>, vector<2x16xf32> -> vector<2x16xf32>
    %c0_16 = arith.constant 0 : index
    %c0_17 = arith.constant 0 : index
    %40 = vector.load %arg5[%c0_16, %c0_17] : memref<1x16xf32, #tpu.memory_space<vmem>>, vector<1x16xf32>
    %41 = vector.broadcast %40 : vector<1x16xf32> to vector<2x16xf32>
    %42 = arith.addf %39, %41 : vector<2x16xf32>
    %c0_18 = arith.constant 0 : index
    %c0_19 = arith.constant 0 : index
    %43 = vector.load %arg6[%c0_18, %c0_19] : memref<2x16xf32, #tpu.memory_space<vmem>>, vector<2x16xf32>
    tpu.vector_store %arg6[%c0_18, %c0_19], %42 {strides = array<i32>} : memref<2x16xf32, #tpu.memory_space<vmem>>, vector<2x16xf32>,
    return
  }
  func.func @transform_0(%arg0: i32) -> (i32, i32, i32) {
    %c0_i32 = arith.constant 0 : i32
    %c0_i32_0 = arith.constant 0 : i32
    %c0_i32_1 = arith.constant 0 : i32
    return %arg0, %c0_i32, %c0_i32_0 : i32, i32, i32
  }
  func.func @transform_1(%arg0: i32) -> (i32, i32) {
    %c0_i32 = arith.constant 0 : i32
    %c0_i32_0 = arith.constant 0 : i32
    %c0_i32_1 = arith.constant 0 : i32
    return %c0_i32, %c0_i32_0 : i32, i32
  }
  func.func @transform_2(%arg0: i32) -> (i32, i32) {
    %c0_i32 = arith.constant 0 : i32
    %c0_i32_0 = arith.constant 0 : i32
    %c0_i32_1 = arith.constant 0 : i32
    return %c0_i32, %c0_i32_0 : i32, i32
  }
  func.func @transform_3(%arg0: i32) -> (i32, i32) {
    %c0_i32 = arith.constant 0 : i32
    %c0_i32_0 = arith.constant 0 : i32
    %c0_i32_1 = arith.constant 0 : i32
    return %c0_i32, %c0_i32_0 : i32, i32
  }
  func.func @transform_4(%arg0: i32) -> (i32, i32) {
    %c0_i32 = arith.constant 0 : i32
    %c0_i32_0 = arith.constant 0 : i32
    %c0_i32_1 = arith.constant 0 : i32
    return %c0_i32, %c0_i32_0 : i32, i32
  }
  func.func @transform_5(%arg0: i32) -> (i32, i32) {
    %c0_i32 = arith.constant 0 : i32
    %c0_i32_0 = arith.constant 0 : i32
    return %arg0, %c0_i32 : i32, i32
  }
}

</mosaic_0001>

<llo_original>
// kernel: vit_forward.12
$region0: #{vit_forward.12}
  #allocation0 [shape = 'u32[]', space=smem, size = 0x4, offset = 0x4, fixed_abs, tag = 'smem constant byte address 0x4 - core index']
  #allocation1 [shape = 'u32[144,128]{1,0:T(1,128)}', space=vmem, size = 0x12000, scoped, tag = 'internal scratch']
  %s0 = inlined_call_operand.vmem [shape: f32[32,48], index: 0, kind: input, shape index: {}]
  %s1 = inlined_call_operand.vmem [shape: bf16[48,128], index: 1, kind: input, shape index: {}]
  %s2 = inlined_call_operand.vmem [shape: f32[1,128], index: 2, kind: input, shape index: {}]
  %s3 = inlined_call_operand.vmem [shape: f32[32,128], index: 3, kind: output, shape index: {}]
  %s4 = sld [smem:[#allocation0]]
  $region45: #{vit_forward.12} parent=0
    _
  %s6 = ssub.s32 1, %s4
  %s7 = scalar_select 0, %s6, %s4
  loop: start=0, step=1, limit=4
  $region2: #{vit_forward.12} parent=0 // loop_pre_header
    _
  $region3: #{vit_forward.12} parent=0 // loop_header
    %s9 = sphi 0, %s13
    %p10 = scmp.ge.s32.totalorder %s9, 4
    %s19 = sphi 0, %s21
    %s22 = sphi 0, %s19
    %s23 = sphi 0, %s22
    %s39 = sphi 0, %s23
    %s43 = sphi 0, %s43
    %s45 = sphi 0, %s43
    %s46 = sphi 0, %s45
    %s60 = sphi 0, %s46
    %s64 = sphi 0, %s64
    %s66 = sphi 0, %s64
    %s67 = sphi 0, %s66
    %s81 = sphi 0, %s67
    %s87 = sphi 0, %s89
    %s90 = sphi 0, %s87
    %s91 = sphi 0, %s90
    %s107 = sphi 0, %s91
  $region4: #{vit_forward.12} parent=0 // loop_header_branch
    %12 = sbr.rel (%p10) target = $region8
  $region5: #{vit_forward.12} parent=0 // loop_body
    %s14 = ssub.s32 %s9, 1
    %s15 = ssub.s32 %s9, 2
    %s16 = sadd.s32 %s9, 1
    %s17 = ssub.s32 %s9, %s16
    %p18 = scmp.eq.s32.totalorder %s17, 0
    %s20 = sadd.s32 %s19, 1
    %s21 = scalar_select %p18, %s19, %s20
    %p24 = pneg %p18
    %p25 = scmp.eq.s32.totalorder %s9, 1
    %p26 = por %p24, %p25
    %p27 = scmp.ne.s32.totalorder %s19, %s22
    %p28 = scmp.eq.s32.totalorder %s9, 0
    %p29 = por %p27, %p28
    %p30 = scmp.ne.s32.totalorder %s19, %s22
    %p31 = scmp.eq.s32.totalorder %s14, 1
    %p32 = por %p30, %p31
    %p33 = scmp.ne.s32.totalorder %s22, %s23
    %p34 = scmp.eq.s32.totalorder %s14, 0
    %p35 = por %p33, %p34
    %p36 = scmp.ne.s32.totalorder %s22, %s23
    %p37 = scmp.eq.s32.totalorder %s15, 1
    %p38 = por %p36, %p37
    %p40 = scmp.ne.s32.totalorder %s23, %s39
    %p41 = scmp.eq.s32.totalorder %s15, 0
    %p42 = por %p40, %p41
    %s44 = sadd.s32 %s43, 1
    %p47 = scmp.eq.s32.totalorder %s9, 1
    %p48 = scmp.ne.s32.totalorder %s43, %s45
    %p49 = scmp.eq.s32.totalorder %s9, 0
    %p50 = por %p48, %p49
    %p51 = scmp.ne.s32.totalorder %s43, %s45
    %p52 = scmp.eq.s32.totalorder %s14, 1
    %p53 = por %p51, %p52
    %p54 = scmp.ne.s32.totalorder %s45, %s46
    %p55 = scmp.eq.s32.totalorder %s14, 0
    %p56 = por %p54, %p55
    %p57 = scmp.ne.s32.totalorder %s45, %s46
    %p58 = scmp.eq.s32.totalorder %s15, 1
    %p59 = por %p57, %p58
    %p61 = scmp.ne.s32.totalorder %s46, %s60
    %p62 = scmp.eq.s32.totalorder %s15, 0
    %p63 = por %p61, %p62
    %s65 = sadd.s32 %s64, 1
    %p68 = scmp.eq.s32.totalorder %s9, 1
    %p69 = scmp.ne.s32.totalorder %s64, %s66
    %p70 = scmp.eq.s32.totalorder %s9, 0
    %p71 = por %p69, %p70
    %p72 = scmp.ne.s32.totalorder %s64, %s66
    %p73 = scmp.eq.s32.totalorder %s14, 1
    %p74 = por %p72, %p73
    %p75 = scmp.ne.s32.totalorder %s66, %s67
    %p76 = scmp.eq.s32.totalorder %s14, 0
    %p77 = por %p75, %p76
    %p78 = scmp.ne.s32.totalorder %s66, %s67
    %p79 = scmp.eq.s32.totalorder %s15, 1
    %p80 = por %p78, %p79
    %p82 = scmp.ne.s32.totalorder %s67, %s81
    %p83 = scmp.eq.s32.totalorder %s15, 0
    %p84 = por %p82, %p83
    %s85 = ssub.s32 %s9, %s16
    %p86 = scmp.eq.s32.totalorder %s85, 0
    %s88 = sadd.s32 %s87, 1
    %s89 = scalar_select %p86, %s87, %s88
    %p92 = pneg %p86
    %p93 = scmp.eq.s32.totalorder %s9, 1
    %p94 = por %p92, %p93
    %p95 = scmp.ne.s32.totalorder %s87, %s90
    %p96 = scmp.eq.s32.totalorder %s9, 0
    %p97 = por %p95, %p96
    %p98 = scmp.ne.s32.totalorder %s87, %s90
    %p99 = scmp.eq.s32.totalorder %s14, 1
    %p100 = por %p98, %p99
    %p101 = scmp.ne.s32.totalorder %s90, %s91
    %p102 = scmp.eq.s32.totalorder %s14, 0
    %p103 = por %p101, %p102
    %p104 = scmp.ne.s32.totalorder %s90, %s91
    %p105 = scmp.eq.s32.totalorder %s15, 1
    %p106 = por %p104, %p105
    %p108 = scmp.ne.s32.totalorder %s91, %s107
    %p109 = scmp.eq.s32.totalorder %s15, 0
    %p110 = por %p108, %p109
    %p111 = scmp.le.s32.totalorder 1, %s9
    %p112 = scmp.lt.s32.totalorder %s9, 3
    %p113 = pnand %p111, %p112
    %p114 = pneg %p113
    // Predicated region
    $region9: #{vit_forward.12} parent=5 // pred_check
      _
    $region10: #{vit_forward.12} parent=5 // pred_check_branch
      %116 = sbr.rel (%p113) target = $region12
    $region11: #{vit_forward.12} parent=5 // pred_region
      %s117 = ssub.s32 %s9, 1
      // Predicated region
      $region13: #{vit_forward.12} parent=11 // pred_check
        %p118 = pneg %p56
      $region14: #{vit_forward.12} parent=11 // pred_check_branch
        %120 = sbr.rel (%p118) target = $region16
      $region15: #{vit_forward.12} parent=11 // pred_region
        _
      $region16: #{vit_forward.12} parent=11 // pred_fallthru
        _
      // Predicated region
      $region17: #{vit_forward.12} parent=11 // pred_check
        %p121 = pneg %p77
      $region18: #{vit_forward.12} parent=11 // pred_check_branch
        %123 = sbr.rel (%p121) target = $region20
      $region19: #{vit_forward.12} parent=11 // pred_region
        _
      $region20: #{vit_forward.12} parent=11 // pred_fallthru
        _
    $region12: #{vit_forward.12} parent=5 // pred_fallthru
      _
    %p124 = scmp.lt.s32.totalorder %s9, 2
    // Predicated region
    $region21: #{vit_forward.12} parent=5 // pred_check
      %p125 = pneg %p124
    $region22: #{vit_forward.12} parent=5 // pred_check_branch
      %127 = sbr.rel (%p125) target = $region24
    $region23: #{vit_forward.12} parent=5 // pred_region
      // Predicated region
      $region25: #{vit_forward.12} parent=23 // pred_check
        %p128 = pneg %p29
      $region26: #{vit_forward.12} parent=23 // pred_check_branch
        %130 = sbr.rel (%p128) target = $region28
      $region27: #{vit_forward.12} parent=23 // pred_region
        %s131 = smul.u32 2, %s9
        %p132 = scmp.lt.s32.totalorder %s131, 3
        %s133 = scalar_select %p132, %s131, 3
        %s134 = smul.addr %s133, 8
        %s135 = scalar_lea.vmem %s0, %s134
        %s136 = smul.u32 2, %s9
      $region28: #{vit_forward.12} parent=23 // pred_fallthru
        _
    $region24: #{vit_forward.12} parent=5 // pred_fallthru
      _
    %p137 = scmp.le.s32.totalorder 1, %s9
    %p138 = scmp.lt.s32.totalorder %s9, 3
    %p139 = pnand %p137, %p138
    %p140 = pneg %p139
    // Predicated region
    $region29: #{vit_forward.12} parent=5 // pred_check
      _
    $region30: #{vit_forward.12} parent=5 // pred_check_branch
      %142 = sbr.rel (%p139) target = $region32
    $region31: #{vit_forward.12} parent=5 // pred_region
      %s143 = ssub.s32 %s9, 1
      %s144 = smul.u32 2, %s14
      %p145 = scmp.lt.s32.totalorder %s144, 3
      %s146 = scalar_select %p145, %s144, 3
      %s147 = smul.addr %s146, 8
      %s148 = scalar_lea.vmem %s0, %s147
      %p149 = pneg %p35
      %p150 = pneg %p32
      %p151 = pneg %p56
      %p152 = pneg %p53
      %p153 = pneg %p77
      %p154 = pneg %p74
      %p155 = pneg %p103
      %p156 = pneg %p100
      %s157 = smul.u32 2, %s14
      %p158 = scmp.lt.s32.totalorder %s157, 3
      %s159 = scalar_select %p158, %s157, 3
      %s160 = smul.addr %s159, 8
      %s161 = scalar_lea.vmem %s3, %s160
      %s162 = smul.u32 2, %s14
      %p163 = scmp.lt.s32.totalorder %s162, 3
      %s164 = scalar_select %p163, %s162, 3
      %s165 = smul.addr %s164, 8
      %s166 = scalar_lea.vmem %s0, %s165
      %s167 = smul.u32 2, %s14
      %s168 = smul.u32 2, %s14
      %p169 = scmp.lt.s32.totalorder %s168, 3
      %s170 = scalar_select %p169, %s168, 3
      %s171 = smul.addr %s170, 8
      %s172 = scalar_lea.vmem %s3, %s171
      %s173 = smul.u32 2, %s14
      %v175 = vld [vmem:[%s166] sm:$0xff]
      %v176 = vld [vmem:[%s166 + $0x8] sm:$0xff]
      %v177 = vpack.c.bf16 %v176, %v175
      %v178 = vld [vmem:[%s1] sm:$0xf]
      %v179 = vld [vmem:[%s1 + $0x4] sm:$0xf]
      %v180 = vld [vmem:[%s1 + $0x8] sm:$0xf]
      %v181 = vld [vmem:[%s1 + $0xc] sm:$0xf]
      %v182 = vld [vmem:[%s1 + $0x10] sm:$0xf]
      %v183 = vld [vmem:[%s1 + $0x14] sm:$0xf]
      %v184 = vld [vmem:[%s2] sm:$0x1]
      %v186 = vlaneseq
      %v187 = vshrl.u32 %v186, 7
      %v188 = vsub.s32 0, %v187
      %v189 = vrot.slane %v184, %v188
      %v197 = vunpack.c.l.b16 %v178
      %v198 = vunpack.c.l.b16 %v179
      %v199 = vunpack.c.l.b16 %v180
      %v200 = vunpack.c.l.b16 %v181
      %v201 = vunpack.c.l.b16 %v182
      %v202 = vunpack.c.l.b16 %v183
      %v203 = vpack.c.b16 %v198, %v197
      %v204 = vpack.c.b16 %v200, %v199
      %v205 = vpack.c.b16 %v202, %v201
      %vm209 = vcmask 392192
      %v211 = vsel %vm209, %v177, 0
      %213 = vmatprep.subr.bf16.mxu0 0
      %214 = vmatpush1.bf16.msra.mxu0 %v203
      %215 = vmatprep.subr.bf16.mxu0 0
      %216 = vmatpush1.bf16.msra.mxu0 %v204
      %217 = vmatprep.subr.bf16.mxu0 0
      %218 = vmatpush1.bf16.msra.mxu0 %v205
      %219 = vmatprep.subr.bf16.mxu0 0
      %220 = vmatpush1.bf16.msra.mxu0 0
      %221 = vmatprep.subr.bf16.mxu0 0
      %222 = vmatpush1.bf16.msra.mxu0 0
      %223 = vmatprep.subr.bf16.mxu0 0
      %224 = vmatpush1.bf16.msra.mxu0 0
      %225 = vmatprep.subr.bf16.mxu0 0
      %226 = vmatpush1.bf16.msra.mxu0 0
      %227 = vmatprep.subr.bf16.mxu0 0
      %228 = vmatpush1.bf16.msra.mxu0 0
      %229 = vmatprep.subr.bf16.mxu0 0
      %230 = vmatpush1.bf16.msra.mxu0 0
      %231 = vmatprep.subr.bf16.mxu0 0
      %232 = vmatpush1.bf16.msra.mxu0 0
      %233 = vmatprep.subr.bf16.mxu0 0
      %234 = vmatpush1.bf16.msra.mxu0 0
      %235 = vmatprep.subr.bf16.mxu0 0
      %236 = vmatpush1.bf16.msra.mxu0 0
      %237 = vmatprep.subr.bf16.mxu0 0
      %238 = vmatpush1.bf16.msra.mxu0 0
      %239 = vmatprep.subr.bf16.mxu0 0
      %240 = vmatpush1.bf16.msra.mxu0 0
      %241 = vmatprep.subr.bf16.mxu0 0
      %242 = vmatpush1.bf16.msra.mxu0 0
      %243 = vmatprep.subr.bf16.mxu0 0
      %244 = vmatpush1.bf16.msra.mxu0 0
      %245 = vmatprep.mubr.bf16.mxu0 0
      %246 = vmatmul.mubr.bf16.gmra.mrb[0].mxu0 %v211
      %v247 = vpop.f32.mrb[0].mxu0
      %v248 = vadd.f32 %v189, %v247
      %v249 = vpop.f32.mrb[0].mxu0
      %v250 = vpop.f32.mrb[0].mxu0
      %v251 = vadd.f32 %v189, %v250
      %v252 = vpop.f32.mrb[0].mxu0
      %253 = vdwg.mxu0
      %254 = vst [vmem:[%s172] sm:$0xff] %v248
      %255 = vst [vmem:[%s172 + $0x8] sm:$0xff] %v251
      %s256 = smul.u32 2, %s14
      %p257 = scmp.lt.s32.totalorder %s256, 3
      %s258 = scalar_select %p257, %s256, 3
      %s259 = smul.addr %s258, 8
      %s260 = scalar_lea.vmem %s3, %s259
      // Predicated region
      $region33: #{vit_forward.12} parent=31 // pred_check
        %p261 = pneg %p100
      $region34: #{vit_forward.12} parent=31 // pred_check_branch
        %263 = sbr.rel (%p261) target = $region36
      $region35: #{vit_forward.12} parent=31 // pred_region
        %s264 = smul.u32 2, %s14
      $region36: #{vit_forward.12} parent=31 // pred_fallthru
        _
    $region32: #{vit_forward.12} parent=5 // pred_fallthru
      _
    %p265 = scmp.le.s32.totalorder 2, %s9
    // Predicated region
    $region37: #{vit_forward.12} parent=5 // pred_check
      %p266 = pneg %p265
    $region38: #{vit_forward.12} parent=5 // pred_check_branch
      %268 = sbr.rel (%p266) target = $region40
    $region39: #{vit_forward.12} parent=5 // pred_region
      %s269 = ssub.s32 %s9, 2
      // Predicated region
      $region41: #{vit_forward.12} parent=39 // pred_check
        %p270 = pneg %p106
      $region42: #{vit_forward.12} parent=39 // pred_check_branch
        %272 = sbr.rel (%p270) target = $region44
      $region43: #{vit_forward.12} parent=39 // pred_region
        %s273 = smul.u32 2, %s15
        %p274 = scmp.lt.s32.totalorder %s273, 3
        %s275 = scalar_select %p274, %s273, 3
        %s276 = smul.addr %s275, 8
        %s277 = scalar_lea.vmem %s3, %s276
      $region44: #{vit_forward.12} parent=39 // pred_fallthru
        _
    $region40: #{vit_forward.12} parent=5 // pred_fallthru
      _
  $region6: #{vit_forward.12} parent=0 // loop_footer
    %s13 = sadd.s32 1, %s9
  $region7: #{vit_forward.12} parent=0 // loop_footer_branch
    %8 = sbr.rel target = $region3
  $region8: #{vit_forward.12} parent=0 // loop_exit
    _

// kernel: vit_forward.15
$region0: #{vit_forward.15}
  #allocation0 [shape = 'u32[]', space=smem, size = 0x4, offset = 0x4, fixed_abs, tag = 'smem constant byte address 0x4 - core index']
  #allocation1 [shape = 'u32[144,128]{1,0:T(1,128)}', space=vmem, size = 0x12000, scoped, tag = 'internal scratch']
  %s0 = inlined_call_operand.vmem [shape: bf16[48,128], index: 0, kind: input, shape index: {}]
  %s1 = inlined_call_operand.vmem [shape: bf16[128,128], index: 1, kind: input, shape index: {}]
  %s2 = inlined_call_operand.vmem [shape: f32[1,128], index: 2, kind: input, shape index: {}]
  %s3 = inlined_call_operand.vmem [shape: f32[48,128], index: 3, kind: input, shape index: {}]
  %s4 = inlined_call_operand.vmem [shape: f32[48,128], index: 4, kind: output, shape index: {}]
  %s5 = sld [smem:[#allocation0]]
  $region49: #{vit_forward.15} parent=0
    _
  %s7 = ssub.s32 1, %s5
  %s8 = scalar_select 0, %s7, %s5
  loop: start=0, step=1, limit=4
  $region2: #{vit_forward.15} parent=0 // loop_pre_header
    _
  $region3: #{vit_forward.15} parent=0 // loop_header
    %s10 = sphi 0, %s14
    %p11 = scmp.ge.s32.totalorder %s10, 4
    %s20 = sphi 0, %s22
    %s23 = sphi 0, %s20
    %s24 = sphi 0, %s23
    %s40 = sphi 0, %s24
    %s44 = sphi 0, %s44
    %s46 = sphi 0, %s44
    %s47 = sphi 0, %s46
    %s61 = sphi 0, %s47
    %s65 = sphi 0, %s65
    %s67 = sphi 0, %s65
    %s68 = sphi 0, %s67
    %s82 = sphi 0, %s68
    %s88 = sphi 0, %s90
    %s91 = sphi 0, %s88
    %s92 = sphi 0, %s91
    %s108 = sphi 0, %s92
    %s114 = sphi 0, %s116
    %s117 = sphi 0, %s114
    %s118 = sphi 0, %s117
    %s134 = sphi 0, %s118
  $region4: #{vit_forward.15} parent=0 // loop_header_branch
    %13 = sbr.rel (%p11) target = $region8
  $region5: #{vit_forward.15} parent=0 // loop_body
    %s15 = ssub.s32 %s10, 1
    %s16 = ssub.s32 %s10, 2
    %s17 = sadd.s32 %s10, 1
    %s18 = ssub.s32 %s10, %s17
    %p19 = scmp.eq.s32.totalorder %s18, 0
    %s21 = sadd.s32 %s20, 1
    %s22 = scalar_select %p19, %s20, %s21
    %p25 = pneg %p19
    %p26 = scmp.eq.s32.totalorder %s10, 1
    %p27 = por %p25, %p26
    %p28 = scmp.ne.s32.totalorder %s20, %s23
    %p29 = scmp.eq.s32.totalorder %s10, 0
    %p30 = por %p28, %p29
    %p31 = scmp.ne.s32.totalorder %s20, %s23
    %p32 = scmp.eq.s32.totalorder %s15, 1
    %p33 = por %p31, %p32
    %p34 = scmp.ne.s32.totalorder %s23, %s24
    %p35 = scmp.eq.s32.totalorder %s15, 0
    %p36 = por %p34, %p35
    %p37 = scmp.ne.s32.totalorder %s23, %s24
    %p38 = scmp.eq.s32.totalorder %s16, 1
    %p39 = por %p37, %p38
    %p41 = scmp.ne.s32.totalorder %s24, %s40
    %p42 = scmp.eq.s32.totalorder %s16, 0
    %p43 = por %p41, %p42
    %s45 = sadd.s32 %s44, 1
    %p48 = scmp.eq.s32.totalorder %s10, 1
    %p49 = scmp.ne.s32.totalorder %s44, %s46
    %p50 = scmp.eq.s32.totalorder %s10, 0
    %p51 = por %p49, %p50
    %p52 = scmp.ne.s32.totalorder %s44, %s46
    %p53 = scmp.eq.s32.totalorder %s15, 1
    %p54 = por %p52, %p53
    %p55 = scmp.ne.s32.totalorder %s46, %s47
    %p56 = scmp.eq.s32.totalorder %s15, 0
    %p57 = por %p55, %p56
    %p58 = scmp.ne.s32.totalorder %s46, %s47
    %p59 = scmp.eq.s32.totalorder %s16, 1
    %p60 = por %p58, %p59
    %p62 = scmp.ne.s32.totalorder %s47, %s61
    %p63 = scmp.eq.s32.totalorder %s16, 0
    %p64 = por %p62, %p63
    %s66 = sadd.s32 %s65, 1
    %p69 = scmp.eq.s32.totalorder %s10, 1
    %p70 = scmp.ne.s32.totalorder %s65, %s67
    %p71 = scmp.eq.s32.totalorder %s10, 0
    %p72 = por %p70, %p71
    %p73 = scmp.ne.s32.totalorder %s65, %s67
    %p74 = scmp.eq.s32.totalorder %s15, 1
    %p75 = por %p73, %p74
    %p76 = scmp.ne.s32.totalorder %s67, %s68
    %p77 = scmp.eq.s32.totalorder %s15, 0
    %p78 = por %p76, %p77
    %p79 = scmp.ne.s32.totalorder %s67, %s68
    %p80 = scmp.eq.s32.totalorder %s16, 1
    %p81 = por %p79, %p80
    %p83 = scmp.ne.s32.totalorder %s68, %s82
    %p84 = scmp.eq.s32.totalorder %s16, 0
    %p85 = por %p83, %p84
    %s86 = ssub.s32 %s10, %s17
    %p87 = scmp.eq.s32.totalorder %s86, 0
    %s89 = sadd.s32 %s88, 1
    %s90 = scalar_select %p87, %s88, %s89
    %p93 = pneg %p87
    %p94 = scmp.eq.s32.totalorder %s10, 1
    %p95 = por %p93, %p94
    %p96 = scmp.ne.s32.totalorder %s88, %s91
    %p97 = scmp.eq.s32.totalorder %s10, 0
    %p98 = por %p96, %p97
    %p99 = scmp.ne.s32.totalorder %s88, %s91
    %p100 = scmp.eq.s32.totalorder %s15, 1
    %p101 = por %p99, %p100
    %p102 = scmp.ne.s32.totalorder %s91, %s92
    %p103 = scmp.eq.s32.totalorder %s15, 0
    %p104 = por %p102, %p103
    %p105 = scmp.ne.s32.totalorder %s91, %s92
    %p106 = scmp.eq.s32.totalorder %s16, 1
    %p107 = por %p105, %p106
    %p109 = scmp.ne.s32.totalorder %s92, %s108
    %p110 = scmp.eq.s32.totalorder %s16, 0
    %p111 = por %p109, %p110
    %s112 = ssub.s32 %s10, %s17
    %p113 = scmp.eq.s32.totalorder %s112, 0
    %s115 = sadd.s32 %s114, 1
    %s116 = scalar_select %p113, %s114, %s115
    %p119 = pneg %p113
    %p120 = scmp.eq.s32.totalorder %s10, 1
    %p121 = por %p119, %p120
    %p122 = scmp.ne.s32.totalorder %s114, %s117
    %p123 = scmp.eq.s32.totalorder %s10, 0
    %p124 = por %p122, %p123
    %p125 = scmp.ne.s32.totalorder %s114, %s117
    %p126 = scmp.eq.s32.totalorder %s15, 1
    %p127 = por %p125, %p126
    %p128 = scmp.ne.s32.totalorder %s117, %s118
    %p129 = scmp.eq.s32.totalorder %s15, 0
    %p130 = por %p128, %p129
    %p131 = scmp.ne.s32.totalorder %s117, %s118
    %p132 = scmp.eq.s32.totalorder %s16, 1
    %p133 = por %p131, %p132
    %p135 = scmp.ne.s32.totalorder %s118, %s134
    %p136 = scmp.eq.s32.totalorder %s16, 0
    %p137 = por %p135, %p136
    %p138 = scmp.le.s32.totalorder 1, %s10
    %p139 = scmp.lt.s32.totalorder %s10, 3
    %p140 = pnand %p138, %p139
    %p141 = pneg %p140
    // Predicated region
    $region9: #{vit_forward.15} parent=5 // pred_check
      _
    $region10: #{vit_forward.15} parent=5 // pred_check_branch
      %143 = sbr.rel (%p140) target = $region12
    $region11: #{vit_forward.15} parent=5 // pred_region
      %s144 = ssub.s32 %s10, 1
      // Predicated region
      $region13: #{vit_forward.15} parent=11 // pred_check
        %p145 = pneg %p57
      $region14: #{vit_forward.15} parent=11 // pred_check_branch
        %147 = sbr.rel (%p145) target = $region16
      $region15: #{vit_forward.15} parent=11 // pred_region
        _
      $region16: #{vit_forward.15} parent=11 // pred_fallthru
        _
      // Predicated region
      $region17: #{vit_forward.15} parent=11 // pred_check
        %p148 = pneg %p78
      $region18: #{vit_forward.15} parent=11 // pred_check_branch
        %150 = sbr.rel (%p148) target = $region20
      $region19: #{vit_forward.15} parent=11 // pred_region
        _
      $region20: #{vit_forward.15} parent=11 // pred_fallthru
        _
    $region12: #{vit_forward.15} parent=5 // pred_fallthru
      _
    %p151 = scmp.lt.s32.totalorder %s10, 2
    // Predicated region
    $region21: #{vit_forward.15} parent=5 // pred_check
      %p152 = pneg %p151
    $region22: #{vit_forward.15} parent=5 // pred_check_branch
      %154 = sbr.rel (%p152) target = $region24
    $region23: #{vit_forward.15} parent=5 // pred_region
      // Predicated region
      $region25: #{vit_forward.15} parent=23 // pred_check
        %p155 = pneg %p30
      $region26: #{vit_forward.15} parent=23 // pred_check_branch
        %157 = sbr.rel (%p155) target = $region28
      $region27: #{vit_forward.15} parent=23 // pred_region
        %s158 = smul.u32 3, %s10
        %p159 = scmp.lt.s32.totalorder %s158, 5
        %s160 = scalar_select %p159, %s158, 5
        %s161 = smul.addr %s160, 4
        %s162 = scalar_lea.vmem %s0, %s161
        %s163 = smul.u32 3, %s10
      $region28: #{vit_forward.15} parent=23 // pred_fallthru
        _
      // Predicated region
      $region29: #{vit_forward.15} parent=23 // pred_check
        %p164 = pneg %p98
      $region30: #{vit_forward.15} parent=23 // pred_check_branch
        %166 = sbr.rel (%p164) target = $region32
      $region31: #{vit_forward.15} parent=23 // pred_region
        %s167 = smul.u32 3, %s10
        %p168 = scmp.lt.s32.totalorder %s167, 5
        %s169 = scalar_select %p168, %s167, 5
        %s170 = smul.addr %s169, 8
        %s171 = scalar_lea.vmem %s3, %s170
        %s172 = smul.u32 3, %s10
      $region32: #{vit_forward.15} parent=23 // pred_fallthru
        _
    $region24: #{vit_forward.15} parent=5 // pred_fallthru
      _
    %p173 = scmp.le.s32.totalorder 1, %s10
    %p174 = scmp.lt.s32.totalorder %s10, 3
    %p175 = pnand %p173, %p174
    %p176 = pneg %p175
    // Predicated region
    $region33: #{vit_forward.15} parent=5 // pred_check
      _
    $region34: #{vit_forward.15} parent=5 // pred_check_branch
      %178 = sbr.rel (%p175) target = $region36
    $region35: #{vit_forward.15} parent=5 // pred_region
      %s179 = ssub.s32 %s10, 1
      %s180 = smul.u32 3, %s15
      %p181 = scmp.lt.s32.totalorder %s180, 5
      %s182 = scalar_select %p181, %s180, 5
      %s183 = smul.addr %s182, 4
      %s184 = scalar_lea.vmem %s0, %s183
      %p185 = pneg %p36
      %p186 = pneg %p33
      %p187 = pneg %p57
      %p188 = pneg %p54
      %p189 = pneg %p78
      %p190 = pneg %p75
      %s191 = smul.u32 3, %s15
      %p192 = scmp.lt.s32.totalorder %s191, 5
      %s193 = scalar_select %p192, %s191, 5
      %s194 = smul.addr %s193, 8
      %s195 = scalar_lea.vmem %s3, %s194
      %p196 = pneg %p104
      %p197 = pneg %p101
      %p198 = pneg %p130
      %p199 = pneg %p127
      %s200 = smul.u32 3, %s15
      %p201 = scmp.lt.s32.totalorder %s200, 5
      %s202 = scalar_select %p201, %s200, 5
      %s203 = smul.addr %s202, 8
      %s204 = scalar_lea.vmem %s4, %s203
      %s205 = smul.u32 3, %s15
      %p206 = scmp.lt.s32.totalorder %s205, 5
      %s207 = scalar_select %p206, %s205, 5
      %s208 = smul.addr %s207, 4
      %s209 = scalar_lea.vmem %s0, %s208
      %s210 = smul.u32 3, %s15
      %s211 = smul.u32 3, %s15
      %p212 = scmp.lt.s32.totalorder %s211, 5
      %s213 = scalar_select %p212, %s211, 5
      %s214 = smul.addr %s213, 8
      %s215 = scalar_lea.vmem %s3, %s214
      %s216 = smul.u32 3, %s15
      %s217 = smul.u32 3, %s15
      %p218 = scmp.lt.s32.totalorder %s217, 5
      %s219 = scalar_select %p218, %s217, 5
      %s220 = smul.addr %s219, 8
      %s221 = scalar_lea.vmem %s4, %s220
      %s222 = smul.u32 3, %s15
      %v224 = vld [vmem:[%s209] sm:$0xf]
      %v225 = vld [vmem:[%s209 + $0x4] sm:$0xf]
      %v226 = vld [vmem:[%s209 + $0x8] sm:$0xf]
      %v227 = vld [vmem:[%s1] sm:$0xf]
      %v228 = vld [vmem:[%s1 + $0x4] sm:$0xf]
      %v229 = vld [vmem:[%s1 + $0x8] sm:$0xf]
      %v230 = vld [vmem:[%s1 + $0xc] sm:$0xf]
      %v231 = vld [vmem:[%s1 + $0x10] sm:$0xf]
      %v232 = vld [vmem:[%s1 + $0x14] sm:$0xf]
      %v233 = vld [vmem:[%s1 + $0x18] sm:$0xf]
      %v234 = vld [vmem:[%s1 + $0x1c] sm:$0xf]
      %v235 = vld [vmem:[%s1 + $0x20] sm:$0xf]
      %v236 = vld [vmem:[%s1 + $0x24] sm:$0xf]
      %v237 = vld [vmem:[%s1 + $0x28] sm:$0xf]
      %v238 = vld [vmem:[%s1 + $0x2c] sm:$0xf]
      %v239 = vld [vmem:[%s1 + $0x30] sm:$0xf]
      %v240 = vld [vmem:[%s1 + $0x34] sm:$0xf]
      %v241 = vld [vmem:[%s1 + $0x38] sm:$0xf]
      %v242 = vld [vmem:[%s1 + $0x3c] sm:$0xf]
      %v243 = vld [vmem:[%s2] sm:$0x1]
      %v245 = vlaneseq
      %v246 = vshrl.u32 %v245, 7
      %v247 = vsub.s32 0, %v246
      %v248 = vrot.slane %v243, %v247
      %v253 = vunpack.c.l.b16 %v224
      %v254 = vunpack.c.l.b16 %v225
      %v255 = vunpack.c.l.b16 %v226
      %v256 = vpack.c.b16 %v254, %v253
      %v257 = vpack.c.b16 %v255, %v255
      %v276 = vunpack.c.l.b16 %v227
      %v277 = vunpack.c.l.b16 %v228
      %v278 = vunpack.c.l.b16 %v229
      %v279 = vunpack.c.l.b16 %v230
      %v280 = vunpack.c.l.b16 %v231
      %v281 = vunpack.c.l.b16 %v232
      %v282 = vunpack.c.l.b16 %v233
      %v283 = vunpack.c.l.b16 %v234
      %v284 = vunpack.c.l.b16 %v235
      %v285 = vunpack.c.l.b16 %v236
      %v286 = vunpack.c.l.b16 %v237
      %v287 = vunpack.c.l.b16 %v238
      %v288 = vunpack.c.l.b16 %v239
      %v289 = vunpack.c.l.b16 %v240
      %v290 = vunpack.c.l.b16 %v241
      %v291 = vunpack.c.l.b16 %v242
      %v292 = vpack.c.b16 %v277, %v276
      %v293 = vpack.c.b16 %v279, %v278
      %v294 = vpack.c.b16 %v281, %v280
      %v295 = vpack.c.b16 %v283, %v282
      %v296 = vpack.c.b16 %v285, %v284
      %v297 = vpack.c.b16 %v287, %v286
      %v298 = vpack.c.b16 %v289, %v288
      %v299 = vpack.c.b16 %v291, %v290
      %308 = vmatprep.subr.bf16.mxu0 0
      %309 = vmatpush1.bf16.msra.mxu0 %v292
      %310 = vmatprep.subr.bf16.mxu0 0
      %311 = vmatpush1.bf16.msra.mxu0 %v293
      %312 = vmatprep.subr.bf16.mxu0 0
      %313 = vmatpush1.bf16.msra.mxu0 %v294
      %314 = vmatprep.subr.bf16.mxu0 0
      %315 = vmatpush1.bf16.msra.mxu0 %v295
      %316 = vmatprep.subr.bf16.mxu0 0
      %317 = vmatpush1.bf16.msra.mxu0 %v296
      %318 = vmatprep.subr.bf16.mxu0 0
      %319 = vmatpush1.bf16.msra.mxu0 %v297
      %320 = vmatprep.subr.bf16.mxu0 0
      %321 = vmatpush1.bf16.msra.mxu0 %v298
      %322 = vmatprep.subr.bf16.mxu0 0
      %323 = vmatpush1.bf16.msra.mxu0 %v299
      %324 = vmatprep.subr.bf16.mxu0 0
      %325 = vmatpush1.bf16.msra.mxu0 0
      %326 = vmatprep.subr.bf16.mxu0 0
      %327 = vmatpush1.bf16.msra.mxu0 0
      %328 = vmatprep.subr.bf16.mxu0 0
      %329 = vmatpush1.bf16.msra.mxu0 0
      %330 = vmatprep.subr.bf16.mxu0 0
      %331 = vmatpush1.bf16.msra.mxu0 0
      %332 = vmatprep.subr.bf16.mxu0 0
      %333 = vmatpush1.bf16.msra.mxu0 0
      %334 = vmatprep.subr.bf16.mxu0 0
      %335 = vmatpush1.bf16.msra.mxu0 0
      %336 = vmatprep.subr.bf16.mxu0 0
      %337 = vmatpush1.bf16.msra.mxu0 0
      %338 = vmatprep.subr.bf16.mxu0 0
      %339 = vmatpush1.bf16.msra.mxu0 0
      %340 = vmatprep.mubr.bf16.mxu0 0
      %341 = vmatmul.mubr.bf16.gmra.mrb[0].mxu0 %v256
      %v342 = vpop.f32.mrb[0].mxu0
      %v343 = vadd.f32 %v248, %v342
      %v344 = vpop.f32.mrb[0].mxu0
      %v345 = vpop.f32.mrb[0].mxu0
      %v346 = vadd.f32 %v248, %v345
      %v347 = vpop.f32.mrb[0].mxu0
      %348 = vmatprep.mubr.bf16.mxu0 0
      %349 = vmatmul.mubr.bf16.gmra.mrb[0].mxu0 %v257
      %v350 = vpop.f32.mrb[0].mxu0
      %v351 = vadd.f32 %v248, %v350
      %v352 = vpop.f32.mrb[0].mxu0
      %v353 = vpop.f32.mrb[0].mxu0
      %v354 = vpop.f32.mrb[0].mxu0
      %355 = vdwg.mxu0
      %v356 = vld [vmem:[%s215] sm:$0xff]
      %v357 = vld [vmem:[%s215 + $0x8] sm:$0xff]
      %v358 = vld [vmem:[%s215 + $0x10] sm:$0xff]
      %v359 = vadd.f32 %v343, %v356
      %v360 = vadd.f32 %v346, %v357
      %v361 = vadd.f32 %v351, %v358
      %362 = vst [vmem:[%s221] sm:$0xff] %v359
      %363 = vst [vmem:[%s221 + $0x8] sm:$0xff] %v360
      %364 = vst [vmem:[%s221 + $0x10] sm:$0xff] %v361
      %s365 = smul.u32 3, %s15
      %p366 = scmp.lt.s32.totalorder %s365, 5
      %s367 = scalar_select %p366, %s365, 5
      %s368 = smul.addr %s367, 8
      %s369 = scalar_lea.vmem %s4, %s368
      // Predicated region
      $region37: #{vit_forward.15} parent=35 // pred_check
        %p370 = pneg %p127
      $region38: #{vit_forward.15} parent=35 // pred_check_branch
        %372 = sbr.rel (%p370) target = $region40
      $region39: #{vit_forward.15} parent=35 // pred_region
        %s373 = smul.u32 3, %s15
      $region40: #{vit_forward.15} parent=35 // pred_fallthru
        _
    $region36: #{vit_forward.15} parent=5 // pred_fallthru
      _
    %p374 = scmp.le.s32.totalorder 2, %s10
    // Predicated region
    $region41: #{vit_forward.15} parent=5 // pred_check
      %p375 = pneg %p374
    $region42: #{vit_forward.15} parent=5 // pred_check_branch
      %377 = sbr.rel (%p375) target = $region44
    $region43: #{vit_forward.15} parent=5 // pred_region
      %s378 = ssub.s32 %s10, 2
      // Predicated region
      $region45: #{vit_forward.15} parent=43 // pred_check
        %p379 = pneg %p133
      $region46: #{vit_forward.15} parent=43 // pred_check_branch
        %381 = sbr.rel (%p379) target = $region48
      $region47: #{vit_forward.15} parent=43 // pred_region
        %s382 = smul.u32 3, %s16
        %p383 = scmp.lt.s32.totalorder %s382, 5
        %s384 = scalar_select %p383, %s382, 5
        %s385 = smul.addr %s384, 8
        %s386 = scalar_lea.vmem %s4, %s385
      $region48: #{vit_forward.15} parent=43 // pred_fallthru
        _
    $region44: #{vit_forward.15} parent=5 // pred_fallthru
      _
  $region6: #{vit_forward.15} parent=0 // loop_footer
    %s14 = sadd.s32 1, %s10
  $region7: #{vit_forward.15} parent=0 // loop_footer_branch
    %9 = sbr.rel target = $region3
  $region8: #{vit_forward.15} parent=0 // loop_exit
    _

// kernel: vit_forward.13
$region0: #{vit_forward.13}
  #allocation0 [shape = 'u32[]', space=smem, size = 0x4, offset = 0x4, fixed_abs, tag = 'smem constant byte address 0x4 - core index']
  #allocation1 [shape = 'u32[144,128]{1,0:T(1,128)}', space=vmem, size = 0x12000, scoped, tag = 'internal scratch']
  %s0 = inlined_call_operand.vmem [shape: f32[48,128], index: 0, kind: input, shape index: {}]
  %s1 = inlined_call_operand.vmem [shape: bf16[128,384], index: 1, kind: input, shape index: {}]
  %s2 = inlined_call_operand.vmem [shape: f32[1,384], index: 2, kind: input, shape index: {}]
  %s3 = inlined_call_operand.vmem [shape: f32[1,128], index: 3, kind: input, shape index: {}]
  %s4 = inlined_call_operand.vmem [shape: f32[1,128], index: 4, kind: input, shape index: {}]
  %s5 = inlined_call_operand.vmem [shape: bf16[48,384], index: 5, kind: output, shape index: {}]
  %s6 = sld [smem:[#allocation0]]
  $region53: #{vit_forward.13} parent=0
    _
  %s8 = ssub.s32 1, %s6
  %s9 = scalar_select 0, %s8, %s6
  loop: start=0, step=1, limit=4
  $region2: #{vit_forward.13} parent=0 // loop_pre_header
    _
  $region3: #{vit_forward.13} parent=0 // loop_header
    %s11 = sphi 0, %s15
    %p12 = scmp.ge.s32.totalorder %s11, 4
    %s21 = sphi 0, %s23
    %s24 = sphi 0, %s21
    %s25 = sphi 0, %s24
    %s41 = sphi 0, %s25
    %s45 = sphi 0, %s45
    %s47 = sphi 0, %s45
    %s48 = sphi 0, %s47
    %s62 = sphi 0, %s48
    %s66 = sphi 0, %s66
    %s68 = sphi 0, %s66
    %s69 = sphi 0, %s68
    %s83 = sphi 0, %s69
    %s87 = sphi 0, %s87
    %s89 = sphi 0, %s87
    %s90 = sphi 0, %s89
    %s104 = sphi 0, %s90
    %s108 = sphi 0, %s108
    %s110 = sphi 0, %s108
    %s111 = sphi 0, %s110
    %s125 = sphi 0, %s111
    %s131 = sphi 0, %s133
    %s134 = sphi 0, %s131
    %s135 = sphi 0, %s134
    %s151 = sphi 0, %s135
  $region4: #{vit_forward.13} parent=0 // loop_header_branch
    %14 = sbr.rel (%p12) target = $region8
  $region5: #{vit_forward.13} parent=0 // loop_body
    %s16 = ssub.s32 %s11, 1
    %s17 = ssub.s32 %s11, 2
    %s18 = sadd.s32 %s11, 1
    %s19 = ssub.s32 %s11, %s18
    %p20 = scmp.eq.s32.totalorder %s19, 0
    %s22 = sadd.s32 %s21, 1
    %s23 = scalar_select %p20, %s21, %s22
    %p26 = pneg %p20
    %p27 = scmp.eq.s32.totalorder %s11, 1
    %p28 = por %p26, %p27
    %p29 = scmp.ne.s32.totalorder %s21, %s24
    %p30 = scmp.eq.s32.totalorder %s11, 0
    %p31 = por %p29, %p30
    %p32 = scmp.ne.s32.totalorder %s21, %s24
    %p33 = scmp.eq.s32.totalorder %s16, 1
    %p34 = por %p32, %p33
    %p35 = scmp.ne.s32.totalorder %s24, %s25
    %p36 = scmp.eq.s32.totalorder %s16, 0
    %p37 = por %p35, %p36
    %p38 = scmp.ne.s32.totalorder %s24, %s25
    %p39 = scmp.eq.s32.totalorder %s17, 1
    %p40 = por %p38, %p39
    %p42 = scmp.ne.s32.totalorder %s25, %s41
    %p43 = scmp.eq.s32.totalorder %s17, 0
    %p44 = por %p42, %p43
    %s46 = sadd.s32 %s45, 1
    %p49 = scmp.eq.s32.totalorder %s11, 1
    %p50 = scmp.ne.s32.totalorder %s45, %s47
    %p51 = scmp.eq.s32.totalorder %s11, 0
    %p52 = por %p50, %p51
    %p53 = scmp.ne.s32.totalorder %s45, %s47
    %p54 = scmp.eq.s32.totalorder %s16, 1
    %p55 = por %p53, %p54
    %p56 = scmp.ne.s32.totalorder %s47, %s48
    %p57 = scmp.eq.s32.totalorder %s16, 0
    %p58 = por %p56, %p57
    %p59 = scmp.ne.s32.totalorder %s47, %s48
    %p60 = scmp.eq.s32.totalorder %s17, 1
    %p61 = por %p59, %p60
    %p63 = scmp.ne.s32.totalorder %s48, %s62
    %p64 = scmp.eq.s32.totalorder %s17, 0
    %p65 = por %p63, %p64
    %s67 = sadd.s32 %s66, 1
    %p70 = scmp.eq.s32.totalorder %s11, 1
    %p71 = scmp.ne.s32.totalorder %s66, %s68
    %p72 = scmp.eq.s32.totalorder %s11, 0
    %p73 = por %p71, %p72
    %p74 = scmp.ne.s32.totalorder %s66, %s68
    %p75 = scmp.eq.s32.totalorder %s16, 1
    %p76 = por %p74, %p75
    %p77 = scmp.ne.s32.totalorder %s68, %s69
    %p78 = scmp.eq.s32.totalorder %s16, 0
    %p79 = por %p77, %p78
    %p80 = scmp.ne.s32.totalorder %s68, %s69
    %p81 = scmp.eq.s32.totalorder %s17, 1
    %p82 = por %p80, %p81
    %p84 = scmp.ne.s32.totalorder %s69, %s83
    %p85 = scmp.eq.s32.totalorder %s17, 0
    %p86 = por %p84, %p85
    %s88 = sadd.s32 %s87, 1
    %p91 = scmp.eq.s32.totalorder %s11, 1
    %p92 = scmp.ne.s32.totalorder %s87, %s89
    %p93 = scmp.eq.s32.totalorder %s11, 0
    %p94 = por %p92, %p93
    %p95 = scmp.ne.s32.totalorder %s87, %s89
    %p96 = scmp.eq.s32.totalorder %s16, 1
    %p97 = por %p95, %p96
    %p98 = scmp.ne.s32.totalorder %s89, %s90
    %p99 = scmp.eq.s32.totalorder %s16, 0
    %p100 = por %p98, %p99
    %p101 = scmp.ne.s32.totalorder %s89, %s90
    %p102 = scmp.eq.s32.totalorder %s17, 1
    %p103 = por %p101, %p102
    %p105 = scmp.ne.s32.totalorder %s90, %s104
    %p106 = scmp.eq.s32.totalorder %s17, 0
    %p107 = por %p105, %p106
    %s109 = sadd.s32 %s108, 1
    %p112 = scmp.eq.s32.totalorder %s11, 1
    %p113 = scmp.ne.s32.totalorder %s108, %s110
    %p114 = scmp.eq.s32.totalorder %s11, 0
    %p115 = por %p113, %p114
    %p116 = scmp.ne.s32.totalorder %s108, %s110
    %p117 = scmp.eq.s32.totalorder %s16, 1
    %p118 = por %p116, %p117
    %p119 = scmp.ne.s32.totalorder %s110, %s111
    %p120 = scmp.eq.s32.totalorder %s16, 0
    %p121 = por %p119, %p120
    %p122 = scmp.ne.s32.totalorder %s110, %s111
    %p123 = scmp.eq.s32.totalorder %s17, 1
    %p124 = por %p122, %p123
    %p126 = scmp.ne.s32.totalorder %s111, %s125
    %p127 = scmp.eq.s32.totalorder %s17, 0
    %p128 = por %p126, %p127
    %s129 = ssub.s32 %s11, %s18
    %p130 = scmp.eq.s32.totalorder %s129, 0
    %s132 = sadd.s32 %s131, 1
    %s133 = scalar_select %p130, %s131, %s132
    %p136 = pneg %p130
    %p137 = scmp.eq.s32.totalorder %s11, 1
    %p138 = por %p136, %p137
    %p139 = scmp.ne.s32.totalorder %s131, %s134
    %p140 = scmp.eq.s32.totalorder %s11, 0
    %p141 = por %p139, %p140
    %p142 = scmp.ne.s32.totalorder %s131, %s134
    %p143 = scmp.eq.s32.totalorder %s16, 1
    %p144 = por %p142, %p143
    %p145 = scmp.ne.s32.totalorder %s134, %s135
    %p146 = scmp.eq.s32.totalorder %s16, 0
    %p147 = por %p145, %p146
    %p148 = scmp.ne.s32.totalorder %s134, %s135
    %p149 = scmp.eq.s32.totalorder %s17, 1
    %p150 = por %p148, %p149
    %p152 = scmp.ne.s32.totalorder %s135, %s151
    %p153 = scmp.eq.s32.totalorder %s17, 0
    %p154 = por %p152, %p153
    %p155 = scmp.le.s32.totalorder 1, %s11
    %p156 = scmp.lt.s32.totalorder %s11, 3
    %p157 = pnand %p155, %p156
    %p158 = pneg %p157
    // Predicated region
    $region9: #{vit_forward.13} parent=5 // pred_check
      _
    $region10: #{vit_forward.13} parent=5 // pred_check_branch
      %160 = sbr.rel (%p157) target = $region12
    $region11: #{vit_forward.13} parent=5 // pred_region
      %s161 = ssub.s32 %s11, 1
      // Predicated region
      $region13: #{vit_forward.13} parent=11 // pred_check
        %p162 = pneg %p58
      $region14: #{vit_forward.13} parent=11 // pred_check_branch
        %164 = sbr.rel (%p162) target = $region16
      $region15: #{vit_forward.13} parent=11 // pred_region
        _
      $region16: #{vit_forward.13} parent=11 // pred_fallthru
        _
      // Predicated region
      $region17: #{vit_forward.13} parent=11 // pred_check
        %p165 = pneg %p79
      $region18: #{vit_forward.13} parent=11 // pred_check_branch
        %167 = sbr.rel (%p165) target = $region20
      $region19: #{vit_forward.13} parent=11 // pred_region
        _
      $region20: #{vit_forward.13} parent=11 // pred_fallthru
        _
      // Predicated region
      $region21: #{vit_forward.13} parent=11 // pred_check
        %p168 = pneg %p100
      $region22: #{vit_forward.13} parent=11 // pred_check_branch
        %170 = sbr.rel (%p168) target = $region24
      $region23: #{vit_forward.13} parent=11 // pred_region
        _
      $region24: #{vit_forward.13} parent=11 // pred_fallthru
        _
      // Predicated region
      $region25: #{vit_forward.13} parent=11 // pred_check
        %p171 = pneg %p121
      $region26: #{vit_forward.13} parent=11 // pred_check_branch
        %173 = sbr.rel (%p171) target = $region28
      $region27: #{vit_forward.13} parent=11 // pred_region
        _
      $region28: #{vit_forward.13} parent=11 // pred_fallthru
        _
    $region12: #{vit_forward.13} parent=5 // pred_fallthru
      _
    %p174 = scmp.lt.s32.totalorder %s11, 2
    // Predicated region
    $region29: #{vit_forward.13} parent=5 // pred_check
      %p175 = pneg %p174
    $region30: #{vit_forward.13} parent=5 // pred_check_branch
      %177 = sbr.rel (%p175) target = $region32
    $region31: #{vit_forward.13} parent=5 // pred_region
      // Predicated region
      $region33: #{vit_forward.13} parent=31 // pred_check
        %p178 = pneg %p31
      $region34: #{vit_forward.13} parent=31 // pred_check_branch
        %180 = sbr.rel (%p178) target = $region36
      $region35: #{vit_forward.13} parent=31 // pred_region
        %s181 = smul.u32 3, %s11
        %p182 = scmp.lt.s32.totalorder %s181, 5
        %s183 = scalar_select %p182, %s181, 5
        %s184 = smul.addr %s183, 8
        %s185 = scalar_lea.vmem %s0, %s184
        %s186 = smul.u32 3, %s11
      $region36: #{vit_forward.13} parent=31 // pred_fallthru
        _
    $region32: #{vit_forward.13} parent=5 // pred_fallthru
      _
    %p187 = scmp.le.s32.totalorder 1, %s11
    %p188 = scmp.lt.s32.totalorder %s11, 3
    %p189 = pnand %p187, %p188
    %p190 = pneg %p189
    // Predicated region
    $region37: #{vit_forward.13} parent=5 // pred_check
      _
    $region38: #{vit_forward.13} parent=5 // pred_check_branch
      %192 = sbr.rel (%p189) target = $region40
    $region39: #{vit_forward.13} parent=5 // pred_region
      %s193 = ssub.s32 %s11, 1
      %s194 = smul.u32 3, %s16
      %p195 = scmp.lt.s32.totalorder %s194, 5
      %s196 = scalar_select %p195, %s194, 5
      %s197 = smul.addr %s196, 8
      %s198 = scalar_lea.vmem %s0, %s197
      %p199 = pneg %p37
      %p200 = pneg %p34
      %p201 = pneg %p58
      %p202 = pneg %p55
      %p203 = pneg %p79
      %p204 = pneg %p76
      %p205 = pneg %p100
      %p206 = pneg %p97
      %p207 = pneg %p121
      %p208 = pneg %p118
      %p209 = pneg %p147
      %p210 = pneg %p144
      %s211 = smul.u32 3, %s16
      %p212 = scmp.lt.s32.totalorder %s211, 5
      %s213 = scalar_select %p212, %s211, 5
      %s214 = smul.addr %s213, 3
      %s215 = smul.addr %s214, 4
      %s216 = scalar_lea.vmem %s5, %s215
      %s217 = smul.u32 3, %s16
      %p218 = scmp.lt.s32.totalorder %s217, 5
      %s219 = scalar_select %p218, %s217, 5
      %s220 = smul.addr %s219, 8
      %s221 = scalar_lea.vmem %s0, %s220
      %s222 = smul.u32 3, %s16
      %s223 = smul.u32 3, %s16
      %p224 = scmp.lt.s32.totalorder %s223, 5
      %s225 = scalar_select %p224, %s223, 5
      %s226 = smul.addr %s225, 3
      %s227 = smul.addr %s226, 4
      %s228 = scalar_lea.vmem %s5, %s227
      %s229 = smul.u32 3, %s16
      %v231 = vld [vmem:[%s221] sm:$0xff]
      %v232 = vld [vmem:[%s221 + $0x8] sm:$0xff]
      %v233 = vld [vmem:[%s221 + $0x10] sm:$0xff]
      %234 = vadd.xlane.f32.xlu0 %v231
      %v235 = vpop.xlane.xlu0 %234
      %236 = vadd.xlane.f32.xlu0 %v232
      %v237 = vpop.xlane.xlu0 %236
      %238 = vadd.xlane.f32.xlu0 %v233
      %v239 = vpop.xlane.xlu0 %238
      %v240 = vrcp.pop 128.0
      %v241 = vmul.f32 %v235, %v240
      %v242 = vmul.f32 %v237, %v240
      %v243 = vmul.f32 %v239, %v240
      %v244 = vsub.f32 %v231, %v241
      %v245 = vsub.f32 %v232, %v242
      %v246 = vsub.f32 %v233, %v243
      %v247 = vmul.f32 %v244, %v244
      %v248 = vmul.f32 %v245, %v245
      %v249 = vmul.f32 %v246, %v246
      %250 = vadd.xlane.f32.xlu0 %v247
      %v251 = vpop.xlane.xlu0 %250
      %252 = vadd.xlane.f32.xlu0 %v248
      %v253 = vpop.xlane.xlu0 %252
      %254 = vadd.xlane.f32.xlu0 %v249
      %v255 = vpop.xlane.xlu0 %254
      %v256 = vmul.f32 %v251, %v240
      %v257 = vmul.f32 %v253, %v240
      %v258 = vmul.f32 %v255, %v240
      %v259 = vadd.f32 %v256, 1e-05
      %v260 = vadd.f32 %v257, 1e-05
      %v261 = vadd.f32 %v258, 1e-05
      %v262 = vrsqrt.pop %v259
      %v263 = vrsqrt.pop %v260
      %v264 = vrsqrt.pop %v261
      %v265 = vmul.f32 %v244, %v262
      %v266 = vmul.f32 %v245, %v263
      %v267 = vmul.f32 %v246, %v264
      %v268 = vld [vmem:[%s3] sm:$0x1]
      %v270 = vlaneseq
      %v271 = vshrl.u32 %v270, 7
      %v272 = vsub.s32 0, %v271
      %v273 = vrot.slane %v268, %v272
      %v275 = vmul.f32 %v265, %v273
      %v276 = vmul.f32 %v266, %v273
      %v277 = vmul.f32 %v267, %v273
      %v278 = vld [vmem:[%s4] sm:$0x1]
      %v280 = vlaneseq
      %v281 = vshrl.u32 %v280, 7
      %v282 = vsub.s32 0, %v281
      %v283 = vrot.slane %v278, %v282
      %v285 = vadd.f32 %v275, %v283
      %v286 = vadd.f32 %v276, %v283
      %v287 = vadd.f32 %v277, %v283
      %v288 = vpack.c.bf16 %v286, %v285
      %v289 = vpack.c.bf16 %v287, %v287
      %v290 = vld [vmem:[%s1] sm:$0xff]
      %v291 = vld [vmem:[%s1 + $0x8] sm:$0xf]
      %v292 = vld [vmem:[%s1 + $0xc] sm:$0xff]
      %v293 = vld [vmem:[%s1 + $0x14] sm:$0xf]
      %v294 = vld [vmem:[%s1 + $0x18] sm:$0xff]
      %v295 = vld [vmem:[%s1 + $0x20] sm:$0xf]
      %v296 = vld [vmem:[%s1 + $0x24] sm:$0xff]
      %v297 = vld [vmem:[%s1 + $0x2c] sm:$0xf]
      %v298 = vld [vmem:[%s1 + $0x30] sm:$0xff]
      %v299 = vld [vmem:[%s1 + $0x38] sm:$0xf]
      %v300 = vld [vmem:[%s1 + $0x3c] sm:$0xff]
      %v301 = vld [vmem:[%s1 + $0x44] sm:$0xf]
      %v302 = vld [vmem:[%s1 + $0x48] sm:$0xff]
      %v303 = vld [vmem:[%s1 + $0x50] sm:$0xf]
      %v304 = vld [vmem:[%s1 + $0x54] sm:$0xff]
      %v305 = vld [vmem:[%s1 + $0x5c] sm:$0xf]
      %v306 = vld [vmem:[%s1 + $0x60] sm:$0xff]
      %v307 = vld [vmem:[%s1 + $0x68] sm:$0xf]
      %v308 = vld [vmem:[%s1 + $0x6c] sm:$0xff]
      %v309 = vld [vmem:[%s1 + $0x74] sm:$0xf]
      %v310 = vld [vmem:[%s1 + $0x78] sm:$0xff]
      %v311 = vld [vmem:[%s1 + $0x80] sm:$0xf]
      %v312 = vld [vmem:[%s1 + $0x84] sm:$0xff]
      %v313 = vld [vmem:[%s1 + $0x8c] sm:$0xf]
      %v314 = vld [vmem:[%s1 + $0x90] sm:$0xff]
      %v315 = vld [vmem:[%s1 + $0x98] sm:$0xf]
      %v316 = vld [vmem:[%s1 + $0x9c] sm:$0xff]
      %v317 = vld [vmem:[%s1 + $0xa4] sm:$0xf]
      %v318 = vld [vmem:[%s1 + $0xa8] sm:$0xff]
      %v319 = vld [vmem:[%s1 + $0xb0] sm:$0xf]
      %v320 = vld [vmem:[%s1 + $0xb4] sm:$0xff]
      %v321 = vld [vmem:[%s1 + $0xbc] sm:$0xf]
      %v322 = vld [vmem:[%s2] sm:$0x7]
      %v324 = vlaneseq
      %v325 = vshrl.u32 %v324, 7
      %v326 = vsub.s32 0, %v325
      %v327 = vrot.slane %v322, %v326
      %v328 = vlaneseq
      %v329 = vshrl.u32 %v328, 7
      %v330 = vsub.s32 1, %v329
      %v331 = vrot.slane %v322, %v330
      %v332 = vlaneseq
      %v333 = vshrl.u32 %v332, 7
      %v334 = vsub.s32 2, %v333
      %v335 = vrot.slane %v322, %v334
      %v371 = vunpack.c.l.b16 %v290
      %v372 = vunpack.c.h.b16 %v290
      %v373 = vunpack.c.l.b16 %v291
      %v374 = vunpack.c.l.b16 %v292
      %v375 = vunpack.c.h.b16 %v292
      %v376 = vunpack.c.l.b16 %v293
      %v377 = vunpack.c.l.b16 %v294
      %v378 = vunpack.c.h.b16 %v294
      %v379 = vunpack.c.l.b16 %v295
      %v380 = vunpack.c.l.b16 %v296
      %v381 = vunpack.c.h.b16 %v296
      %v382 = vunpack.c.l.b16 %v297
      %v383 = vunpack.c.l.b16 %v298
      %v384 = vunpack.c.h.b16 %v298
      %v385 = vunpack.c.l.b16 %v299
      %v386 = vunpack.c.l.b16 %v300
      %v387 = vunpack.c.h.b16 %v300
      %v388 = vunpack.c.l.b16 %v301
      %v389 = vunpack.c.l.b16 %v302
      %v390 = vunpack.c.h.b16 %v302
      %v391 = vunpack.c.l.b16 %v303
      %v392 = vunpack.c.l.b16 %v304
      %v393 = vunpack.c.h.b16 %v304
      %v394 = vunpack.c.l.b16 %v305
      %v395 = vunpack.c.l.b16 %v306
      %v396 = vunpack.c.h.b16 %v306
      %v397 = vunpack.c.l.b16 %v307
      %v398 = vunpack.c.l.b16 %v308
      %v399 = vunpack.c.h.b16 %v308
      %v400 = vunpack.c.l.b16 %v309
      %v401 = vunpack.c.l.b16 %v310
      %v402 = vunpack.c.h.b16 %v310
      %v403 = vunpack.c.l.b16 %v311
      %v404 = vunpack.c.l.b16 %v312
      %v405 = vunpack.c.h.b16 %v312
      %v406 = vunpack.c.l.b16 %v313
      %v407 = vunpack.c.l.b16 %v314
      %v408 = vunpack.c.h.b16 %v314
      %v409 = vunpack.c.l.b16 %v315
      %v410 = vunpack.c.l.b16 %v316
      %v411 = vunpack.c.h.b16 %v316
      %v412 = vunpack.c.l.b16 %v317
      %v413 = vunpack.c.l.b16 %v318
      %v414 = vunpack.c.h.b16 %v318
      %v415 = vunpack.c.l.b16 %v319
      %v416 = vunpack.c.l.b16 %v320
      %v417 = vunpack.c.h.b16 %v320
      %v418 = vunpack.c.l.b16 %v321
      %v419 = vpack.c.b16 %v374, %v371
      %v420 = vpack.c.b16 %v375, %v372
      %v421 = vpack.c.b16 %v376, %v373
      %v422 = vpack.c.b16 %v380, %v377
      %v423 = vpack.c.b16 %v381, %v378
      %v424 = vpack.c.b16 %v382, %v379
      %v425 = vpack.c.b16 %v386, %v383
      %v426 = vpack.c.b16 %v387, %v384
      %v427 = vpack.c.b16 %v388, %v385
      %v428 = vpack.c.b16 %v392, %v389
      %v429 = vpack.c.b16 %v393, %v390
      %v430 = vpack.c.b16 %v394, %v391
      %v431 = vpack.c.b16 %v398, %v395
      %v432 = vpack.c.b16 %v399, %v396
      %v433 = vpack.c.b16 %v400, %v397
      %v434 = vpack.c.b16 %v404, %v401
      %v435 = vpack.c.b16 %v405, %v402
      %v436 = vpack.c.b16 %v406, %v403
      %v437 = vpack.c.b16 %v410, %v407
      %v438 = vpack.c.b16 %v411, %v408
      %v439 = vpack.c.b16 %v412, %v409
      %v440 = vpack.c.b16 %v416, %v413
      %v441 = vpack.c.b16 %v417, %v414
      %v442 = vpack.c.b16 %v418, %v415
      %467 = vmatprep.subr.bf16.mxu0 %v420
      %468 = vmatpush1.bf16.msra.mxu0 %v419
      %469 = vmatprep.subr.bf16.mxu0 %v423
      %470 = vmatpush1.bf16.msra.mxu0 %v422
      %471 = vmatprep.subr.bf16.mxu0 %v426
      %472 = vmatpush1.bf16.msra.mxu0 %v425
      %473 = vmatprep.subr.bf16.mxu0 %v429
      %474 = vmatpush1.bf16.msra.mxu0 %v428
      %475 = vmatprep.subr.bf16.mxu0 %v432
      %476 = vmatpush1.bf16.msra.mxu0 %v431
      %477 = vmatprep.subr.bf16.mxu0 %v435
      %478 = vmatpush1.bf16.msra.mxu0 %v434
      %479 = vmatprep.subr.bf16.mxu0 %v438
      %480 = vmatpush1.bf16.msra.mxu0 %v437
      %481 = vmatprep.subr.bf16.mxu0 %v441
      %482 = vmatpush1.bf16.msra.mxu0 %v440
      %483 = vmatprep.subr.bf16.mxu0 0
      %484 = vmatpush1.bf16.msra.mxu0 0
      %485 = vmatprep.subr.bf16.mxu0 0
      %486 = vmatpush1.bf16.msra.mxu0 0
      %487 = vmatprep.subr.bf16.mxu0 0
      %488 = vmatpush1.bf16.msra.mxu0 0
      %489 = vmatprep.subr.bf16.mxu0 0
      %490 = vmatpush1.bf16.msra.mxu0 0
      %491 = vmatprep.subr.bf16.mxu0 0
      %492 = vmatpush1.bf16.msra.mxu0 0
      %493 = vmatprep.subr.bf16.mxu0 0
      %494 = vmatpush1.bf16.msra.mxu0 0
      %495 = vmatprep.subr.bf16.mxu0 0
      %496 = vmatpush1.bf16.msra.mxu0 0
      %497 = vmatprep.subr.bf16.mxu0 0
      %498 = vmatpush1.bf16.msra.mxu0 0
      %499 = vmatprep.mubr.bf16.mxu0 0
      %500 = vmatmul.mubr.bf16.gmra.mrb[0].mxu0 %v288
      %v501 = vpop.f32.mrb[0].mxu0
      %v502 = vadd.f32 %v327, %v501
      %v503 = vpop.f32.mrb[0].mxu0
      %v504 = vadd.f32 %v331, %v503
      %v505 = vpop.f32.mrb[0].mxu0
      %v506 = vadd.f32 %v327, %v505
      %v507 = vpop.f32.mrb[0].mxu0
      %v508 = vadd.f32 %v331, %v507
      %509 = vmatprep.mubr.bf16.mxu0 0
      %510 = vmatmul.mubr.bf16.gmra.mrb[0].mxu0 %v289
      %v511 = vpop.f32.mrb[0].mxu0
      %v512 = vadd.f32 %v327, %v511
      %v513 = vpop.f32.mrb[0].mxu0
      %v514 = vadd.f32 %v331, %v513
      %v515 = vpop.f32.mrb[0].mxu0
      %v516 = vpop.f32.mrb[0].mxu0
      %517 = vdwg.mxu0
      %518 = vmatprep.subr.bf16.mxu0 0
      %519 = vmatpush1.bf16.msra.mxu0 %v421
      %520 = vmatprep.subr.bf16.mxu0 0
      %521 = vmatpush1.bf16.msra.mxu0 %v424
      %522 = vmatprep.subr.bf16.mxu0 0
      %523 = vmatpush1.bf16.msra.mxu0 %v427
      %524 = vmatprep.subr.bf16.mxu0 0
      %525 = vmatpush1.bf16.msra.mxu0 %v430
      %526 = vmatprep.subr.bf16.mxu0 0
      %527 = vmatpush1.bf16.msra.mxu0 %v433
      %528 = vmatprep.subr.bf16.mxu0 0
      %529 = vmatpush1.bf16.msra.mxu0 %v436
      %530 = vmatprep.subr.bf16.mxu0 0
      %531 = vmatpush1.bf16.msra.mxu0 %v439
      %532 = vmatprep.subr.bf16.mxu0 0
      %533 = vmatpush1.bf16.msra.mxu0 %v442
      %534 = vmatprep.subr.bf16.mxu0 0
      %535 = vmatpush1.bf16.msra.mxu0 0
      %536 = vmatprep.subr.bf16.mxu0 0
      %537 = vmatpush1.bf16.msra.mxu0 0
      %538 = vmatprep.subr.bf16.mxu0 0
      %539 = vmatpush1.bf16.msra.mxu0 0
      %540 = vmatprep.subr.bf16.mxu0 0
      %541 = vmatpush1.bf16.msra.mxu0 0
      %542 = vmatprep.subr.bf16.mxu0 0
      %543 = vmatpush1.bf16.msra.mxu0 0
      %544 = vmatprep.subr.bf16.mxu0 0
      %545 = vmatpush1.bf16.msra.mxu0 0
      %546 = vmatprep.subr.bf16.mxu0 0
      %547 = vmatpush1.bf16.msra.mxu0 0
      %548 = vmatprep.subr.bf16.mxu0 0
      %549 = vmatpush1.bf16.msra.mxu0 0
      %550 = vmatprep.mubr.bf16.mxu0 0
      %551 = vmatmul.mubr.bf16.gmra.mrb[0].mxu0 %v288
      %v552 = vpop.f32.mrb[0].mxu0
      %v553 = vadd.f32 %v335, %v552
      %v554 = vpop.f32.mrb[0].mxu0
      %v555 = vpop.f32.mrb[0].mxu0
      %v556 = vadd.f32 %v335, %v555
      %v557 = vpop.f32.mrb[0].mxu0
      %558 = vmatprep.mubr.bf16.mxu0 0
      %559 = vmatmul.mubr.bf16.gmra.mrb[0].mxu0 %v289
      %v560 = vpop.f32.mrb[0].mxu0
      %v561 = vadd.f32 %v335, %v560
      %v562 = vpop.f32.mrb[0].mxu0
      %v563 = vpop.f32.mrb[0].mxu0
      %v564 = vpop.f32.mrb[0].mxu0
      %565 = vdwg.mxu0
      %v566 = vpack.c.bf16 %v506, %v502
      %v567 = vpack.c.bf16 %v508, %v504
      %v568 = vpack.c.bf16 %v556, %v553
      %v569 = vpack.c.bf16 %v512, %v512
      %v570 = vpack.c.bf16 %v514, %v514
      %v571 = vpack.c.bf16 %v561, %v561
      %v578 = vunpack.c.l.b16 %v566
      %v579 = vunpack.c.l.b16 %v567
      %v580 = vunpack.c.l.b16 %v568
      %v581 = vunpack.c.h.b16 %v566
      %v582 = vunpack.c.h.b16 %v567
      %v583 = vunpack.c.h.b16 %v568
      %v584 = vunpack.c.l.b16 %v569
      %v585 = vunpack.c.l.b16 %v570
      %v586 = vunpack.c.l.b16 %v571
      %v587 = vpack.c.b16 %v579, %v578
      %v588 = vpack.c.b16 %v580, %v580
      %v589 = vpack.c.b16 %v582, %v581
      %v590 = vpack.c.b16 %v583, %v583
      %v591 = vpack.c.b16 %v585, %v584
      %v592 = vpack.c.b16 %v586, %v586
      %599 = vst [vmem:[%s228] sm:$0xff] %v587
      %600 = vst [vmem:[%s228 + $0x8] sm:$0xf] %v588
      %601 = vst [vmem:[%s228 + $0xc] sm:$0xff] %v589
      %602 = vst [vmem:[%s228 + $0x14] sm:$0xf] %v590
      %603 = vst [vmem:[%s228 + $0x18] sm:$0xff] %v591
      %604 = vst [vmem:[%s228 + $0x20] sm:$0xf] %v592
      %s605 = smul.u32 3, %s16
      %p606 = scmp.lt.s32.totalorder %s605, 5
      %s607 = scalar_select %p606, %s605, 5
      %s608 = smul.addr %s607, 3
      %s609 = smul.addr %s608, 4
      %s610 = scalar_lea.vmem %s5, %s609
      // Predicated region
      $region41: #{vit_forward.13} parent=39 // pred_check
        %p611 = pneg %p144
      $region42: #{vit_forward.13} parent=39 // pred_check_branch
        %613 = sbr.rel (%p611) target = $region44
      $region43: #{vit_forward.13} parent=39 // pred_region
        %s614 = smul.u32 3, %s16
      $region44: #{vit_forward.13} parent=39 // pred_fallthru
        _
    $region40: #{vit_forward.13} parent=5 // pred_fallthru
      _
    %p615 = scmp.le.s32.totalorder 2, %s11
    // Predicated region
    $region45: #{vit_forward.13} parent=5 // pred_check
      %p616 = pneg %p615
    $region46: #{vit_forward.13} parent=5 // pred_check_branch
      %618 = sbr.rel (%p616) target = $region48
    $region47: #{vit_forward.13} parent=5 // pred_region
      %s619 = ssub.s32 %s11, 2
      // Predicated region
      $region49: #{vit_forward.13} parent=47 // pred_check
        %p620 = pneg %p150
      $region50: #{vit_forward.13} parent=47 // pred_check_branch
        %622 = sbr.rel (%p620) target = $region52
      $region51: #{vit_forward.13} parent=47 // pred_region
        %s623 = smul.u32 3, %s17
        %p624 = scmp.lt.s32.totalorder %s623, 5
        %s625 = scalar_select %p624, %s623, 5
        %s626 = smul.addr %s625, 3
        %s627 = smul.addr %s626, 4
        %s628 = scalar_lea.vmem %s5, %s627
      $region52: #{vit_forward.13} parent=47 // pred_fallthru
        _
    $region48: #{vit_forward.13} parent=5 // pred_fallthru
      _
  $region6: #{vit_forward.13} parent=0 // loop_footer
    %s15 = sadd.s32 1, %s11
  $region7: #{vit_forward.13} parent=0 // loop_footer_branch
    %10 = sbr.rel target = $region3
  $region8: #{vit_forward.13} parent=0 // loop_exit
    _

// kernel: vit_forward.14
$region0: #{vit_forward.14}
  #allocation0 [shape = 'u32[]', space=smem, size = 0x4, offset = 0x4, fixed_abs, tag = 'smem constant byte address 0x4 - core index']
  #allocation1 [shape = 'u32[144,128]{1,0:T(1,128)}', space=vmem, size = 0x12000, scoped, tag = 'internal scratch']
  %s0 = inlined_call_operand.vmem [shape: bf16[2,24,384], index: 0, kind: input, shape index: {}]
  %s1 = inlined_call_operand.vmem [shape: bf16[2,24,128], index: 1, kind: output, shape index: {}]
  %s2 = sld [smem:[#allocation0]]
  $region37: #{vit_forward.14} parent=0
    _
  %s4 = ssub.s32 1, %s2
  %s5 = scalar_select 0, %s4, %s2
  loop: start=0, step=1, limit=4
  $region2: #{vit_forward.14} parent=0 // loop_pre_header
    _
  $region3: #{vit_forward.14} parent=0 // loop_header
    %s7 = sphi 0, %s11
    %p8 = scmp.ge.s32.totalorder %s7, 4
    %s17 = sphi 0, %s19
    %s20 = sphi 0, %s17
    %s21 = sphi 0, %s20
    %s37 = sphi 0, %s21
    %s43 = sphi 0, %s45
    %s46 = sphi 0, %s43
    %s47 = sphi 0, %s46
    %s63 = sphi 0, %s47
  $region4: #{vit_forward.14} parent=0 // loop_header_branch
    %10 = sbr.rel (%p8) target = $region8
  $region5: #{vit_forward.14} parent=0 // loop_body
    %s12 = ssub.s32 %s7, 1
    %s13 = ssub.s32 %s7, 2
    %s14 = sadd.s32 %s7, 1
    %s15 = ssub.s32 %s7, %s14
    %p16 = scmp.eq.s32.totalorder %s15, 0
    %s18 = sadd.s32 %s17, 1
    %s19 = scalar_select %p16, %s17, %s18
    %p22 = pneg %p16
    %p23 = scmp.eq.s32.totalorder %s7, 1
    %p24 = por %p22, %p23
    %p25 = scmp.ne.s32.totalorder %s17, %s20
    %p26 = scmp.eq.s32.totalorder %s7, 0
    %p27 = por %p25, %p26
    %p28 = scmp.ne.s32.totalorder %s17, %s20
    %p29 = scmp.eq.s32.totalorder %s12, 1
    %p30 = por %p28, %p29
    %p31 = scmp.ne.s32.totalorder %s20, %s21
    %p32 = scmp.eq.s32.totalorder %s12, 0
    %p33 = por %p31, %p32
    %p34 = scmp.ne.s32.totalorder %s20, %s21
    %p35 = scmp.eq.s32.totalorder %s13, 1
    %p36 = por %p34, %p35
    %p38 = scmp.ne.s32.totalorder %s21, %s37
    %p39 = scmp.eq.s32.totalorder %s13, 0
    %p40 = por %p38, %p39
    %s41 = ssub.s32 %s7, %s14
    %p42 = scmp.eq.s32.totalorder %s41, 0
    %s44 = sadd.s32 %s43, 1
    %s45 = scalar_select %p42, %s43, %s44
    %p48 = pneg %p42
    %p49 = scmp.eq.s32.totalorder %s7, 1
    %p50 = por %p48, %p49
    %p51 = scmp.ne.s32.totalorder %s43, %s46
    %p52 = scmp.eq.s32.totalorder %s7, 0
    %p53 = por %p51, %p52
    %p54 = scmp.ne.s32.totalorder %s43, %s46
    %p55 = scmp.eq.s32.totalorder %s12, 1
    %p56 = por %p54, %p55
    %p57 = scmp.ne.s32.totalorder %s46, %s47
    %p58 = scmp.eq.s32.totalorder %s12, 0
    %p59 = por %p57, %p58
    %p60 = scmp.ne.s32.totalorder %s46, %s47
    %p61 = scmp.eq.s32.totalorder %s13, 1
    %p62 = por %p60, %p61
    %p64 = scmp.ne.s32.totalorder %s47, %s63
    %p65 = scmp.eq.s32.totalorder %s13, 0
    %p66 = por %p64, %p65
    %p67 = scmp.le.s32.totalorder 1, %s7
    %p68 = scmp.lt.s32.totalorder %s7, 3
    %p69 = pnand %p67, %p68
    %p70 = pneg %p69
    // Predicated region
    $region9: #{vit_forward.14} parent=5 // pred_check
      _
    $region10: #{vit_forward.14} parent=5 // pred_check_branch
      %72 = sbr.rel (%p69) target = $region12
    $region11: #{vit_forward.14} parent=5 // pred_region
      %s73 = ssub.s32 %s7, 1
    $region12: #{vit_forward.14} parent=5 // pred_fallthru
      _
    %p74 = scmp.lt.s32.totalorder %s7, 2
    // Predicated region
    $region13: #{vit_forward.14} parent=5 // pred_check
      %p75 = pneg %p74
    $region14: #{vit_forward.14} parent=5 // pred_check_branch
      %77 = sbr.rel (%p75) target = $region16
    $region15: #{vit_forward.14} parent=5 // pred_region
      // Predicated region
      $region17: #{vit_forward.14} parent=15 // pred_check
        %p78 = pneg %p27
      $region18: #{vit_forward.14} parent=15 // pred_check_branch
        %80 = sbr.rel (%p78) target = $region20
      $region19: #{vit_forward.14} parent=15 // pred_region
        %p81 = scmp.lt.s32.totalorder %s7, 1
        %s82 = scalar_select %p81, %s7, 1
        %s83 = smul.addr %s82, 9
        %s84 = smul.addr %s83, 4
        %s85 = scalar_lea.vmem %s0, %s84
      $region20: #{vit_forward.14} parent=15 // pred_fallthru
        _
    $region16: #{vit_forward.14} parent=5 // pred_fallthru
      _
    %p86 = scmp.le.s32.totalorder 1, %s7
    %p87 = scmp.lt.s32.totalorder %s7, 3
    %p88 = pnand %p86, %p87
    %p89 = pneg %p88
    // Predicated region
    $region21: #{vit_forward.14} parent=5 // pred_check
      _
    $region22: #{vit_forward.14} parent=5 // pred_check_branch
      %91 = sbr.rel (%p88) target = $region24
    $region23: #{vit_forward.14} parent=5 // pred_region
      %s92 = ssub.s32 %s7, 1
      %p93 = scmp.lt.s32.totalorder %s12, 1
      %s94 = scalar_select %p93, %s12, 1
      %s95 = smul.addr %s94, 9
      %s96 = smul.addr %s95, 4
      %s97 = scalar_lea.vmem %s0, %s96
      %p98 = pneg %p33
      %p99 = pneg %p30
      %p100 = pneg %p59
      %p101 = pneg %p56
      %p102 = scmp.lt.s32.totalorder %s12, 1
      %s103 = scalar_select %p102, %s12, 1
      %s104 = smul.addr %s103, 3
      %s105 = smul.addr %s104, 4
      %s106 = scalar_lea.vmem %s1, %s105
      %p107 = scmp.lt.s32.totalorder %s12, 1
      %s108 = scalar_select %p107, %s12, 1
      %s109 = smul.addr %s108, 9
      %s110 = smul.addr %s109, 4
      %s111 = scalar_lea.vmem %s0, %s110
      %p112 = scmp.lt.s32.totalorder %s12, 1
      %s113 = scalar_select %p112, %s12, 1
      %s114 = smul.addr %s113, 3
      %s115 = smul.addr %s114, 4
      %s116 = scalar_lea.vmem %s1, %s115
      %v118 = vlaneseq
      %v119 = vand.u32 %v118, 127
      %v120 = vld [vmem:[%s111] sm:$0xff]
      %v121 = vld [vmem:[%s111 + $0x8] sm:$0xf]
      %v122 = vld [vmem:[%s111 + $0xc] sm:$0xff]
      %v123 = vld [vmem:[%s111 + $0x14] sm:$0xf]
      %v124 = vld [vmem:[%s111 + $0x18] sm:$0xff]
      %v125 = vld [vmem:[%s111 + $0x20] sm:$0xf]
      %v129 = vunpack.c.l.b16 %v120
      %v130 = vunpack.c.l.b16 %v122
      %v131 = vunpack.c.l.b16 %v124
      %v132 = vpack.c.b16 %v130, %v129
      %v133 = vpack.c.b16 %v131, %v131
      %v134 = vunpack.c.h.b16 %v120
      %v135 = vunpack.c.h.b16 %v122
      %v136 = vunpack.c.h.b16 %v124
      %v137 = vpack.c.b16 %v135, %v134
      %v138 = vpack.c.b16 %v136, %v136
      %vm139 = vcmask 130048
      %v141 = vsel %vm139, %v132, 0
      %v144 = vsel %vm139, %v133, 0
      %v147 = vsel %vm139, %v137, 0
      %v150 = vsel %vm139, %v138, 0
      %152 = vmatprep.subr.bf16.mxu0 0
      %153 = vmatpush1.bf16.xpose.msra.mxu0 %v147
      %154 = vmatprep.subr.bf16.mxu0 0
      %155 = vmatpush1.bf16.xpose.msra.mxu0 %v150
      %156 = vmatprep.subr.bf16.mxu0 0
      %157 = vmatpush1.bf16.xpose.msra.mxu0 0
      %158 = vmatprep.subr.bf16.mxu0 0
      %159 = vmatpush1.bf16.xpose.msra.mxu0 0
      %160 = vmatprep.subr.bf16.mxu0 0
      %161 = vmatpush1.bf16.xpose.msra.mxu0 0
      %162 = vmatprep.subr.bf16.mxu0 0
      %163 = vmatpush1.bf16.xpose.msra.mxu0 0
      %164 = vmatprep.subr.bf16.mxu0 0
      %165 = vmatpush1.bf16.xpose.msra.mxu0 0
      %166 = vmatprep.subr.bf16.mxu0 0
      %167 = vmatpush1.bf16.xpose.msra.mxu0 0
      %168 = vmatprep.subr.bf16.mxu0 0
      %169 = vmatpush1.bf16.xpose.msra.mxu0 0
      %170 = vmatprep.subr.bf16.mxu0 0
      %171 = vmatpush1.bf16.xpose.msra.mxu0 0
      %172 = vmatprep.subr.bf16.mxu0 0
      %173 = vmatpush1.bf16.xpose.msra.mxu0 0
      %174 = vmatprep.subr.bf16.mxu0 0
      %175 = vmatpush1.bf16.xpose.msra.mxu0 0
      %176 = vmatprep.subr.bf16.mxu0 0
      %177 = vmatpush1.bf16.xpose.msra.mxu0 0
      %178 = vmatprep.subr.bf16.mxu0 0
      %179 = vmatpush1.bf16.xpose.msra.mxu0 0
      %180 = vmatprep.subr.bf16.mxu0 0
      %181 = vmatpush1.bf16.xpose.msra.mxu0 0
      %182 = vmatprep.subr.bf16.mxu0 0
      %183 = vmatpush1.bf16.xpose.msra.mxu0 0
      %184 = vmatprep.mubr.bf16.mxu0 0
      %185 = vmatmul.mubr.bf16.gmra.mrb[0].mxu0 %v141
      %v186 = vpop.f32.mrb[0].mxu0
      %v187 = vadd.f32 0.0, %v186
      %v188 = vpop.f32.mrb[0].mxu0
      %v189 = vpop.f32.mrb[0].mxu0
      %v190 = vadd.f32 0.0, %v189
      %v191 = vpop.f32.mrb[0].mxu0
      %192 = vmatprep.mubr.bf16.mxu0 0
      %193 = vmatmul.mubr.bf16.gmra.mrb[0].mxu0 %v144
      %v194 = vpop.f32.mrb[0].mxu0
      %v195 = vadd.f32 0.0, %v194
      %v196 = vpop.f32.mrb[0].mxu0
      %v197 = vpop.f32.mrb[0].mxu0
      %v198 = vpop.f32.mrb[0].mxu0
      %199 = vdwg.mxu0
      %vm200 = vcmp.lt.s32.totalorder %v119, 17
      %v201 = vsel %vm200, 1, 0
      %vm202 = vcmp.eq.s32.totalorder %v201, 1
      %v203 = vsel %vm202, %v187, -1e+30
      %v204 = vsel %vm202, %v190, -1e+30
      %v205 = vsel %vm202, %v195, -1e+30
      %vm206 = vcmask 195584
      %v207 = vsel %vm206, %v203, -inf
      %208 = vmax.xlane.f32.xlu0 %v207
      %v209 = vpop.xlane.xlu0 %208
      %v210 = vsel %vm206, %v204, -inf
      %211 = vmax.xlane.f32.xlu0 %v210
      %v212 = vpop.xlane.xlu0 %211
      %v213 = vsel %vm206, %v205, -inf
      %214 = vmax.xlane.f32.xlu0 %v213
      %v215 = vpop.xlane.xlu0 %214
      %v216 = vsub.f32 %v203, %v209
      %v217 = vsub.f32 %v204, %v212
      %v218 = vsub.f32 %v205, %v215
      %v219 = vmul.f32 %v216, 1.442695
      %v220 = vpow.pop %v219
      %v221 = vmul.f32 %v217, 1.442695
      %v222 = vpow.pop %v221
      %v223 = vmul.f32 %v218, 1.442695
      %v224 = vpow.pop %v223
      %v225 = vsel %vm206, %v220, 0.0
      %226 = vadd.xlane.f32.xlu0 %v225
      %v227 = vpop.xlane.xlu0 %226
      %v228 = vsel %vm206, %v222, 0.0
      %229 = vadd.xlane.f32.xlu0 %v228
      %v230 = vpop.xlane.xlu0 %229
      %v231 = vsel %vm206, %v224, 0.0
      %232 = vadd.xlane.f32.xlu0 %v231
      %v233 = vpop.xlane.xlu0 %232
      %v234 = vmul.f32 %v227, 11.313708
      %v235 = vmul.f32 %v230, 11.313708
      %v236 = vmul.f32 %v233, 11.313708
      %v237 = vrcp.pop %v234
      %v238 = vmul.f32 %v220, %v237
      %v239 = vrcp.pop %v235
      %v240 = vmul.f32 %v222, %v239
      %v241 = vrcp.pop %v236
      %v242 = vmul.f32 %v224, %v241
      %v243 = vpack.c.bf16 %v240, %v238
      %v244 = vpack.c.bf16 %v242, %v242
      %v248 = vunpack.c.l.b16 %v121
      %v249 = vunpack.c.l.b16 %v123
      %v250 = vunpack.c.l.b16 %v125
      %v251 = vpack.c.b16 %v249, %v248
      %v252 = vpack.c.b16 %v250, %v250
      %v255 = vsel %vm206, %v243, 0
      %v258 = vsel %vm206, %v244, 0
      %vm260 = vcmask 1043456
      %v262 = vsel %vm260, %v252, 0
      %264 = vmatprep.subr.bf16.mxu0 0
      %265 = vmatpush1.bf16.msra.mxu0 %v251
      %266 = vmatprep.subr.bf16.mxu0 0
      %267 = vmatpush1.bf16.msra.mxu0 %v262
      %268 = vmatprep.subr.bf16.mxu0 0
      %269 = vmatpush1.bf16.msra.mxu0 0
      %270 = vmatprep.subr.bf16.mxu0 0
      %271 = vmatpush1.bf16.msra.mxu0 0
      %272 = vmatprep.subr.bf16.mxu0 0
      %273 = vmatpush1.bf16.msra.mxu0 0
      %274 = vmatprep.subr.bf16.mxu0 0
      %275 = vmatpush1.bf16.msra.mxu0 0
      %276 = vmatprep.subr.bf16.mxu0 0
      %277 = vmatpush1.bf16.msra.mxu0 0
      %278 = vmatprep.subr.bf16.mxu0 0
      %279 = vmatpush1.bf16.msra.mxu0 0
      %280 = vmatprep.subr.bf16.mxu0 0
      %281 = vmatpush1.bf16.msra.mxu0 0
      %282 = vmatprep.subr.bf16.mxu0 0
      %283 = vmatpush1.bf16.msra.mxu0 0
      %284 = vmatprep.subr.bf16.mxu0 0
      %285 = vmatpush1.bf16.msra.mxu0 0
      %286 = vmatprep.subr.bf16.mxu0 0
      %287 = vmatpush1.bf16.msra.mxu0 0
      %288 = vmatprep.subr.bf16.mxu0 0
      %289 = vmatpush1.bf16.msra.mxu0 0
      %290 = vmatprep.subr.bf16.mxu0 0
      %291 = vmatpush1.bf16.msra.mxu0 0
      %292 = vmatprep.subr.bf16.mxu0 0
      %293 = vmatpush1.bf16.msra.mxu0 0
      %294 = vmatprep.subr.bf16.mxu0 0
      %295 = vmatpush1.bf16.msra.mxu0 0
      %296 = vmatprep.mubr.bf16.mxu0 0
      %297 = vmatmul.mubr.bf16.gmra.mrb[0].mxu0 %v255
      %v298 = vpop.f32.mrb[0].mxu0
      %v299 = vadd.f32 0.0, %v298
      %v300 = vpop.f32.mrb[0].mxu0
      %v301 = vpop.f32.mrb[0].mxu0
      %v302 = vadd.f32 0.0, %v301
      %v303 = vpop.f32.mrb[0].mxu0
      %304 = vmatprep.mubr.bf16.mxu0 0
      %305 = vmatmul.mubr.bf16.gmra.mrb[0].mxu0 %v258
      %v306 = vpop.f32.mrb[0].mxu0
      %v307 = vadd.f32 0.0, %v306
      %v308 = vpop.f32.mrb[0].mxu0
      %v309 = vpop.f32.mrb[0].mxu0
      %v310 = vpop.f32.mrb[0].mxu0
      %311 = vdwg.mxu0
      %312 = vrot.lane.b32.xlu0 %v132, 112
      %v313 = vpop.permute.xlu0 %312
      %314 = vrot.lane.b32.xlu0 %v133, 112
      %v315 = vpop.permute.xlu0 %314
      %316 = vrot.lane.b32.xlu0 %v137, 112
      %v317 = vpop.permute.xlu0 %316
      %318 = vrot.lane.b32.xlu0 %v138, 112
      %v319 = vpop.permute.xlu0 %318
      %v321 = vsel %vm139, %v313, 0
      %v324 = vsel %vm139, %v315, 0
      %v327 = vsel %vm139, %v317, 0
      %v330 = vsel %vm139, %v319, 0
      %332 = vmatprep.subr.bf16.mxu0 0
      %333 = vmatpush1.bf16.xpose.msra.mxu0 %v327
      %334 = vmatprep.subr.bf16.mxu0 0
      %335 = vmatpush1.bf16.xpose.msra.mxu0 %v330
      %336 = vmatprep.subr.bf16.mxu0 0
      %337 = vmatpush1.bf16.xpose.msra.mxu0 0
      %338 = vmatprep.subr.bf16.mxu0 0
      %339 = vmatpush1.bf16.xpose.msra.mxu0 0
      %340 = vmatprep.subr.bf16.mxu0 0
      %341 = vmatpush1.bf16.xpose.msra.mxu0 0
      %342 = vmatprep.subr.bf16.mxu0 0
      %343 = vmatpush1.bf16.xpose.msra.mxu0 0
      %344 = vmatprep.subr.bf16.mxu0 0
      %345 = vmatpush1.bf16.xpose.msra.mxu0 0
      %346 = vmatprep.subr.bf16.mxu0 0
      %347 = vmatpush1.bf16.xpose.msra.mxu0 0
      %348 = vmatprep.subr.bf16.mxu0 0
      %349 = vmatpush1.bf16.xpose.msra.mxu0 0
      %350 = vmatprep.subr.bf16.mxu0 0
      %351 = vmatpush1.bf16.xpose.msra.mxu0 0
      %352 = vmatprep.subr.bf16.mxu0 0
      %353 = vmatpush1.bf16.xpose.msra.mxu0 0
      %354 = vmatprep.subr.bf16.mxu0 0
      %355 = vmatpush1.bf16.xpose.msra.mxu0 0
      %356 = vmatprep.subr.bf16.mxu0 0
      %357 = vmatpush1.bf16.xpose.msra.mxu0 0
      %358 = vmatprep.subr.bf16.mxu0 0
      %359 = vmatpush1.bf16.xpose.msra.mxu0 0
      %360 = vmatprep.subr.bf16.mxu0 0
      %361 = vmatpush1.bf16.xpose.msra.mxu0 0
      %362 = vmatprep.subr.bf16.mxu0 0
      %363 = vmatpush1.bf16.xpose.msra.mxu0 0
      %364 = vmatprep.mubr.bf16.mxu0 0
      %365 = vmatmul.mubr.bf16.gmra.mrb[0].mxu0 %v321
      %v366 = vpop.f32.mrb[0].mxu0
      %v367 = vadd.f32 0.0, %v366
      %v368 = vpop.f32.mrb[0].mxu0
      %v369 = vpop.f32.mrb[0].mxu0
      %v370 = vadd.f32 0.0, %v369
      %v371 = vpop.f32.mrb[0].mxu0
      %372 = vmatprep.mubr.bf16.mxu0 0
      %373 = vmatmul.mubr.bf16.gmra.mrb[0].mxu0 %v324
      %v374 = vpop.f32.mrb[0].mxu0
      %v375 = vadd.f32 0.0, %v374
      %v376 = vpop.f32.mrb[0].mxu0
      %v377 = vpop.f32.mrb[0].mxu0
      %v378 = vpop.f32.mrb[0].mxu0
      %379 = vdwg.mxu0
      %v380 = vsel %vm202, %v367, -1e+30
      %v381 = vsel %vm202, %v370, -1e+30
      %v382 = vsel %vm202, %v375, -1e+30
      %v383 = vsel %vm206, %v380, -inf
      %384 = vmax.xlane.f32.xlu0 %v383
      %v385 = vpop.xlane.xlu0 %384
      %v386 = vsel %vm206, %v381, -inf
      %387 = vmax.xlane.f32.xlu0 %v386
      %v388 = vpop.xlane.xlu0 %387
      %v389 = vsel %vm206, %v382, -inf
      %390 = vmax.xlane.f32.xlu0 %v389
      %v391 = vpop.xlane.xlu0 %390
      %v392 = vsub.f32 %v380, %v385
      %v393 = vsub.f32 %v381, %v388
      %v394 = vsub.f32 %v382, %v391
      %v395 = vmul.f32 %v392, 1.442695
      %v396 = vpow.pop %v395
      %v397 = vmul.f32 %v393, 1.442695
      %v398 = vpow.pop %v397
      %v399 = vmul.f32 %v394, 1.442695
      %v400 = vpow.pop %v399
      %v401 = vsel %vm206, %v396, 0.0
      %402 = vadd.xlane.f32.xlu0 %v401
      %v403 = vpop.xlane.xlu0 %402
      %v404 = vsel %vm206, %v398, 0.0
      %405 = vadd.xlane.f32.xlu0 %v404
      %v406 = vpop.xlane.xlu0 %405
      %v407 = vsel %vm206, %v400, 0.0
      %408 = vadd.xlane.f32.xlu0 %v407
      %v409 = vpop.xlane.xlu0 %408
      %v410 = vmul.f32 %v403, 11.313708
      %v411 = vmul.f32 %v406, 11.313708
      %v412 = vmul.f32 %v409, 11.313708
      %v413 = vrcp.pop %v410
      %v414 = vmul.f32 %v396, %v413
      %v415 = vrcp.pop %v411
      %v416 = vmul.f32 %v398, %v415
      %v417 = vrcp.pop %v412
      %v418 = vmul.f32 %v400, %v417
      %v419 = vpack.c.bf16 %v416, %v414
      %v420 = vpack.c.bf16 %v418, %v418
      %421 = vrot.lane.b32.xlu0 %v251, 112
      %v422 = vpop.permute.xlu0 %421
      %423 = vrot.lane.b32.xlu0 %v252, 112
      %v424 = vpop.permute.xlu0 %423
      %v427 = vsel %vm206, %v419, 0
      %v430 = vsel %vm206, %v420, 0
      %v433 = vsel %vm260, %v424, 0
      %435 = vmatprep.subr.bf16.mxu0 0
      %436 = vmatpush1.bf16.msra.mxu0 %v422
      %437 = vmatprep.subr.bf16.mxu0 0
      %438 = vmatpush1.bf16.msra.mxu0 %v433
      %439 = vmatprep.subr.bf16.mxu0 0
      %440 = vmatpush1.bf16.msra.mxu0 0
      %441 = vmatprep.subr.bf16.mxu0 0
      %442 = vmatpush1.bf16.msra.mxu0 0
      %443 = vmatprep.subr.bf16.mxu0 0
      %444 = vmatpush1.bf16.msra.mxu0 0
      %445 = vmatprep.subr.bf16.mxu0 0
      %446 = vmatpush1.bf16.msra.mxu0 0
      %447 = vmatprep.subr.bf16.mxu0 0
      %448 = vmatpush1.bf16.msra.mxu0 0
      %449 = vmatprep.subr.bf16.mxu0 0
      %450 = vmatpush1.bf16.msra.mxu0 0
      %451 = vmatprep.subr.bf16.mxu0 0
      %452 = vmatpush1.bf16.msra.mxu0 0
      %453 = vmatprep.subr.bf16.mxu0 0
      %454 = vmatpush1.bf16.msra.mxu0 0
      %455 = vmatprep.subr.bf16.mxu0 0
      %456 = vmatpush1.bf16.msra.mxu0 0
      %457 = vmatprep.subr.bf16.mxu0 0
      %458 = vmatpush1.bf16.msra.mxu0 0
      %459 = vmatprep.subr.bf16.mxu0 0
      %460 = vmatpush1.bf16.msra.mxu0 0
      %461 = vmatprep.subr.bf16.mxu0 0
      %462 = vmatpush1.bf16.msra.mxu0 0
      %463 = vmatprep.subr.bf16.mxu0 0
      %464 = vmatpush1.bf16.msra.mxu0 0
      %465 = vmatprep.subr.bf16.mxu0 0
      %466 = vmatpush1.bf16.msra.mxu0 0
      %467 = vmatprep.mubr.bf16.mxu0 0
      %468 = vmatmul.mubr.bf16.gmra.mrb[0].mxu0 %v427
      %v469 = vpop.f32.mrb[0].mxu0
      %v470 = vadd.f32 0.0, %v469
      %v471 = vpop.f32.mrb[0].mxu0
      %v472 = vpop.f32.mrb[0].mxu0
      %v473 = vadd.f32 0.0, %v472
      %v474 = vpop.f32.mrb[0].mxu0
      %475 = vmatprep.mubr.bf16.mxu0 0
      %476 = vmatmul.mubr.bf16.gmra.mrb[0].mxu0 %v430
      %v477 = vpop.f32.mrb[0].mxu0
      %v478 = vadd.f32 0.0, %v477
      %v479 = vpop.f32.mrb[0].mxu0
      %v480 = vpop.f32.mrb[0].mxu0
      %v481 = vpop.f32.mrb[0].mxu0
      %482 = vdwg.mxu0
      %483 = vrot.lane.b32.xlu0 %v132, 96
      %v484 = vpop.permute.xlu0 %483
      %485 = vrot.lane.b32.xlu0 %v133, 96
      %v486 = vpop.permute.xlu0 %485
      %487 = vrot.lane.b32.xlu0 %v137, 96
      %v488 = vpop.permute.xlu0 %487
      %489 = vrot.lane.b32.xlu0 %v138, 96
      %v490 = vpop.permute.xlu0 %489
      %v492 = vsel %vm139, %v484, 0
      %v495 = vsel %vm139, %v486, 0
      %v498 = vsel %vm139, %v488, 0
      %v501 = vsel %vm139, %v490, 0
      %503 = vmatprep.subr.bf16.mxu0 0
      %504 = vmatpush1.bf16.xpose.msra.mxu0 %v498
      %505 = vmatprep.subr.bf16.mxu0 0
      %506 = vmatpush1.bf16.xpose.msra.mxu0 %v501
      %507 = vmatprep.subr.bf16.mxu0 0
      %508 = vmatpush1.bf16.xpose.msra.mxu0 0
      %509 = vmatprep.subr.bf16.mxu0 0
      %510 = vmatpush1.bf16.xpose.msra.mxu0 0
      %511 = vmatprep.subr.bf16.mxu0 0
      %512 = vmatpush1.bf16.xpose.msra.mxu0 0
      %513 = vmatprep.subr.bf16.mxu0 0
      %514 = vmatpush1.bf16.xpose.msra.mxu0 0
      %515 = vmatprep.subr.bf16.mxu0 0
      %516 = vmatpush1.bf16.xpose.msra.mxu0 0
      %517 = vmatprep.subr.bf16.mxu0 0
      %518 = vmatpush1.bf16.xpose.msra.mxu0 0
      %519 = vmatprep.subr.bf16.mxu0 0
      %520 = vmatpush1.bf16.xpose.msra.mxu0 0
      %521 = vmatprep.subr.bf16.mxu0 0
      %522 = vmatpush1.bf16.xpose.msra.mxu0 0
      %523 = vmatprep.subr.bf16.mxu0 0
      %524 = vmatpush1.bf16.xpose.msra.mxu0 0
      %525 = vmatprep.subr.bf16.mxu0 0
      %526 = vmatpush1.bf16.xpose.msra.mxu0 0
      %527 = vmatprep.subr.bf16.mxu0 0
      %528 = vmatpush1.bf16.xpose.msra.mxu0 0
      %529 = vmatprep.subr.bf16.mxu0 0
      %530 = vmatpush1.bf16.xpose.msra.mxu0 0
      %531 = vmatprep.subr.bf16.mxu0 0
      %532 = vmatpush1.bf16.xpose.msra.mxu0 0
      %533 = vmatprep.subr.bf16.mxu0 0
      %534 = vmatpush1.bf16.xpose.msra.mxu0 0
      %535 = vmatprep.mubr.bf16.mxu0 0
      %536 = vmatmul.mubr.bf16.gmra.mrb[0].mxu0 %v492
      %v537 = vpop.f32.mrb[0].mxu0
      %v538 = vadd.f32 0.0, %v537
      %v539 = vpop.f32.mrb[0].mxu0
      %v540 = vpop.f32.mrb[0].mxu0
      %v541 = vadd.f32 0.0, %v540
      %v542 = vpop.f32.mrb[0].mxu0
      %543 = vmatprep.mubr.bf16.mxu0 0
      %544 = vmatmul.mubr.bf16.gmra.mrb[0].mxu0 %v495
      %v545 = vpop.f32.mrb[0].mxu0
      %v546 = vadd.f32 0.0, %v545
      %v547 = vpop.f32.mrb[0].mxu0
      %v548 = vpop.f32.mrb[0].mxu0
      %v549 = vpop.f32.mrb[0].mxu0
      %550 = vdwg.mxu0
      %v551 = vsel %vm202, %v538, -1e+30
      %v552 = vsel %vm202, %v541, -1e+30
      %v553 = vsel %vm202, %v546, -1e+30
      %v554 = vsel %vm206, %v551, -inf
      %555 = vmax.xlane.f32.xlu0 %v554
      %v556 = vpop.xlane.xlu0 %555
      %v557 = vsel %vm206, %v552, -inf
      %558 = vmax.xlane.f32.xlu0 %v557
      %v559 = vpop.xlane.xlu0 %558
      %v560 = vsel %vm206, %v553, -inf
      %561 = vmax.xlane.f32.xlu0 %v560
      %v562 = vpop.xlane.xlu0 %561
      %v563 = vsub.f32 %v551, %v556
      %v564 = vsub.f32 %v552, %v559
      %v565 = vsub.f32 %v553, %v562
      %v566 = vmul.f32 %v563, 1.442695
      %v567 = vpow.pop %v566
      %v568 = vmul.f32 %v564, 1.442695
      %v569 = vpow.pop %v568
      %v570 = vmul.f32 %v565, 1.442695
      %v571 = vpow.pop %v570
      %v572 = vsel %vm206, %v567, 0.0
      %573 = vadd.xlane.f32.xlu0 %v572
      %v574 = vpop.xlane.xlu0 %573
      %v575 = vsel %vm206, %v569, 0.0
      %576 = vadd.xlane.f32.xlu0 %v575
      %v577 = vpop.xlane.xlu0 %576
      %v578 = vsel %vm206, %v571, 0.0
      %579 = vadd.xlane.f32.xlu0 %v578
      %v580 = vpop.xlane.xlu0 %579
      %v581 = vmul.f32 %v574, 11.313708
      %v582 = vmul.f32 %v577, 11.313708
      %v583 = vmul.f32 %v580, 11.313708
      %v584 = vrcp.pop %v581
      %v585 = vmul.f32 %v567, %v584
      %v586 = vrcp.pop %v582
      %v587 = vmul.f32 %v569, %v586
      %v588 = vrcp.pop %v583
      %v589 = vmul.f32 %v571, %v588
      %v590 = vpack.c.bf16 %v587, %v585
      %v591 = vpack.c.bf16 %v589, %v589
      %592 = vrot.lane.b32.xlu0 %v251, 96
      %v593 = vpop.permute.xlu0 %592
      %594 = vrot.lane.b32.xlu0 %v252, 96
      %v595 = vpop.permute.xlu0 %594
      %v598 = vsel %vm206, %v590, 0
      %v601 = vsel %vm206, %v591, 0
      %v604 = vsel %vm260, %v595, 0
      %606 = vmatprep.subr.bf16.mxu0 0
      %607 = vmatpush1.bf16.msra.mxu0 %v593
      %608 = vmatprep.subr.bf16.mxu0 0
      %609 = vmatpush1.bf16.msra.mxu0 %v604
      %610 = vmatprep.subr.bf16.mxu0 0
      %611 = vmatpush1.bf16.msra.mxu0 0
      %612 = vmatprep.subr.bf16.mxu0 0
      %613 = vmatpush1.bf16.msra.mxu0 0
      %614 = vmatprep.subr.bf16.mxu0 0
      %615 = vmatpush1.bf16.msra.mxu0 0
      %616 = vmatprep.subr.bf16.mxu0 0
      %617 = vmatpush1.bf16.msra.mxu0 0
      %618 = vmatprep.subr.bf16.mxu0 0
      %619 = vmatpush1.bf16.msra.mxu0 0
      %620 = vmatprep.subr.bf16.mxu0 0
      %621 = vmatpush1.bf16.msra.mxu0 0
      %622 = vmatprep.subr.bf16.mxu0 0
      %623 = vmatpush1.bf16.msra.mxu0 0
      %624 = vmatprep.subr.bf16.mxu0 0
      %625 = vmatpush1.bf16.msra.mxu0 0
      %626 = vmatprep.subr.bf16.mxu0 0
      %627 = vmatpush1.bf16.msra.mxu0 0
      %628 = vmatprep.subr.bf16.mxu0 0
      %629 = vmatpush1.bf16.msra.mxu0 0
      %630 = vmatprep.subr.bf16.mxu0 0
      %631 = vmatpush1.bf16.msra.mxu0 0
      %632 = vmatprep.subr.bf16.mxu0 0
      %633 = vmatpush1.bf16.msra.mxu0 0
      %634 = vmatprep.subr.bf16.mxu0 0
      %635 = vmatpush1.bf16.msra.mxu0 0
      %636 = vmatprep.subr.bf16.mxu0 0
      %637 = vmatpush1.bf16.msra.mxu0 0
      %638 = vmatprep.mubr.bf16.mxu0 0
      %639 = vmatmul.mubr.bf16.gmra.mrb[0].mxu0 %v598
      %v640 = vpop.f32.mrb[0].mxu0
      %v641 = vadd.f32 0.0, %v640
      %v642 = vpop.f32.mrb[0].mxu0
      %v643 = vpop.f32.mrb[0].mxu0
      %v644 = vadd.f32 0.0, %v643
      %v645 = vpop.f32.mrb[0].mxu0
      %646 = vmatprep.mubr.bf16.mxu0 0
      %647 = vmatmul.mubr.bf16.gmra.mrb[0].mxu0 %v601
      %v648 = vpop.f32.mrb[0].mxu0
      %v649 = vadd.f32 0.0, %v648
      %v650 = vpop.f32.mrb[0].mxu0
      %v651 = vpop.f32.mrb[0].mxu0
      %v652 = vpop.f32.mrb[0].mxu0
      %653 = vdwg.mxu0
      %654 = vrot.lane.b32.xlu0 %v132, 80
      %v655 = vpop.permute.xlu0 %654
      %656 = vrot.lane.b32.xlu0 %v133, 80
      %v657 = vpop.permute.xlu0 %656
      %658 = vrot.lane.b32.xlu0 %v137, 80
      %v659 = vpop.permute.xlu0 %658
      %660 = vrot.lane.b32.xlu0 %v138, 80
      %v661 = vpop.permute.xlu0 %660
      %v663 = vsel %vm139, %v655, 0
      %v666 = vsel %vm139, %v657, 0
      %v669 = vsel %vm139, %v659, 0
      %v672 = vsel %vm139, %v661, 0
      %674 = vmatprep.subr.bf16.mxu0 0
      %675 = vmatpush1.bf16.xpose.msra.mxu0 %v669
      %676 = vmatprep.subr.bf16.mxu0 0
      %677 = vmatpush1.bf16.xpose.msra.mxu0 %v672
      %678 = vmatprep.subr.bf16.mxu0 0
      %679 = vmatpush1.bf16.xpose.msra.mxu0 0
      %680 = vmatprep.subr.bf16.mxu0 0
      %681 = vmatpush1.bf16.xpose.msra.mxu0 0
      %682 = vmatprep.subr.bf16.mxu0 0
      %683 = vmatpush1.bf16.xpose.msra.mxu0 0
      %684 = vmatprep.subr.bf16.mxu0 0
      %685 = vmatpush1.bf16.xpose.msra.mxu0 0
      %686 = vmatprep.subr.bf16.mxu0 0
      %687 = vmatpush1.bf16.xpose.msra.mxu0 0
      %688 = vmatprep.subr.bf16.mxu0 0
      %689 = vmatpush1.bf16.xpose.msra.mxu0 0
      %690 = vmatprep.subr.bf16.mxu0 0
      %691 = vmatpush1.bf16.xpose.msra.mxu0 0
      %692 = vmatprep.subr.bf16.mxu0 0
      %693 = vmatpush1.bf16.xpose.msra.mxu0 0
      %694 = vmatprep.subr.bf16.mxu0 0
      %695 = vmatpush1.bf16.xpose.msra.mxu0 0
      %696 = vmatprep.subr.bf16.mxu0 0
      %697 = vmatpush1.bf16.xpose.msra.mxu0 0
      %698 = vmatprep.subr.bf16.mxu0 0
      %699 = vmatpush1.bf16.xpose.msra.mxu0 0
      %700 = vmatprep.subr.bf16.mxu0 0
      %701 = vmatpush1.bf16.xpose.msra.mxu0 0
      %702 = vmatprep.subr.bf16.mxu0 0
      %703 = vmatpush1.bf16.xpose.msra.mxu0 0
      %704 = vmatprep.subr.bf16.mxu0 0
      %705 = vmatpush1.bf16.xpose.msra.mxu0 0
      %706 = vmatprep.mubr.bf16.mxu0 0
      %707 = vmatmul.mubr.bf16.gmra.mrb[0].mxu0 %v663
      %v708 = vpop.f32.mrb[0].mxu0
      %v709 = vadd.f32 0.0, %v708
      %v710 = vpop.f32.mrb[0].mxu0
      %v711 = vpop.f32.mrb[0].mxu0
      %v712 = vadd.f32 0.0, %v711
      %v713 = vpop.f32.mrb[0].mxu0
      %714 = vmatprep.mubr.bf16.mxu0 0
      %715 = vmatmul.mubr.bf16.gmra.mrb[0].mxu0 %v666
      %v716 = vpop.f32.mrb[0].mxu0
      %v717 = vadd.f32 0.0, %v716
      %v718 = vpop.f32.mrb[0].mxu0
      %v719 = vpop.f32.mrb[0].mxu0
      %v720 = vpop.f32.mrb[0].mxu0
      %721 = vdwg.mxu0
      %v722 = vsel %vm202, %v709, -1e+30
      %v723 = vsel %vm202, %v712, -1e+30
      %v724 = vsel %vm202, %v717, -1e+30
      %v725 = vsel %vm206, %v722, -inf
      %726 = vmax.xlane.f32.xlu0 %v725
      %v727 = vpop.xlane.xlu0 %726
      %v728 = vsel %vm206, %v723, -inf
      %729 = vmax.xlane.f32.xlu0 %v728
      %v730 = vpop.xlane.xlu0 %729
      %v731 = vsel %vm206, %v724, -inf
      %732 = vmax.xlane.f32.xlu0 %v731
      %v733 = vpop.xlane.xlu0 %732
      %v734 = vsub.f32 %v722, %v727
      %v735 = vsub.f32 %v723, %v730
      %v736 = vsub.f32 %v724, %v733
      %v737 = vmul.f32 %v734, 1.442695
      %v738 = vpow.pop %v737
      %v739 = vmul.f32 %v735, 1.442695
      %v740 = vpow.pop %v739
      %v741 = vmul.f32 %v736, 1.442695
      %v742 = vpow.pop %v741
      %v743 = vsel %vm206, %v738, 0.0
      %744 = vadd.xlane.f32.xlu0 %v743
      %v745 = vpop.xlane.xlu0 %744
      %v746 = vsel %vm206, %v740, 0.0
      %747 = vadd.xlane.f32.xlu0 %v746
      %v748 = vpop.xlane.xlu0 %747
      %v749 = vsel %vm206, %v742, 0.0
      %750 = vadd.xlane.f32.xlu0 %v749
      %v751 = vpop.xlane.xlu0 %750
      %v752 = vmul.f32 %v745, 11.313708
      %v753 = vmul.f32 %v748, 11.313708
      %v754 = vmul.f32 %v751, 11.313708
      %v755 = vrcp.pop %v752
      %v756 = vmul.f32 %v738, %v755
      %v757 = vrcp.pop %v753
      %v758 = vmul.f32 %v740, %v757
      %v759 = vrcp.pop %v754
      %v760 = vmul.f32 %v742, %v759
      %v761 = vpack.c.bf16 %v758, %v756
      %v762 = vpack.c.bf16 %v760, %v760
      %763 = vrot.lane.b32.xlu0 %v251, 80
      %v764 = vpop.permute.xlu0 %763
      %765 = vrot.lane.b32.xlu0 %v252, 80
      %v766 = vpop.permute.xlu0 %765
      %v769 = vsel %vm206, %v761, 0
      %v772 = vsel %vm206, %v762, 0
      %v775 = vsel %vm260, %v766, 0
      %777 = vmatprep.subr.bf16.mxu0 0
      %778 = vmatpush1.bf16.msra.mxu0 %v764
      %779 = vmatprep.subr.bf16.mxu0 0
      %780 = vmatpush1.bf16.msra.mxu0 %v775
      %781 = vmatprep.subr.bf16.mxu0 0
      %782 = vmatpush1.bf16.msra.mxu0 0
      %783 = vmatprep.subr.bf16.mxu0 0
      %784 = vmatpush1.bf16.msra.mxu0 0
      %785 = vmatprep.subr.bf16.mxu0 0
      %786 = vmatpush1.bf16.msra.mxu0 0
      %787 = vmatprep.subr.bf16.mxu0 0
      %788 = vmatpush1.bf16.msra.mxu0 0
      %789 = vmatprep.subr.bf16.mxu0 0
      %790 = vmatpush1.bf16.msra.mxu0 0
      %791 = vmatprep.subr.bf16.mxu0 0
      %792 = vmatpush1.bf16.msra.mxu0 0
      %793 = vmatprep.subr.bf16.mxu0 0
      %794 = vmatpush1.bf16.msra.mxu0 0
      %795 = vmatprep.subr.bf16.mxu0 0
      %796 = vmatpush1.bf16.msra.mxu0 0
      %797 = vmatprep.subr.bf16.mxu0 0
      %798 = vmatpush1.bf16.msra.mxu0 0
      %799 = vmatprep.subr.bf16.mxu0 0
      %800 = vmatpush1.bf16.msra.mxu0 0
      %801 = vmatprep.subr.bf16.mxu0 0
      %802 = vmatpush1.bf16.msra.mxu0 0
      %803 = vmatprep.subr.bf16.mxu0 0
      %804 = vmatpush1.bf16.msra.mxu0 0
      %805 = vmatprep.subr.bf16.mxu0 0
      %806 = vmatpush1.bf16.msra.mxu0 0
      %807 = vmatprep.subr.bf16.mxu0 0
      %808 = vmatpush1.bf16.msra.mxu0 0
      %809 = vmatprep.mubr.bf16.mxu0 0
      %810 = vmatmul.mubr.bf16.gmra.mrb[0].mxu0 %v769
      %v811 = vpop.f32.mrb[0].mxu0
      %v812 = vadd.f32 0.0, %v811
      %v813 = vpop.f32.mrb[0].mxu0
      %v814 = vpop.f32.mrb[0].mxu0
      %v815 = vadd.f32 0.0, %v814
      %v816 = vpop.f32.mrb[0].mxu0
      %817 = vmatprep.mubr.bf16.mxu0 0
      %818 = vmatmul.mubr.bf16.gmra.mrb[0].mxu0 %v772
      %v819 = vpop.f32.mrb[0].mxu0
      %v820 = vadd.f32 0.0, %v819
      %v821 = vpop.f32.mrb[0].mxu0
      %v822 = vpop.f32.mrb[0].mxu0
      %v823 = vpop.f32.mrb[0].mxu0
      %824 = vdwg.mxu0
      %825 = vrot.lane.b32.xlu0 %v132, 64
      %v826 = vpop.permute.xlu0 %825
      %827 = vrot.lane.b32.xlu0 %v133, 64
      %v828 = vpop.permute.xlu0 %827
      %829 = vrot.lane.b32.xlu0 %v137, 64
      %v830 = vpop.permute.xlu0 %829
      %831 = vrot.lane.b32.xlu0 %v138, 64
      %v832 = vpop.permute.xlu0 %831
      %v834 = vsel %vm139, %v826, 0
      %v837 = vsel %vm139, %v828, 0
      %v840 = vsel %vm139, %v830, 0
      %v843 = vsel %vm139, %v832, 0
      %845 = vmatprep.subr.bf16.mxu0 0
      %846 = vmatpush1.bf16.xpose.msra.mxu0 %v840
      %847 = vmatprep.subr.bf16.mxu0 0
      %848 = vmatpush1.bf16.xpose.msra.mxu0 %v843
      %849 = vmatprep.subr.bf16.mxu0 0
      %850 = vmatpush1.bf16.xpose.msra.mxu0 0
      %851 = vmatprep.subr.bf16.mxu0 0
      %852 = vmatpush1.bf16.xpose.msra.mxu0 0
      %853 = vmatprep.subr.bf16.mxu0 0
      %854 = vmatpush1.bf16.xpose.msra.mxu0 0
      %855 = vmatprep.subr.bf16.mxu0 0
      %856 = vmatpush1.bf16.xpose.msra.mxu0 0
      %857 = vmatprep.subr.bf16.mxu0 0
      %858 = vmatpush1.bf16.xpose.msra.mxu0 0
      %859 = vmatprep.subr.bf16.mxu0 0
      %860 = vmatpush1.bf16.xpose.msra.mxu0 0
      %861 = vmatprep.subr.bf16.mxu0 0
      %862 = vmatpush1.bf16.xpose.msra.mxu0 0
      %863 = vmatprep.subr.bf16.mxu0 0
      %864 = vmatpush1.bf16.xpose.msra.mxu0 0
      %865 = vmatprep.subr.bf16.mxu0 0
      %866 = vmatpush1.bf16.xpose.msra.mxu0 0
      %867 = vmatprep.subr.bf16.mxu0 0
      %868 = vmatpush1.bf16.xpose.msra.mxu0 0
      %869 = vmatprep.subr.bf16.mxu0 0
      %870 = vmatpush1.bf16.xpose.msra.mxu0 0
      %871 = vmatprep.subr.bf16.mxu0 0
      %872 = vmatpush1.bf16.xpose.msra.mxu0 0
      %873 = vmatprep.subr.bf16.mxu0 0
      %874 = vmatpush1.bf16.xpose.msra.mxu0 0
      %875 = vmatprep.subr.bf16.mxu0 0
      %876 = vmatpush1.bf16.xpose.msra.mxu0 0
      %877 = vmatprep.mubr.bf16.mxu0 0
      %878 = vmatmul.mubr.bf16.gmra.mrb[0].mxu0 %v834
      %v879 = vpop.f32.mrb[0].mxu0
      %v880 = vadd.f32 0.0, %v879
      %v881 = vpop.f32.mrb[0].mxu0
      %v882 = vpop.f32.mrb[0].mxu0
      %v883 = vadd.f32 0.0, %v882
      %v884 = vpop.f32.mrb[0].mxu0
      %885 = vmatprep.mubr.bf16.mxu0 0
      %886 = vmatmul.mubr.bf16.gmra.mrb[0].mxu0 %v837
      %v887 = vpop.f32.mrb[0].mxu0
      %v888 = vadd.f32 0.0, %v887
      %v889 = vpop.f32.mrb[0].mxu0
      %v890 = vpop.f32.mrb[0].mxu0
      %v891 = vpop.f32.mrb[0].mxu0
      %892 = vdwg.mxu0
      %v893 = vsel %vm202, %v880, -1e+30
      %v894 = vsel %vm202, %v883, -1e+30
      %v895 = vsel %vm202, %v888, -1e+30
      %v896 = vsel %vm206, %v893, -inf
      %897 = vmax.xlane.f32.xlu0 %v896
      %v898 = vpop.xlane.xlu0 %897
      %v899 = vsel %vm206, %v894, -inf
      %900 = vmax.xlane.f32.xlu0 %v899
      %v901 = vpop.xlane.xlu0 %900
      %v902 = vsel %vm206, %v895, -inf
      %903 = vmax.xlane.f32.xlu0 %v902
      %v904 = vpop.xlane.xlu0 %903
      %v905 = vsub.f32 %v893, %v898
      %v906 = vsub.f32 %v894, %v901
      %v907 = vsub.f32 %v895, %v904
      %v908 = vmul.f32 %v905, 1.442695
      %v909 = vpow.pop %v908
      %v910 = vmul.f32 %v906, 1.442695
      %v911 = vpow.pop %v910
      %v912 = vmul.f32 %v907, 1.442695
      %v913 = vpow.pop %v912
      %v914 = vsel %vm206, %v909, 0.0
      %915 = vadd.xlane.f32.xlu0 %v914
      %v916 = vpop.xlane.xlu0 %915
      %v917 = vsel %vm206, %v911, 0.0
      %918 = vadd.xlane.f32.xlu0 %v917
      %v919 = vpop.xlane.xlu0 %918
      %v920 = vsel %vm206, %v913, 0.0
      %921 = vadd.xlane.f32.xlu0 %v920
      %v922 = vpop.xlane.xlu0 %921
      %v923 = vmul.f32 %v916, 11.313708
      %v924 = vmul.f32 %v919, 11.313708
      %v925 = vmul.f32 %v922, 11.313708
      %v926 = vrcp.pop %v923
      %v927 = vmul.f32 %v909, %v926
      %v928 = vrcp.pop %v924
      %v929 = vmul.f32 %v911, %v928
      %v930 = vrcp.pop %v925
      %v931 = vmul.f32 %v913, %v930
      %v932 = vpack.c.bf16 %v929, %v927
      %v933 = vpack.c.bf16 %v931, %v931
      %934 = vrot.lane.b32.xlu0 %v251, 64
      %v935 = vpop.permute.xlu0 %934
      %936 = vrot.lane.b32.xlu0 %v252, 64
      %v937 = vpop.permute.xlu0 %936
      %v940 = vsel %vm206, %v932, 0
      %v943 = vsel %vm206, %v933, 0
      %v946 = vsel %vm260, %v937, 0
      %948 = vmatprep.subr.bf16.mxu0 0
      %949 = vmatpush1.bf16.msra.mxu0 %v935
      %950 = vmatprep.subr.bf16.mxu0 0
      %951 = vmatpush1.bf16.msra.mxu0 %v946
      %952 = vmatprep.subr.bf16.mxu0 0
      %953 = vmatpush1.bf16.msra.mxu0 0
      %954 = vmatprep.subr.bf16.mxu0 0
      %955 = vmatpush1.bf16.msra.mxu0 0
      %956 = vmatprep.subr.bf16.mxu0 0
      %957 = vmatpush1.bf16.msra.mxu0 0
      %958 = vmatprep.subr.bf16.mxu0 0
      %959 = vmatpush1.bf16.msra.mxu0 0
      %960 = vmatprep.subr.bf16.mxu0 0
      %961 = vmatpush1.bf16.msra.mxu0 0
      %962 = vmatprep.subr.bf16.mxu0 0
      %963 = vmatpush1.bf16.msra.mxu0 0
      %964 = vmatprep.subr.bf16.mxu0 0
      %965 = vmatpush1.bf16.msra.mxu0 0
      %966 = vmatprep.subr.bf16.mxu0 0
      %967 = vmatpush1.bf16.msra.mxu0 0
      %968 = vmatprep.subr.bf16.mxu0 0
      %969 = vmatpush1.bf16.msra.mxu0 0
      %970 = vmatprep.subr.bf16.mxu0 0
      %971 = vmatpush1.bf16.msra.mxu0 0
      %972 = vmatprep.subr.bf16.mxu0 0
      %973 = vmatpush1.bf16.msra.mxu0 0
      %974 = vmatprep.subr.bf16.mxu0 0
      %975 = vmatpush1.bf16.msra.mxu0 0
      %976 = vmatprep.subr.bf16.mxu0 0
      %977 = vmatpush1.bf16.msra.mxu0 0
      %978 = vmatprep.subr.bf16.mxu0 0
      %979 = vmatpush1.bf16.msra.mxu0 0
      %980 = vmatprep.mubr.bf16.mxu0 0
      %981 = vmatmul.mubr.bf16.gmra.mrb[0].mxu0 %v940
      %v982 = vpop.f32.mrb[0].mxu0
      %v983 = vadd.f32 0.0, %v982
      %v984 = vpop.f32.mrb[0].mxu0
      %v985 = vpop.f32.mrb[0].mxu0
      %v986 = vadd.f32 0.0, %v985
      %v987 = vpop.f32.mrb[0].mxu0
      %988 = vmatprep.mubr.bf16.mxu0 0
      %989 = vmatmul.mubr.bf16.gmra.mrb[0].mxu0 %v943
      %v990 = vpop.f32.mrb[0].mxu0
      %v991 = vadd.f32 0.0, %v990
      %v992 = vpop.f32.mrb[0].mxu0
      %v993 = vpop.f32.mrb[0].mxu0
      %v994 = vpop.f32.mrb[0].mxu0
      %995 = vdwg.mxu0
      %996 = vrot.lane.b32.xlu0 %v132, 48
      %v997 = vpop.permute.xlu0 %996
      %998 = vrot.lane.b32.xlu0 %v133, 48
      %v999 = vpop.permute.xlu0 %998
      %1000 = vrot.lane.b32.xlu0 %v137, 48
      %v1001 = vpop.permute.xlu0 %1000
      %1002 = vrot.lane.b32.xlu0 %v138, 48
      %v1003 = vpop.permute.xlu0 %1002
      %v1005 = vsel %vm139, %v997, 0
      %v1008 = vsel %vm139, %v999, 0
      %v1011 = vsel %vm139, %v1001, 0
      %v1014 = vsel %vm139, %v1003, 0
      %1016 = vmatprep.subr.bf16.mxu0 0
      %1017 = vmatpush1.bf16.xpose.msra.mxu0 %v1011
      %1018 = vmatprep.subr.bf16.mxu0 0
      %1019 = vmatpush1.bf16.xpose.msra.mxu0 %v1014
      %1020 = vmatprep.subr.bf16.mxu0 0
      %1021 = vmatpush1.bf16.xpose.msra.mxu0 0
      %1022 = vmatprep.subr.bf16.mxu0 0
      %1023 = vmatpush1.bf16.xpose.msra.mxu0 0
      %1024 = vmatprep.subr.bf16.mxu0 0
      %1025 = vmatpush1.bf16.xpose.msra.mxu0 0
      %1026 = vmatprep.subr.bf16.mxu0 0
      %1027 = vmatpush1.bf16.xpose.msra.mxu0 0
      %1028 = vmatprep.subr.bf16.mxu0 0
      %1029 = vmatpush1.bf16.xpose.msra.mxu0 0
      %1030 = vmatprep.subr.bf16.mxu0 0
      %1031 = vmatpush1.bf16.xpose.msra.mxu0 0
      %1032 = vmatprep.subr.bf16.mxu0 0
      %1033 = vmatpush1.bf16.xpose.msra.mxu0 0
      %1034 = vmatprep.subr.bf16.mxu0 0
      %1035 = vmatpush1.bf16.xpose.msra.mxu0 0
      %1036 = vmatprep.subr.bf16.mxu0 0
      %1037 = vmatpush1.bf16.xpose.msra.mxu0 0
      %1038 = vmatprep.subr.bf16.mxu0 0
      %1039 = vmatpush1.bf16.xpose.msra.mxu0 0
      %1040 = vmatprep.subr.bf16.mxu0 0
      %1041 = vmatpush1.bf16.xpose.msra.mxu0 0
      %1042 = vmatprep.subr.bf16.mxu0 0
      %1043 = vmatpush1.bf16.xpose.msra.mxu0 0
      %1044 = vmatprep.subr.bf16.mxu0 0
      %1045 = vmatpush1.bf16.xpose.msra.mxu0 0
      %1046 = vmatprep.subr.bf16.mxu0 0
      %1047 = vmatpush1.bf16.xpose.msra.mxu0 0
      %1048 = vmatprep.mubr.bf16.mxu0 0
      %1049 = vmatmul.mubr.bf16.gmra.mrb[0].mxu0 %v1005
      %v1050 = vpop.f32.mrb[0].mxu0
      %v1051 = vadd.f32 0.0, %v1050
      %v1052 = vpop.f32.mrb[0].mxu0
      %v1053 = vpop.f32.mrb[0].mxu0
      %v1054 = vadd.f32 0.0, %v1053
      %v1055 = vpop.f32.mrb[0].mxu0
      %1056 = vmatprep.mubr.bf16.mxu0 0
      %1057 = vmatmul.mubr.bf16.gmra.mrb[0].mxu0 %v1008
      %v1058 = vpop.f32.mrb[0].mxu0
      %v1059 = vadd.f32 0.0, %v1058
      %v1060 = vpop.f32.mrb[0].mxu0
      %v1061 = vpop.f32.mrb[0].mxu0
      %v1062 = vpop.f32.mrb[0].mxu0
      %1063 = vdwg.mxu0
      %v1064 = vsel %vm202, %v1051, -1e+30
      %v1065 = vsel %vm202, %v1054, -1e+30
      %v1066 = vsel %vm202, %v1059, -1e+30
      %v1067 = vsel %vm206, %v1064, -inf
      %1068 = vmax.xlane.f32.xlu0 %v1067
      %v1069 = vpop.xlane.xlu0 %1068
      %v1070 = vsel %vm206, %v1065, -inf
      %1071 = vmax.xlane.f32.xlu0 %v1070
      %v1072 = vpop.xlane.xlu0 %1071
      %v1073 = vsel %vm206, %v1066, -inf
      %1074 = vmax.xlane.f32.xlu0 %v1073
      %v1075 = vpop.xlane.xlu0 %1074
      %v1076 = vsub.f32 %v1064, %v1069
      %v1077 = vsub.f32 %v1065, %v1072
      %v1078 = vsub.f32 %v1066, %v1075
      %v1079 = vmul.f32 %v1076, 1.442695
      %v1080 = vpow.pop %v1079
      %v1081 = vmul.f32 %v1077, 1.442695
      %v1082 = vpow.pop %v1081
      %v1083 = vmul.f32 %v1078, 1.442695
      %v1084 = vpow.pop %v1083
      %v1085 = vsel %vm206, %v1080, 0.0
      %1086 = vadd.xlane.f32.xlu0 %v1085
      %v1087 = vpop.xlane.xlu0 %1086
      %v1088 = vsel %vm206, %v1082, 0.0
      %1089 = vadd.xlane.f32.xlu0 %v1088
      %v1090 = vpop.xlane.xlu0 %1089
      %v1091 = vsel %vm206, %v1084, 0.0
      %1092 = vadd.xlane.f32.xlu0 %v1091
      %v1093 = vpop.xlane.xlu0 %1092
      %v1094 = vmul.f32 %v1087, 11.313708
      %v1095 = vmul.f32 %v1090, 11.313708
      %v1096 = vmul.f32 %v1093, 11.313708
      %v1097 = vrcp.pop %v1094
      %v1098 = vmul.f32 %v1080, %v1097
      %v1099 = vrcp.pop %v1095
      %v1100 = vmul.f32 %v1082, %v1099
      %v1101 = vrcp.pop %v1096
      %v1102 = vmul.f32 %v1084, %v1101
      %v1103 = vpack.c.bf16 %v1100, %v1098
      %v1104 = vpack.c.bf16 %v1102, %v1102
      %1105 = vrot.lane.b32.xlu0 %v251, 48
      %v1106 = vpop.permute.xlu0 %1105
      %1107 = vrot.lane.b32.xlu0 %v252, 48
      %v1108 = vpop.permute.xlu0 %1107
      %v1111 = vsel %vm206, %v1103, 0
      %v1114 = vsel %vm206, %v1104, 0
      %v1117 = vsel %vm260, %v1108, 0
      %1119 = vmatprep.subr.bf16.mxu0 0
      %1120 = vmatpush1.bf16.msra.mxu0 %v1106
      %1121 = vmatprep.subr.bf16.mxu0 0
      %1122 = vmatpush1.bf16.msra.mxu0 %v1117
      %1123 = vmatprep.subr.bf16.mxu0 0
      %1124 = vmatpush1.bf16.msra.mxu0 0
      %1125 = vmatprep.subr.bf16.mxu0 0
      %1126 = vmatpush1.bf16.msra.mxu0 0
      %1127 = vmatprep.subr.bf16.mxu0 0
      %1128 = vmatpush1.bf16.msra.mxu0 0
      %1129 = vmatprep.subr.bf16.mxu0 0
      %1130 = vmatpush1.bf16.msra.mxu0 0
      %1131 = vmatprep.subr.bf16.mxu0 0
      %1132 = vmatpush1.bf16.msra.mxu0 0
      %1133 = vmatprep.subr.bf16.mxu0 0
      %1134 = vmatpush1.bf16.msra.mxu0 0
      %1135 = vmatprep.subr.bf16.mxu0 0
      %1136 = vmatpush1.bf16.msra.mxu0 0
      %1137 = vmatprep.subr.bf16.mxu0 0
      %1138 = vmatpush1.bf16.msra.mxu0 0
      %1139 = vmatprep.subr.bf16.mxu0 0
      %1140 = vmatpush1.bf16.msra.mxu0 0
      %1141 = vmatprep.subr.bf16.mxu0 0
      %1142 = vmatpush1.bf16.msra.mxu0 0
      %1143 = vmatprep.subr.bf16.mxu0 0
      %1144 = vmatpush1.bf16.msra.mxu0 0
      %1145 = vmatprep.subr.bf16.mxu0 0
      %1146 = vmatpush1.bf16.msra.mxu0 0
      %1147 = vmatprep.subr.bf16.mxu0 0
      %1148 = vmatpush1.bf16.msra.mxu0 0
      %1149 = vmatprep.subr.bf16.mxu0 0
      %1150 = vmatpush1.bf16.msra.mxu0 0
      %1151 = vmatprep.mubr.bf16.mxu0 0
      %1152 = vmatmul.mubr.bf16.gmra.mrb[0].mxu0 %v1111
      %v1153 = vpop.f32.mrb[0].mxu0
      %v1154 = vadd.f32 0.0, %v1153
      %v1155 = vpop.f32.mrb[0].mxu0
      %v1156 = vpop.f32.mrb[0].mxu0
      %v1157 = vadd.f32 0.0, %v1156
      %v1158 = vpop.f32.mrb[0].mxu0
      %1159 = vmatprep.mubr.bf16.mxu0 0
      %1160 = vmatmul.mubr.bf16.gmra.mrb[0].mxu0 %v1114
      %v1161 = vpop.f32.mrb[0].mxu0
      %v1162 = vadd.f32 0.0, %v1161
      %v1163 = vpop.f32.mrb[0].mxu0
      %v1164 = vpop.f32.mrb[0].mxu0
      %v1165 = vpop.f32.mrb[0].mxu0
      %1166 = vdwg.mxu0
      %1167 = vrot.lane.b32.xlu0 %v132, 32
      %v1168 = vpop.permute.xlu0 %1167
      %1169 = vrot.lane.b32.xlu0 %v133, 32
      %v1170 = vpop.permute.xlu0 %1169
      %1171 = vrot.lane.b32.xlu0 %v137, 32
      %v1172 = vpop.permute.xlu0 %1171
      %1173 = vrot.lane.b32.xlu0 %v138, 32
      %v1174 = vpop.permute.xlu0 %1173
      %v1176 = vsel %vm139, %v1168, 0
      %v1179 = vsel %vm139, %v1170, 0
      %v1182 = vsel %vm139, %v1172, 0
      %v1185 = vsel %vm139, %v1174, 0
      %1187 = vmatprep.subr.bf16.mxu0 0
      %1188 = vmatpush1.bf16.xpose.msra.mxu0 %v1182
      %1189 = vmatprep.subr.bf16.mxu0 0
      %1190 = vmatpush1.bf16.xpose.msra.mxu0 %v1185
      %1191 = vmatprep.subr.bf16.mxu0 0
      %1192 = vmatpush1.bf16.xpose.msra.mxu0 0
      %1193 = vmatprep.subr.bf16.mxu0 0
      %1194 = vmatpush1.bf16.xpose.msra.mxu0 0
      %1195 = vmatprep.subr.bf16.mxu0 0
      %1196 = vmatpush1.bf16.xpose.msra.mxu0 0
      %1197 = vmatprep.subr.bf16.mxu0 0
      %1198 = vmatpush1.bf16.xpose.msra.mxu0 0
      %1199 = vmatprep.subr.bf16.mxu0 0
      %1200 = vmatpush1.bf16.xpose.msra.mxu0 0
      %1201 = vmatprep.subr.bf16.mxu0 0
      %1202 = vmatpush1.bf16.xpose.msra.mxu0 0
      %1203 = vmatprep.subr.bf16.mxu0 0
      %1204 = vmatpush1.bf16.xpose.msra.mxu0 0
      %1205 = vmatprep.subr.bf16.mxu0 0
      %1206 = vmatpush1.bf16.xpose.msra.mxu0 0
      %1207 = vmatprep.subr.bf16.mxu0 0
      %1208 = vmatpush1.bf16.xpose.msra.mxu0 0
      %1209 = vmatprep.subr.bf16.mxu0 0
      %1210 = vmatpush1.bf16.xpose.msra.mxu0 0
      %1211 = vmatprep.subr.bf16.mxu0 0
      %1212 = vmatpush1.bf16.xpose.msra.mxu0 0
      %1213 = vmatprep.subr.bf16.mxu0 0
      %1214 = vmatpush1.bf16.xpose.msra.mxu0 0
      %1215 = vmatprep.subr.bf16.mxu0 0
      %1216 = vmatpush1.bf16.xpose.msra.mxu0 0
      %1217 = vmatprep.subr.bf16.mxu0 0
      %1218 = vmatpush1.bf16.xpose.msra.mxu0 0
      %1219 = vmatprep.mubr.bf16.mxu0 0
      %1220 = vmatmul.mubr.bf16.gmra.mrb[0].mxu0 %v1176
      %v1221 = vpop.f32.mrb[0].mxu0
      %v1222 = vadd.f32 0.0, %v1221
      %v1223 = vpop.f32.mrb[0].mxu0
      %v1224 = vpop.f32.mrb[0].mxu0
      %v1225 = vadd.f32 0.0, %v1224
      %v1226 = vpop.f32.mrb[0].mxu0
      %1227 = vmatprep.mubr.bf16.mxu0 0
      %1228 = vmatmul.mubr.bf16.gmra.mrb[0].mxu0 %v1179
      %v1229 = vpop.f32.mrb[0].mxu0
      %v1230 = vadd.f32 0.0, %v1229
      %v1231 = vpop.f32.mrb[0].mxu0
      %v1232 = vpop.f32.mrb[0].mxu0
      %v1233 = vpop.f32.mrb[0].mxu0
      %1234 = vdwg.mxu0
      %v1235 = vsel %vm202, %v1222, -1e+30
      %v1236 = vsel %vm202, %v1225, -1e+30
      %v1237 = vsel %vm202, %v1230, -1e+30
      %v1238 = vsel %vm206, %v1235, -inf
      %1239 = vmax.xlane.f32.xlu0 %v1238
      %v1240 = vpop.xlane.xlu0 %1239
      %v1241 = vsel %vm206, %v1236, -inf
      %1242 = vmax.xlane.f32.xlu0 %v1241
      %v1243 = vpop.xlane.xlu0 %1242
      %v1244 = vsel %vm206, %v1237, -inf
      %1245 = vmax.xlane.f32.xlu0 %v1244
      %v1246 = vpop.xlane.xlu0 %1245
      %v1247 = vsub.f32 %v1235, %v1240
      %v1248 = vsub.f32 %v1236, %v1243
      %v1249 = vsub.f32 %v1237, %v1246
      %v1250 = vmul.f32 %v1247, 1.442695
      %v1251 = vpow.pop %v1250
      %v1252 = vmul.f32 %v1248, 1.442695
      %v1253 = vpow.pop %v1252
      %v1254 = vmul.f32 %v1249, 1.442695
      %v1255 = vpow.pop %v1254
      %v1256 = vsel %vm206, %v1251, 0.0
      %1257 = vadd.xlane.f32.xlu0 %v1256
      %v1258 = vpop.xlane.xlu0 %1257
      %v1259 = vsel %vm206, %v1253, 0.0
      %1260 = vadd.xlane.f32.xlu0 %v1259
      %v1261 = vpop.xlane.xlu0 %1260
      %v1262 = vsel %vm206, %v1255, 0.0
      %1263 = vadd.xlane.f32.xlu0 %v1262
      %v1264 = vpop.xlane.xlu0 %1263
      %v1265 = vmul.f32 %v1258, 11.313708
      %v1266 = vmul.f32 %v1261, 11.313708
      %v1267 = vmul.f32 %v1264, 11.313708
      %v1268 = vrcp.pop %v1265
      %v1269 = vmul.f32 %v1251, %v1268
      %v1270 = vrcp.pop %v1266
      %v1271 = vmul.f32 %v1253, %v1270
      %v1272 = vrcp.pop %v1267
      %v1273 = vmul.f32 %v1255, %v1272
      %v1274 = vpack.c.bf16 %v1271, %v1269
      %v1275 = vpack.c.bf16 %v1273, %v1273
      %1276 = vrot.lane.b32.xlu0 %v251, 32
      %v1277 = vpop.permute.xlu0 %1276
      %1278 = vrot.lane.b32.xlu0 %v252, 32
      %v1279 = vpop.permute.xlu0 %1278
      %v1282 = vsel %vm206, %v1274, 0
      %v1285 = vsel %vm206, %v1275, 0
      %v1288 = vsel %vm260, %v1279, 0
      %1290 = vmatprep.subr.bf16.mxu0 0
      %1291 = vmatpush1.bf16.msra.mxu0 %v1277
      %1292 = vmatprep.subr.bf16.mxu0 0
      %1293 = vmatpush1.bf16.msra.mxu0 %v1288
      %1294 = vmatprep.subr.bf16.mxu0 0
      %1295 = vmatpush1.bf16.msra.mxu0 0
      %1296 = vmatprep.subr.bf16.mxu0 0
      %1297 = vmatpush1.bf16.msra.mxu0 0
      %1298 = vmatprep.subr.bf16.mxu0 0
      %1299 = vmatpush1.bf16.msra.mxu0 0
      %1300 = vmatprep.subr.bf16.mxu0 0
      %1301 = vmatpush1.bf16.msra.mxu0 0
      %1302 = vmatprep.subr.bf16.mxu0 0
      %1303 = vmatpush1.bf16.msra.mxu0 0
      %1304 = vmatprep.subr.bf16.mxu0 0
      %1305 = vmatpush1.bf16.msra.mxu0 0
      %1306 = vmatprep.subr.bf16.mxu0 0
      %1307 = vmatpush1.bf16.msra.mxu0 0
      %1308 = vmatprep.subr.bf16.mxu0 0
      %1309 = vmatpush1.bf16.msra.mxu0 0
      %1310 = vmatprep.subr.bf16.mxu0 0
      %1311 = vmatpush1.bf16.msra.mxu0 0
      %1312 = vmatprep.subr.bf16.mxu0 0
      %1313 = vmatpush1.bf16.msra.mxu0 0
      %1314 = vmatprep.subr.bf16.mxu0 0
      %1315 = vmatpush1.bf16.msra.mxu0 0
      %1316 = vmatprep.subr.bf16.mxu0 0
      %1317 = vmatpush1.bf16.msra.mxu0 0
      %1318 = vmatprep.subr.bf16.mxu0 0
      %1319 = vmatpush1.bf16.msra.mxu0 0
      %1320 = vmatprep.subr.bf16.mxu0 0
      %1321 = vmatpush1.bf16.msra.mxu0 0
      %1322 = vmatprep.mubr.bf16.mxu0 0
      %1323 = vmatmul.mubr.bf16.gmra.mrb[0].mxu0 %v1282
      %v1324 = vpop.f32.mrb[0].mxu0
      %v1325 = vadd.f32 0.0, %v1324
      %v1326 = vpop.f32.mrb[0].mxu0
      %v1327 = vpop.f32.mrb[0].mxu0
      %v1328 = vadd.f32 0.0, %v1327
      %v1329 = vpop.f32.mrb[0].mxu0
      %1330 = vmatprep.mubr.bf16.mxu0 0
      %1331 = vmatmul.mubr.bf16.gmra.mrb[0].mxu0 %v1285
      %v1332 = vpop.f32.mrb[0].mxu0
      %v1333 = vadd.f32 0.0, %v1332
      %v1334 = vpop.f32.mrb[0].mxu0
      %v1335 = vpop.f32.mrb[0].mxu0
      %v1336 = vpop.f32.mrb[0].mxu0
      %1337 = vdwg.mxu0
      %1338 = vrot.lane.b32.xlu0 %v132, 16
      %v1339 = vpop.permute.xlu0 %1338
      %1340 = vrot.lane.b32.xlu0 %v133, 16
      %v1341 = vpop.permute.xlu0 %1340
      %1342 = vrot.lane.b32.xlu0 %v137, 16
      %v1343 = vpop.permute.xlu0 %1342
      %1344 = vrot.lane.b32.xlu0 %v138, 16
      %v1345 = vpop.permute.xlu0 %1344
      %v1347 = vsel %vm139, %v1339, 0
      %v1350 = vsel %vm139, %v1341, 0
      %v1353 = vsel %vm139, %v1343, 0
      %v1356 = vsel %vm139, %v1345, 0
      %1358 = vmatprep.subr.bf16.mxu0 0
      %1359 = vmatpush1.bf16.xpose.msra.mxu0 %v1353
      %1360 = vmatprep.subr.bf16.mxu0 0
      %1361 = vmatpush1.bf16.xpose.msra.mxu0 %v1356
      %1362 = vmatprep.subr.bf16.mxu0 0
      %1363 = vmatpush1.bf16.xpose.msra.mxu0 0
      %1364 = vmatprep.subr.bf16.mxu0 0
      %1365 = vmatpush1.bf16.xpose.msra.mxu0 0
      %1366 = vmatprep.subr.bf16.mxu0 0
      %1367 = vmatpush1.bf16.xpose.msra.mxu0 0
      %1368 = vmatprep.subr.bf16.mxu0 0
      %1369 = vmatpush1.bf16.xpose.msra.mxu0 0
      %1370 = vmatprep.subr.bf16.mxu0 0
      %1371 = vmatpush1.bf16.xpose.msra.mxu0 0
      %1372 = vmatprep.subr.bf16.mxu0 0
      %1373 = vmatpush1.bf16.xpose.msra.mxu0 0
      %1374 = vmatprep.subr.bf16.mxu0 0
      %1375 = vmatpush1.bf16.xpose.msra.mxu0 0
      %1376 = vmatprep.subr.bf16.mxu0 0
      %1377 = vmatpush1.bf16.xpose.msra.mxu0 0
      %1378 = vmatprep.subr.bf16.mxu0 0
      %1379 = vmatpush1.bf16.xpose.msra.mxu0 0
      %1380 = vmatprep.subr.bf16.mxu0 0
      %1381 = vmatpush1.bf16.xpose.msra.mxu0 0
      %1382 = vmatprep.subr.bf16.mxu0 0
      %1383 = vmatpush1.bf16.xpose.msra.mxu0 0
      %1384 = vmatprep.subr.bf16.mxu0 0
      %1385 = vmatpush1.bf16.xpose.msra.mxu0 0
      %1386 = vmatprep.subr.bf16.mxu0 0
      %1387 = vmatpush1.bf16.xpose.msra.mxu0 0
      %1388 = vmatprep.subr.bf16.mxu0 0
      %1389 = vmatpush1.bf16.xpose.msra.mxu0 0
      %1390 = vmatprep.mubr.bf16.mxu0 0
      %1391 = vmatmul.mubr.bf16.gmra.mrb[0].mxu0 %v1347
      %v1392 = vpop.f32.mrb[0].mxu0
      %v1393 = vadd.f32 0.0, %v1392
      %v1394 = vpop.f32.mrb[0].mxu0
      %v1395 = vpop.f32.mrb[0].mxu0
      %v1396 = vadd.f32 0.0, %v1395
      %v1397 = vpop.f32.mrb[0].mxu0
      %1398 = vmatprep.mubr.bf16.mxu0 0
      %1399 = vmatmul.mubr.bf16.gmra.mrb[0].mxu0 %v1350
      %v1400 = vpop.f32.mrb[0].mxu0
      %v1401 = vadd.f32 0.0, %v1400
      %v1402 = vpop.f32.mrb[0].mxu0
      %v1403 = vpop.f32.mrb[0].mxu0
      %v1404 = vpop.f32.mrb[0].mxu0
      %1405 = vdwg.mxu0
      %v1406 = vsel %vm202, %v1393, -1e+30
      %v1407 = vsel %vm202, %v1396, -1e+30
      %v1408 = vsel %vm202, %v1401, -1e+30
      %v1409 = vsel %vm206, %v1406, -inf
      %1410 = vmax.xlane.f32.xlu0 %v1409
      %v1411 = vpop.xlane.xlu0 %1410
      %v1412 = vsel %vm206, %v1407, -inf
      %1413 = vmax.xlane.f32.xlu0 %v1412
      %v1414 = vpop.xlane.xlu0 %1413
      %v1415 = vsel %vm206, %v1408, -inf
      %1416 = vmax.xlane.f32.xlu0 %v1415
      %v1417 = vpop.xlane.xlu0 %1416
      %v1418 = vsub.f32 %v1406, %v1411
      %v1419 = vsub.f32 %v1407, %v1414
      %v1420 = vsub.f32 %v1408, %v1417
      %v1421 = vmul.f32 %v1418, 1.442695
      %v1422 = vpow.pop %v1421
      %v1423 = vmul.f32 %v1419, 1.442695
      %v1424 = vpow.pop %v1423
      %v1425 = vmul.f32 %v1420, 1.442695
      %v1426 = vpow.pop %v1425
      %v1427 = vsel %vm206, %v1422, 0.0
      %1428 = vadd.xlane.f32.xlu0 %v1427
      %v1429 = vpop.xlane.xlu0 %1428
      %v1430 = vsel %vm206, %v1424, 0.0
      %1431 = vadd.xlane.f32.xlu0 %v1430
      %v1432 = vpop.xlane.xlu0 %1431
      %v1433 = vsel %vm206, %v1426, 0.0
      %1434 = vadd.xlane.f32.xlu0 %v1433
      %v1435 = vpop.xlane.xlu0 %1434
      %v1436 = vmul.f32 %v1429, 11.313708
      %v1437 = vmul.f32 %v1432, 11.313708
      %v1438 = vmul.f32 %v1435, 11.313708
      %v1439 = vrcp.pop %v1436
      %v1440 = vmul.f32 %v1422, %v1439
      %v1441 = vrcp.pop %v1437
      %v1442 = vmul.f32 %v1424, %v1441
      %v1443 = vrcp.pop %v1438
      %v1444 = vmul.f32 %v1426, %v1443
      %v1445 = vpack.c.bf16 %v1442, %v1440
      %v1446 = vpack.c.bf16 %v1444, %v1444
      %1447 = vrot.lane.b32.xlu0 %v251, 16
      %v1448 = vpop.permute.xlu0 %1447
      %1449 = vrot.lane.b32.xlu0 %v252, 16
      %v1450 = vpop.permute.xlu0 %1449
      %v1453 = vsel %vm206, %v1445, 0
      %v1456 = vsel %vm206, %v1446, 0
      %v1459 = vsel %vm260, %v1450, 0
      %1461 = vmatprep.subr.bf16.mxu0 0
      %1462 = vmatpush1.bf16.msra.mxu0 %v1448
      %1463 = vmatprep.subr.bf16.mxu0 0
      %1464 = vmatpush1.bf16.msra.mxu0 %v1459
      %1465 = vmatprep.subr.bf16.mxu0 0
      %1466 = vmatpush1.bf16.msra.mxu0 0
      %1467 = vmatprep.subr.bf16.mxu0 0
      %1468 = vmatpush1.bf16.msra.mxu0 0
      %1469 = vmatprep.subr.bf16.mxu0 0
      %1470 = vmatpush1.bf16.msra.mxu0 0
      %1471 = vmatprep.subr.bf16.mxu0 0
      %1472 = vmatpush1.bf16.msra.mxu0 0
      %1473 = vmatprep.subr.bf16.mxu0 0
      %1474 = vmatpush1.bf16.msra.mxu0 0
      %1475 = vmatprep.subr.bf16.mxu0 0
      %1476 = vmatpush1.bf16.msra.mxu0 0
      %1477 = vmatprep.subr.bf16.mxu0 0
      %1478 = vmatpush1.bf16.msra.mxu0 0
      %1479 = vmatprep.subr.bf16.mxu0 0
      %1480 = vmatpush1.bf16.msra.mxu0 0
      %1481 = vmatprep.subr.bf16.mxu0 0
      %1482 = vmatpush1.bf16.msra.mxu0 0
      %1483 = vmatprep.subr.bf16.mxu0 0
      %1484 = vmatpush1.bf16.msra.mxu0 0
      %1485 = vmatprep.subr.bf16.mxu0 0
      %1486 = vmatpush1.bf16.msra.mxu0 0
      %1487 = vmatprep.subr.bf16.mxu0 0
      %1488 = vmatpush1.bf16.msra.mxu0 0
      %1489 = vmatprep.subr.bf16.mxu0 0
      %1490 = vmatpush1.bf16.msra.mxu0 0
      %1491 = vmatprep.subr.bf16.mxu0 0
      %1492 = vmatpush1.bf16.msra.mxu0 0
      %1493 = vmatprep.mubr.bf16.mxu0 0
      %1494 = vmatmul.mubr.bf16.gmra.mrb[0].mxu0 %v1453
      %v1495 = vpop.f32.mrb[0].mxu0
      %v1496 = vadd.f32 0.0, %v1495
      %v1497 = vpop.f32.mrb[0].mxu0
      %v1498 = vpop.f32.mrb[0].mxu0
      %v1499 = vadd.f32 0.0, %v1498
      %v1500 = vpop.f32.mrb[0].mxu0
      %1501 = vmatprep.mubr.bf16.mxu0 0
      %1502 = vmatmul.mubr.bf16.gmra.mrb[0].mxu0 %v1456
      %v1503 = vpop.f32.mrb[0].mxu0
      %v1504 = vadd.f32 0.0, %v1503
      %v1505 = vpop.f32.mrb[0].mxu0
      %v1506 = vpop.f32.mrb[0].mxu0
      %v1507 = vpop.f32.mrb[0].mxu0
      %1508 = vdwg.mxu0
      %1512 = vrot.lane.b32.xlu0 %v470, 16
      %v1513 = vpop.permute.xlu0 %1512
      %1514 = vrot.lane.b32.xlu0 %v473, 16
      %v1515 = vpop.permute.xlu0 %1514
      %1516 = vrot.lane.b32.xlu0 %v478, 16
      %v1517 = vpop.permute.xlu0 %1516
      %1524 = vrot.lane.b32.xlu0 %v641, 32
      %v1525 = vpop.permute.xlu0 %1524
      %1526 = vrot.lane.b32.xlu0 %v644, 32
      %v1527 = vpop.permute.xlu0 %1526
      %1528 = vrot.lane.b32.xlu0 %v649, 32
      %v1529 = vpop.permute.xlu0 %1528
      %1536 = vrot.lane.b32.xlu0 %v812, 48
      %v1537 = vpop.permute.xlu0 %1536
      %1538 = vrot.lane.b32.xlu0 %v815, 48
      %v1539 = vpop.permute.xlu0 %1538
      %1540 = vrot.lane.b32.xlu0 %v820, 48
      %v1541 = vpop.permute.xlu0 %1540
      %1548 = vrot.lane.b32.xlu0 %v983, 64
      %v1549 = vpop.permute.xlu0 %1548
      %1550 = vrot.lane.b32.xlu0 %v986, 64
      %v1551 = vpop.permute.xlu0 %1550
      %1552 = vrot.lane.b32.xlu0 %v991, 64
      %v1553 = vpop.permute.xlu0 %1552
      %1560 = vrot.lane.b32.xlu0 %v1154, 80
      %v1561 = vpop.permute.xlu0 %1560
      %1562 = vrot.lane.b32.xlu0 %v1157, 80
      %v1563 = vpop.permute.xlu0 %1562
      %1564 = vrot.lane.b32.xlu0 %v1162, 80
      %v1565 = vpop.permute.xlu0 %1564
      %1572 = vrot.lane.b32.xlu0 %v1325, 96
      %v1573 = vpop.permute.xlu0 %1572
      %1574 = vrot.lane.b32.xlu0 %v1328, 96
      %v1575 = vpop.permute.xlu0 %1574
      %1576 = vrot.lane.b32.xlu0 %v1333, 96
      %v1577 = vpop.permute.xlu0 %1576
      %1584 = vrot.lane.b32.xlu0 %v1496, 112
      %v1585 = vpop.permute.xlu0 %1584
      %1586 = vrot.lane.b32.xlu0 %v1499, 112
      %v1587 = vpop.permute.xlu0 %1586
      %1588 = vrot.lane.b32.xlu0 %v1504, 112
      %v1589 = vpop.permute.xlu0 %1588
      %v1593 = vsel %vm139, %v299, %v1513
      %v1594 = vsel %vm139, %v302, %v1515
      %v1595 = vsel %vm139, %v307, %v1517
      %vm1596 = vcmask 261120
      %v1597 = vsel %vm1596, %v1593, %v1525
      %v1598 = vsel %vm1596, %v1594, %v1527
      %v1599 = vsel %vm1596, %v1595, %v1529
      %vm1600 = vcmask 392192
      %v1601 = vsel %vm1600, %v1597, %v1537
      %v1602 = vsel %vm1600, %v1598, %v1539
      %v1603 = vsel %vm1600, %v1599, %v1541
      %vm1604 = vcmask 523264
      %v1605 = vsel %vm1604, %v1601, %v1549
      %v1606 = vsel %vm1604, %v1602, %v1551
      %v1607 = vsel %vm1604, %v1603, %v1553
      %vm1608 = vcmask 654336
      %v1609 = vsel %vm1608, %v1605, %v1561
      %v1610 = vsel %vm1608, %v1606, %v1563
      %v1611 = vsel %vm1608, %v1607, %v1565
      %vm1612 = vcmask 785408
      %v1613 = vsel %vm1612, %v1609, %v1573
      %v1614 = vsel %vm1612, %v1610, %v1575
      %v1615 = vsel %vm1612, %v1611, %v1577
      %vm1616 = vcmask 916480
      %v1617 = vsel %vm1616, %v1613, %v1585
      %v1618 = vsel %vm1616, %v1614, %v1587
      %v1619 = vsel %vm1616, %v1615, %v1589
      %v1620 = vpack.c.bf16 %v1618, %v1617
      %v1621 = vpack.c.bf16 %v1619, %v1619
      %v1624 = vunpack.c.l.b16 %v1620
      %v1625 = vunpack.c.h.b16 %v1620
      %v1626 = vunpack.c.l.b16 %v1621
      %v1627 = vpack.c.b16 %v1624, %v1624
      %v1628 = vpack.c.b16 %v1625, %v1625
      %v1629 = vpack.c.b16 %v1626, %v1626
      %1633 = vst [vmem:[%s116] sm:$0xf] %v1627
      %1634 = vst [vmem:[%s116 + $0x4] sm:$0xf] %v1628
      %1635 = vst [vmem:[%s116 + $0x8] sm:$0xf] %v1629
      %p1636 = scmp.lt.s32.totalorder %s12, 1
      %s1637 = scalar_select %p1636, %s12, 1
      %s1638 = smul.addr %s1637, 3
      %s1639 = smul.addr %s1638, 4
      %s1640 = scalar_lea.vmem %s1, %s1639
      // Predicated region
      $region25: #{vit_forward.14} parent=23 // pred_check
        %p1641 = pneg %p56
      $region26: #{vit_forward.14} parent=23 // pred_check_branch
        %1643 = sbr.rel (%p1641) target = $region28
      $region27: #{vit_forward.14} parent=23 // pred_region
        _
      $region28: #{vit_forward.14} parent=23 // pred_fallthru
        _
    $region24: #{vit_forward.14} parent=5 // pred_fallthru
      _
    %p1644 = scmp.le.s32.totalorder 2, %s7
    // Predicated region
    $region29: #{vit_forward.14} parent=5 // pred_check
      %p1645 = pneg %p1644
    $region30: #{vit_forward.14} parent=5 // pred_check_branch
      %1647 = sbr.rel (%p1645) target = $region32
    $region31: #{vit_forward.14} parent=5 // pred_region
      %s1648 = ssub.s32 %s7, 2
      // Predicated region
      $region33: #{vit_forward.14} parent=31 // pred_check
        %p1649 = pneg %p62
      $region34: #{vit_forward.14} parent=31 // pred_check_branch
        %1651 = sbr.rel (%p1649) target = $region36
      $region35: #{vit_forward.14} parent=31 // pred_region
        %p1652 = scmp.lt.s32.totalorder %s13, 1
        %s1653 = scalar_select %p1652, %s13, 1
        %s1654 = smul.addr %s1653, 3
        %s1655 = smul.addr %s1654, 4
        %s1656 = scalar_lea.vmem %s1, %s1655
      $region36: #{vit_forward.14} parent=31 // pred_fallthru
        _
    $region32: #{vit_forward.14} parent=5 // pred_fallthru
      _
  $region6: #{vit_forward.14} parent=0 // loop_footer
    %s11 = sadd.s32 1, %s7
  $region7: #{vit_forward.14} parent=0 // loop_footer_branch
    %6 = sbr.rel target = $region3
  $region8: #{vit_forward.14} parent=0 // loop_exit
    _

// kernel: vit_forward.16
$region0: #{vit_forward.16}
  #allocation0 [shape = 'u32[]', space=smem, size = 0x4, offset = 0x4, fixed_abs, tag = 'smem constant byte address 0x4 - core index']
  #allocation1 [shape = 'u32[144,128]{1,0:T(1,128)}', space=vmem, size = 0x12000, scoped, tag = 'internal scratch']
  %s0 = inlined_call_operand.vmem [shape: f32[48,128], index: 0, kind: input, shape index: {}]
  %s1 = inlined_call_operand.vmem [shape: bf16[128,512], index: 1, kind: input, shape index: {}]
  %s2 = inlined_call_operand.vmem [shape: f32[1,512], index: 2, kind: input, shape index: {}]
  %s3 = inlined_call_operand.vmem [shape: f32[1,128], index: 3, kind: input, shape index: {}]
  %s4 = inlined_call_operand.vmem [shape: f32[1,128], index: 4, kind: input, shape index: {}]
  %s5 = inlined_call_operand.vmem [shape: bf16[48,512], index: 5, kind: output, shape index: {}]
  %s6 = sld [smem:[#allocation0]]
  $region53: #{vit_forward.16} parent=0
    _
  %s8 = ssub.s32 1, %s6
  %s9 = scalar_select 0, %s8, %s6
  loop: start=0, step=1, limit=4
  $region2: #{vit_forward.16} parent=0 // loop_pre_header
    _
  $region3: #{vit_forward.16} parent=0 // loop_header
    %s11 = sphi 0, %s15
    %p12 = scmp.ge.s32.totalorder %s11, 4
    %s21 = sphi 0, %s23
    %s24 = sphi 0, %s21
    %s25 = sphi 0, %s24
    %s41 = sphi 0, %s25
    %s45 = sphi 0, %s45
    %s47 = sphi 0, %s45
    %s48 = sphi 0, %s47
    %s62 = sphi 0, %s48
    %s66 = sphi 0, %s66
    %s68 = sphi 0, %s66
    %s69 = sphi 0, %s68
    %s83 = sphi 0, %s69
    %s87 = sphi 0, %s87
    %s89 = sphi 0, %s87
    %s90 = sphi 0, %s89
    %s104 = sphi 0, %s90
    %s108 = sphi 0, %s108
    %s110 = sphi 0, %s108
    %s111 = sphi 0, %s110
    %s125 = sphi 0, %s111
    %s131 = sphi 0, %s133
    %s134 = sphi 0, %s131
    %s135 = sphi 0, %s134
    %s151 = sphi 0, %s135
  $region4: #{vit_forward.16} parent=0 // loop_header_branch
    %14 = sbr.rel (%p12) target = $region8
  $region5: #{vit_forward.16} parent=0 // loop_body
    %s16 = ssub.s32 %s11, 1
    %s17 = ssub.s32 %s11, 2
    %s18 = sadd.s32 %s11, 1
    %s19 = ssub.s32 %s11, %s18
    %p20 = scmp.eq.s32.totalorder %s19, 0
    %s22 = sadd.s32 %s21, 1
    %s23 = scalar_select %p20, %s21, %s22
    %p26 = pneg %p20
    %p27 = scmp.eq.s32.totalorder %s11, 1
    %p28 = por %p26, %p27
    %p29 = scmp.ne.s32.totalorder %s21, %s24
    %p30 = scmp.eq.s32.totalorder %s11, 0
    %p31 = por %p29, %p30
    %p32 = scmp.ne.s32.totalorder %s21, %s24
    %p33 = scmp.eq.s32.totalorder %s16, 1
    %p34 = por %p32, %p33
    %p35 = scmp.ne.s32.totalorder %s24, %s25
    %p36 = scmp.eq.s32.totalorder %s16, 0
    %p37 = por %p35, %p36
    %p38 = scmp.ne.s32.totalorder %s24, %s25
    %p39 = scmp.eq.s32.totalorder %s17, 1
    %p40 = por %p38, %p39
    %p42 = scmp.ne.s32.totalorder %s25, %s41
    %p43 = scmp.eq.s32.totalorder %s17, 0
    %p44 = por %p42, %p43
    %s46 = sadd.s32 %s45, 1
    %p49 = scmp.eq.s32.totalorder %s11, 1
    %p50 = scmp.ne.s32.totalorder %s45, %s47
    %p51 = scmp.eq.s32.totalorder %s11, 0
    %p52 = por %p50, %p51
    %p53 = scmp.ne.s32.totalorder %s45, %s47
    %p54 = scmp.eq.s32.totalorder %s16, 1
    %p55 = por %p53, %p54
    %p56 = scmp.ne.s32.totalorder %s47, %s48
    %p57 = scmp.eq.s32.totalorder %s16, 0
    %p58 = por %p56, %p57
    %p59 = scmp.ne.s32.totalorder %s47, %s48
    %p60 = scmp.eq.s32.totalorder %s17, 1
    %p61 = por %p59, %p60
    %p63 = scmp.ne.s32.totalorder %s48, %s62
    %p64 = scmp.eq.s32.totalorder %s17, 0
    %p65 = por %p63, %p64
    %s67 = sadd.s32 %s66, 1
    %p70 = scmp.eq.s32.totalorder %s11, 1
    %p71 = scmp.ne.s32.totalorder %s66, %s68
    %p72 = scmp.eq.s32.totalorder %s11, 0
    %p73 = por %p71, %p72
    %p74 = scmp.ne.s32.totalorder %s66, %s68
    %p75 = scmp.eq.s32.totalorder %s16, 1
    %p76 = por %p74, %p75
    %p77 = scmp.ne.s32.totalorder %s68, %s69
    %p78 = scmp.eq.s32.totalorder %s16, 0
    %p79 = por %p77, %p78
    %p80 = scmp.ne.s32.totalorder %s68, %s69
    %p81 = scmp.eq.s32.totalorder %s17, 1
    %p82 = por %p80, %p81
    %p84 = scmp.ne.s32.totalorder %s69, %s83
    %p85 = scmp.eq.s32.totalorder %s17, 0
    %p86 = por %p84, %p85
    %s88 = sadd.s32 %s87, 1
    %p91 = scmp.eq.s32.totalorder %s11, 1
    %p92 = scmp.ne.s32.totalorder %s87, %s89
    %p93 = scmp.eq.s32.totalorder %s11, 0
    %p94 = por %p92, %p93
    %p95 = scmp.ne.s32.totalorder %s87, %s89
    %p96 = scmp.eq.s32.totalorder %s16, 1
    %p97 = por %p95, %p96
    %p98 = scmp.ne.s32.totalorder %s89, %s90
    %p99 = scmp.eq.s32.totalorder %s16, 0
    %p100 = por %p98, %p99
    %p101 = scmp.ne.s32.totalorder %s89, %s90
    %p102 = scmp.eq.s32.totalorder %s17, 1
    %p103 = por %p101, %p102
    %p105 = scmp.ne.s32.totalorder %s90, %s104
    %p106 = scmp.eq.s32.totalorder %s17, 0
    %p107 = por %p105, %p106
    %s109 = sadd.s32 %s108, 1
    %p112 = scmp.eq.s32.totalorder %s11, 1
    %p113 = scmp.ne.s32.totalorder %s108, %s110
    %p114 = scmp.eq.s32.totalorder %s11, 0
    %p115 = por %p113, %p114
    %p116 = scmp.ne.s32.totalorder %s108, %s110
    %p117 = scmp.eq.s32.totalorder %s16, 1
    %p118 = por %p116, %p117
    %p119 = scmp.ne.s32.totalorder %s110, %s111
    %p120 = scmp.eq.s32.totalorder %s16, 0
    %p121 = por %p119, %p120
    %p122 = scmp.ne.s32.totalorder %s110, %s111
    %p123 = scmp.eq.s32.totalorder %s17, 1
    %p124 = por %p122, %p123
    %p126 = scmp.ne.s32.totalorder %s111, %s125
    %p127 = scmp.eq.s32.totalorder %s17, 0
    %p128 = por %p126, %p127
    %s129 = ssub.s32 %s11, %s18
    %p130 = scmp.eq.s32.totalorder %s129, 0
    %s132 = sadd.s32 %s131, 1
    %s133 = scalar_select %p130, %s131, %s132
    %p136 = pneg %p130
    %p137 = scmp.eq.s32.totalorder %s11, 1
    %p138 = por %p136, %p137
    %p139 = scmp.ne.s32.totalorder %s131, %s134
    %p140 = scmp.eq.s32.totalorder %s11, 0
    %p141 = por %p139, %p140
    %p142 = scmp.ne.s32.totalorder %s131, %s134
    %p143 = scmp.eq.s32.totalorder %s16, 1
    %p144 = por %p142, %p143
    %p145 = scmp.ne.s32.totalorder %s134, %s135
    %p146 = scmp.eq.s32.totalorder %s16, 0
    %p147 = por %p145, %p146
    %p148 = scmp.ne.s32.totalorder %s134, %s135
    %p149 = scmp.eq.s32.totalorder %s17, 1
    %p150 = por %p148, %p149
    %p152 = scmp.ne.s32.totalorder %s135, %s151
    %p153 = scmp.eq.s32.totalorder %s17, 0
    %p154 = por %p152, %p153
    %p155 = scmp.le.s32.totalorder 1, %s11
    %p156 = scmp.lt.s32.totalorder %s11, 3
    %p157 = pnand %p155, %p156
    %p158 = pneg %p157
    // Predicated region
    $region9: #{vit_forward.16} parent=5 // pred_check
      _
    $region10: #{vit_forward.16} parent=5 // pred_check_branch
      %160 = sbr.rel (%p157) target = $region12
    $region11: #{vit_forward.16} parent=5 // pred_region
      %s161 = ssub.s32 %s11, 1
      // Predicated region
      $region13: #{vit_forward.16} parent=11 // pred_check
        %p162 = pneg %p58
      $region14: #{vit_forward.16} parent=11 // pred_check_branch
        %164 = sbr.rel (%p162) target = $region16
      $region15: #{vit_forward.16} parent=11 // pred_region
        _
      $region16: #{vit_forward.16} parent=11 // pred_fallthru
        _
      // Predicated region
      $region17: #{vit_forward.16} parent=11 // pred_check
        %p165 = pneg %p79
      $region18: #{vit_forward.16} parent=11 // pred_check_branch
        %167 = sbr.rel (%p165) target = $region20
      $region19: #{vit_forward.16} parent=11 // pred_region
        _
      $region20: #{vit_forward.16} parent=11 // pred_fallthru
        _
      // Predicated region
      $region21: #{vit_forward.16} parent=11 // pred_check
        %p168 = pneg %p100
      $region22: #{vit_forward.16} parent=11 // pred_check_branch
        %170 = sbr.rel (%p168) target = $region24
      $region23: #{vit_forward.16} parent=11 // pred_region
        _
      $region24: #{vit_forward.16} parent=11 // pred_fallthru
        _
      // Predicated region
      $region25: #{vit_forward.16} parent=11 // pred_check
        %p171 = pneg %p121
      $region26: #{vit_forward.16} parent=11 // pred_check_branch
        %173 = sbr.rel (%p171) target = $region28
      $region27: #{vit_forward.16} parent=11 // pred_region
        _
      $region28: #{vit_forward.16} parent=11 // pred_fallthru
        _
    $region12: #{vit_forward.16} parent=5 // pred_fallthru
      _
    %p174 = scmp.lt.s32.totalorder %s11, 2
    // Predicated region
    $region29: #{vit_forward.16} parent=5 // pred_check
      %p175 = pneg %p174
    $region30: #{vit_forward.16} parent=5 // pred_check_branch
      %177 = sbr.rel (%p175) target = $region32
    $region31: #{vit_forward.16} parent=5 // pred_region
      // Predicated region
      $region33: #{vit_forward.16} parent=31 // pred_check
        %p178 = pneg %p31
      $region34: #{vit_forward.16} parent=31 // pred_check_branch
        %180 = sbr.rel (%p178) target = $region36
      $region35: #{vit_forward.16} parent=31 // pred_region
        %s181 = smul.u32 3, %s11
        %p182 = scmp.lt.s32.totalorder %s181, 5
        %s183 = scalar_select %p182, %s181, 5
        %s184 = smul.addr %s183, 8
        %s185 = scalar_lea.vmem %s0, %s184
        %s186 = smul.u32 3, %s11
      $region36: #{vit_forward.16} parent=31 // pred_fallthru
        _
    $region32: #{vit_forward.16} parent=5 // pred_fallthru
      _
    %p187 = scmp.le.s32.totalorder 1, %s11
    %p188 = scmp.lt.s32.totalorder %s11, 3
    %p189 = pnand %p187, %p188
    %p190 = pneg %p189
    // Predicated region
    $region37: #{vit_forward.16} parent=5 // pred_check
      _
    $region38: #{vit_forward.16} parent=5 // pred_check_branch
      %192 = sbr.rel (%p189) target = $region40
    $region39: #{vit_forward.16} parent=5 // pred_region
      %s193 = ssub.s32 %s11, 1
      %s194 = smul.u32 3, %s16
      %p195 = scmp.lt.s32.totalorder %s194, 5
      %s196 = scalar_select %p195, %s194, 5
      %s197 = smul.addr %s196, 8
      %s198 = scalar_lea.vmem %s0, %s197
      %p199 = pneg %p37
      %p200 = pneg %p34
      %p201 = pneg %p58
      %p202 = pneg %p55
      %p203 = pneg %p79
      %p204 = pneg %p76
      %p205 = pneg %p100
      %p206 = pneg %p97
      %p207 = pneg %p121
      %p208 = pneg %p118
      %p209 = pneg %p147
      %p210 = pneg %p144
      %s211 = smul.u32 3, %s16
      %p212 = scmp.lt.s32.totalorder %s211, 5
      %s213 = scalar_select %p212, %s211, 5
      %s214 = smul.addr %s213, 4
      %s215 = smul.addr %s214, 4
      %s216 = scalar_lea.vmem %s5, %s215
      %s217 = smul.u32 3, %s16
      %p218 = scmp.lt.s32.totalorder %s217, 5
      %s219 = scalar_select %p218, %s217, 5
      %s220 = smul.addr %s219, 8
      %s221 = scalar_lea.vmem %s0, %s220
      %s222 = smul.u32 3, %s16
      %s223 = smul.u32 3, %s16
      %p224 = scmp.lt.s32.totalorder %s223, 5
      %s225 = scalar_select %p224, %s223, 5
      %s226 = smul.addr %s225, 4
      %s227 = smul.addr %s226, 4
      %s228 = scalar_lea.vmem %s5, %s227
      %s229 = smul.u32 3, %s16
      %v231 = vld [vmem:[%s221] sm:$0xff]
      %v232 = vld [vmem:[%s221 + $0x8] sm:$0xff]
      %v233 = vld [vmem:[%s221 + $0x10] sm:$0xff]
      %234 = vadd.xlane.f32.xlu0 %v231
      %v235 = vpop.xlane.xlu0 %234
      %236 = vadd.xlane.f32.xlu0 %v232
      %v237 = vpop.xlane.xlu0 %236
      %238 = vadd.xlane.f32.xlu0 %v233
      %v239 = vpop.xlane.xlu0 %238
      %v240 = vrcp.pop 128.0
      %v241 = vmul.f32 %v235, %v240
      %v242 = vmul.f32 %v237, %v240
      %v243 = vmul.f32 %v239, %v240
      %v244 = vsub.f32 %v231, %v241
      %v245 = vsub.f32 %v232, %v242
      %v246 = vsub.f32 %v233, %v243
      %v247 = vmul.f32 %v244, %v244
      %v248 = vmul.f32 %v245, %v245
      %v249 = vmul.f32 %v246, %v246
      %250 = vadd.xlane.f32.xlu0 %v247
      %v251 = vpop.xlane.xlu0 %250
      %252 = vadd.xlane.f32.xlu0 %v248
      %v253 = vpop.xlane.xlu0 %252
      %254 = vadd.xlane.f32.xlu0 %v249
      %v255 = vpop.xlane.xlu0 %254
      %v256 = vmul.f32 %v251, %v240
      %v257 = vmul.f32 %v253, %v240
      %v258 = vmul.f32 %v255, %v240
      %v259 = vadd.f32 %v256, 1e-05
      %v260 = vadd.f32 %v257, 1e-05
      %v261 = vadd.f32 %v258, 1e-05
      %v262 = vrsqrt.pop %v259
      %v263 = vrsqrt.pop %v260
      %v264 = vrsqrt.pop %v261
      %v265 = vmul.f32 %v244, %v262
      %v266 = vmul.f32 %v245, %v263
      %v267 = vmul.f32 %v246, %v264
      %v268 = vld [vmem:[%s3] sm:$0x1]
      %v270 = vlaneseq
      %v271 = vshrl.u32 %v270, 7
      %v272 = vsub.s32 0, %v271
      %v273 = vrot.slane %v268, %v272
      %v275 = vmul.f32 %v265, %v273
      %v276 = vmul.f32 %v266, %v273
      %v277 = vmul.f32 %v267, %v273
      %v278 = vld [vmem:[%s4] sm:$0x1]
      %v280 = vlaneseq
      %v281 = vshrl.u32 %v280, 7
      %v282 = vsub.s32 0, %v281
      %v283 = vrot.slane %v278, %v282
      %v285 = vadd.f32 %v275, %v283
      %v286 = vadd.f32 %v276, %v283
      %v287 = vadd.f32 %v277, %v283
      %v288 = vpack.c.bf16 %v286, %v285
      %v289 = vpack.c.bf16 %v287, %v287
      %v290 = vld [vmem:[%s1] sm:$0xff]
      %v291 = vld [vmem:[%s1 + $0x8] sm:$0xff]
      %v292 = vld [vmem:[%s1 + $0x10] sm:$0xff]
      %v293 = vld [vmem:[%s1 + $0x18] sm:$0xff]
      %v294 = vld [vmem:[%s1 + $0x20] sm:$0xff]
      %v295 = vld [vmem:[%s1 + $0x28] sm:$0xff]
      %v296 = vld [vmem:[%s1 + $0x30] sm:$0xff]
      %v297 = vld [vmem:[%s1 + $0x38] sm:$0xff]
      %v298 = vld [vmem:[%s1 + $0x40] sm:$0xff]
      %v299 = vld [vmem:[%s1 + $0x48] sm:$0xff]
      %v300 = vld [vmem:[%s1 + $0x50] sm:$0xff]
      %v301 = vld [vmem:[%s1 + $0x58] sm:$0xff]
      %v302 = vld [vmem:[%s1 + $0x60] sm:$0xff]
      %v303 = vld [vmem:[%s1 + $0x68] sm:$0xff]
      %v304 = vld [vmem:[%s1 + $0x70] sm:$0xff]
      %v305 = vld [vmem:[%s1 + $0x78] sm:$0xff]
      %v306 = vld [vmem:[%s1 + $0x80] sm:$0xff]
      %v307 = vld [vmem:[%s1 + $0x88] sm:$0xff]
      %v308 = vld [vmem:[%s1 + $0x90] sm:$0xff]
      %v309 = vld [vmem:[%s1 + $0x98] sm:$0xff]
      %v310 = vld [vmem:[%s1 + $0xa0] sm:$0xff]
      %v311 = vld [vmem:[%s1 + $0xa8] sm:$0xff]
      %v312 = vld [vmem:[%s1 + $0xb0] sm:$0xff]
      %v313 = vld [vmem:[%s1 + $0xb8] sm:$0xff]
      %v314 = vld [vmem:[%s1 + $0xc0] sm:$0xff]
      %v315 = vld [vmem:[%s1 + $0xc8] sm:$0xff]
      %v316 = vld [vmem:[%s1 + $0xd0] sm:$0xff]
      %v317 = vld [vmem:[%s1 + $0xd8] sm:$0xff]
      %v318 = vld [vmem:[%s1 + $0xe0] sm:$0xff]
      %v319 = vld [vmem:[%s1 + $0xe8] sm:$0xff]
      %v320 = vld [vmem:[%s1 + $0xf0] sm:$0xff]
      %v321 = vld [vmem:[%s1 + $0xf8] sm:$0xff]
      %v322 = vld [vmem:[%s2] sm:$0xf]
      %v324 = vlaneseq
      %v325 = vshrl.u32 %v324, 7
      %v326 = vsub.s32 0, %v325
      %v327 = vrot.slane %v322, %v326
      %v328 = vlaneseq
      %v329 = vshrl.u32 %v328, 7
      %v330 = vsub.s32 1, %v329
      %v331 = vrot.slane %v322, %v330
      %v332 = vlaneseq
      %v333 = vshrl.u32 %v332, 7
      %v334 = vsub.s32 2, %v333
      %v335 = vrot.slane %v322, %v334
      %v336 = vlaneseq
      %v337 = vshrl.u32 %v336, 7
      %v338 = vsub.s32 3, %v337
      %v339 = vrot.slane %v322, %v338
      %v376 = vunpack.c.l.b16 %v290
      %v377 = vunpack.c.h.b16 %v290
      %v378 = vunpack.c.l.b16 %v291
      %v379 = vunpack.c.h.b16 %v291
      %v380 = vunpack.c.l.b16 %v292
      %v381 = vunpack.c.h.b16 %v292
      %v382 = vunpack.c.l.b16 %v293
      %v383 = vunpack.c.h.b16 %v293
      %v384 = vunpack.c.l.b16 %v294
      %v385 = vunpack.c.h.b16 %v294
      %v386 = vunpack.c.l.b16 %v295
      %v387 = vunpack.c.h.b16 %v295
      %v388 = vunpack.c.l.b16 %v296
      %v389 = vunpack.c.h.b16 %v296
      %v390 = vunpack.c.l.b16 %v297
      %v391 = vunpack.c.h.b16 %v297
      %v392 = vunpack.c.l.b16 %v298
      %v393 = vunpack.c.h.b16 %v298
      %v394 = vunpack.c.l.b16 %v299
      %v395 = vunpack.c.h.b16 %v299
      %v396 = vunpack.c.l.b16 %v300
      %v397 = vunpack.c.h.b16 %v300
      %v398 = vunpack.c.l.b16 %v301
      %v399 = vunpack.c.h.b16 %v301
      %v400 = vunpack.c.l.b16 %v302
      %v401 = vunpack.c.h.b16 %v302
      %v402 = vunpack.c.l.b16 %v303
      %v403 = vunpack.c.h.b16 %v303
      %v404 = vunpack.c.l.b16 %v304
      %v405 = vunpack.c.h.b16 %v304
      %v406 = vunpack.c.l.b16 %v305
      %v407 = vunpack.c.h.b16 %v305
      %v408 = vunpack.c.l.b16 %v306
      %v409 = vunpack.c.h.b16 %v306
      %v410 = vunpack.c.l.b16 %v307
      %v411 = vunpack.c.h.b16 %v307
      %v412 = vunpack.c.l.b16 %v308
      %v413 = vunpack.c.h.b16 %v308
      %v414 = vunpack.c.l.b16 %v309
      %v415 = vunpack.c.h.b16 %v309
      %v416 = vunpack.c.l.b16 %v310
      %v417 = vunpack.c.h.b16 %v310
      %v418 = vunpack.c.l.b16 %v311
      %v419 = vunpack.c.h.b16 %v311
      %v420 = vunpack.c.l.b16 %v312
      %v421 = vunpack.c.h.b16 %v312
      %v422 = vunpack.c.l.b16 %v313
      %v423 = vunpack.c.h.b16 %v313
      %v424 = vunpack.c.l.b16 %v314
      %v425 = vunpack.c.h.b16 %v314
      %v426 = vunpack.c.l.b16 %v315
      %v427 = vunpack.c.h.b16 %v315
      %v428 = vunpack.c.l.b16 %v316
      %v429 = vunpack.c.h.b16 %v316
      %v430 = vunpack.c.l.b16 %v317
      %v431 = vunpack.c.h.b16 %v317
      %v432 = vunpack.c.l.b16 %v318
      %v433 = vunpack.c.h.b16 %v318
      %v434 = vunpack.c.l.b16 %v319
      %v435 = vunpack.c.h.b16 %v319
      %v436 = vunpack.c.l.b16 %v320
      %v437 = vunpack.c.h.b16 %v320
      %v438 = vunpack.c.l.b16 %v321
      %v439 = vunpack.c.h.b16 %v321
      %v440 = vpack.c.b16 %v380, %v376
      %v441 = vpack.c.b16 %v381, %v377
      %v442 = vpack.c.b16 %v382, %v378
      %v443 = vpack.c.b16 %v383, %v379
      %v444 = vpack.c.b16 %v388, %v384
      %v445 = vpack.c.b16 %v389, %v385
      %v446 = vpack.c.b16 %v390, %v386
      %v447 = vpack.c.b16 %v391, %v387
      %v448 = vpack.c.b16 %v396, %v392
      %v449 = vpack.c.b16 %v397, %v393
      %v450 = vpack.c.b16 %v398, %v394
      %v451 = vpack.c.b16 %v399, %v395
      %v452 = vpack.c.b16 %v404, %v400
      %v453 = vpack.c.b16 %v405, %v401
      %v454 = vpack.c.b16 %v406, %v402
      %v455 = vpack.c.b16 %v407, %v403
      %v456 = vpack.c.b16 %v412, %v408
      %v457 = vpack.c.b16 %v413, %v409
      %v458 = vpack.c.b16 %v414, %v410
      %v459 = vpack.c.b16 %v415, %v411
      %v460 = vpack.c.b16 %v420, %v416
      %v461 = vpack.c.b16 %v421, %v417
      %v462 = vpack.c.b16 %v422, %v418
      %v463 = vpack.c.b16 %v423, %v419
      %v464 = vpack.c.b16 %v428, %v424
      %v465 = vpack.c.b16 %v429, %v425
      %v466 = vpack.c.b16 %v430, %v426
      %v467 = vpack.c.b16 %v431, %v427
      %v468 = vpack.c.b16 %v436, %v432
      %v469 = vpack.c.b16 %v437, %v433
      %v470 = vpack.c.b16 %v438, %v434
      %v471 = vpack.c.b16 %v439, %v435
      %504 = vmatprep.subr.bf16.mxu0 %v441
      %505 = vmatpush1.bf16.msra.mxu0 %v440
      %506 = vmatprep.subr.bf16.mxu0 %v445
      %507 = vmatpush1.bf16.msra.mxu0 %v444
      %508 = vmatprep.subr.bf16.mxu0 %v449
      %509 = vmatpush1.bf16.msra.mxu0 %v448
      %510 = vmatprep.subr.bf16.mxu0 %v453
      %511 = vmatpush1.bf16.msra.mxu0 %v452
      %512 = vmatprep.subr.bf16.mxu0 %v457
      %513 = vmatpush1.bf16.msra.mxu0 %v456
      %514 = vmatprep.subr.bf16.mxu0 %v461
      %515 = vmatpush1.bf16.msra.mxu0 %v460
      %516 = vmatprep.subr.bf16.mxu0 %v465
      %517 = vmatpush1.bf16.msra.mxu0 %v464
      %518 = vmatprep.subr.bf16.mxu0 %v469
      %519 = vmatpush1.bf16.msra.mxu0 %v468
      %520 = vmatprep.subr.bf16.mxu0 0
      %521 = vmatpush1.bf16.msra.mxu0 0
      %522 = vmatprep.subr.bf16.mxu0 0
      %523 = vmatpush1.bf16.msra.mxu0 0
      %524 = vmatprep.subr.bf16.mxu0 0
      %525 = vmatpush1.bf16.msra.mxu0 0
      %526 = vmatprep.subr.bf16.mxu0 0
      %527 = vmatpush1.bf16.msra.mxu0 0
      %528 = vmatprep.subr.bf16.mxu0 0
      %529 = vmatpush1.bf16.msra.mxu0 0
      %530 = vmatprep.subr.bf16.mxu0 0
      %531 = vmatpush1.bf16.msra.mxu0 0
      %532 = vmatprep.subr.bf16.mxu0 0
      %533 = vmatpush1.bf16.msra.mxu0 0
      %534 = vmatprep.subr.bf16.mxu0 0
      %535 = vmatpush1.bf16.msra.mxu0 0
      %536 = vmatprep.mubr.bf16.mxu0 0
      %537 = vmatmul.mubr.bf16.gmra.mrb[0].mxu0 %v288
      %v538 = vpop.f32.mrb[0].mxu0
      %v539 = vadd.f32 %v327, %v538
      %v540 = vpop.f32.mrb[0].mxu0
      %v541 = vadd.f32 %v331, %v540
      %v542 = vpop.f32.mrb[0].mxu0
      %v543 = vadd.f32 %v327, %v542
      %v544 = vpop.f32.mrb[0].mxu0
      %v545 = vadd.f32 %v331, %v544
      %546 = vmatprep.mubr.bf16.mxu0 0
      %547 = vmatmul.mubr.bf16.gmra.mrb[0].mxu0 %v289
      %v548 = vpop.f32.mrb[0].mxu0
      %v549 = vadd.f32 %v327, %v548
      %v550 = vpop.f32.mrb[0].mxu0
      %v551 = vadd.f32 %v331, %v550
      %v552 = vpop.f32.mrb[0].mxu0
      %v553 = vpop.f32.mrb[0].mxu0
      %554 = vdwg.mxu0
      %555 = vmatprep.subr.bf16.mxu0 %v443
      %556 = vmatpush1.bf16.msra.mxu0 %v442
      %557 = vmatprep.subr.bf16.mxu0 %v447
      %558 = vmatpush1.bf16.msra.mxu0 %v446
      %559 = vmatprep.subr.bf16.mxu0 %v451
      %560 = vmatpush1.bf16.msra.mxu0 %v450
      %561 = vmatprep.subr.bf16.mxu0 %v455
      %562 = vmatpush1.bf16.msra.mxu0 %v454
      %563 = vmatprep.subr.bf16.mxu0 %v459
      %564 = vmatpush1.bf16.msra.mxu0 %v458
      %565 = vmatprep.subr.bf16.mxu0 %v463
      %566 = vmatpush1.bf16.msra.mxu0 %v462
      %567 = vmatprep.subr.bf16.mxu0 %v467
      %568 = vmatpush1.bf16.msra.mxu0 %v466
      %569 = vmatprep.subr.bf16.mxu0 %v471
      %570 = vmatpush1.bf16.msra.mxu0 %v470
      %571 = vmatprep.subr.bf16.mxu0 0
      %572 = vmatpush1.bf16.msra.mxu0 0
      %573 = vmatprep.subr.bf16.mxu0 0
      %574 = vmatpush1.bf16.msra.mxu0 0
      %575 = vmatprep.subr.bf16.mxu0 0
      %576 = vmatpush1.bf16.msra.mxu0 0
      %577 = vmatprep.subr.bf16.mxu0 0
      %578 = vmatpush1.bf16.msra.mxu0 0
      %579 = vmatprep.subr.bf16.mxu0 0
      %580 = vmatpush1.bf16.msra.mxu0 0
      %581 = vmatprep.subr.bf16.mxu0 0
      %582 = vmatpush1.bf16.msra.mxu0 0
      %583 = vmatprep.subr.bf16.mxu0 0
      %584 = vmatpush1.bf16.msra.mxu0 0
      %585 = vmatprep.subr.bf16.mxu0 0
      %586 = vmatpush1.bf16.msra.mxu0 0
      %587 = vmatprep.mubr.bf16.mxu0 0
      %588 = vmatmul.mubr.bf16.gmra.mrb[0].mxu0 %v288
      %v589 = vpop.f32.mrb[0].mxu0
      %v590 = vadd.f32 %v335, %v589
      %v591 = vpop.f32.mrb[0].mxu0
      %v592 = vadd.f32 %v339, %v591
      %v593 = vpop.f32.mrb[0].mxu0
      %v594 = vadd.f32 %v335, %v593
      %v595 = vpop.f32.mrb[0].mxu0
      %v596 = vadd.f32 %v339, %v595
      %597 = vmatprep.mubr.bf16.mxu0 0
      %598 = vmatmul.mubr.bf16.gmra.mrb[0].mxu0 %v289
      %v599 = vpop.f32.mrb[0].mxu0
      %v600 = vadd.f32 %v335, %v599
      %v601 = vpop.f32.mrb[0].mxu0
      %v602 = vadd.f32 %v339, %v601
      %v603 = vpop.f32.mrb[0].mxu0
      %v604 = vpop.f32.mrb[0].mxu0
      %605 = vdwg.mxu0
      %v606 = vmul.f32 %v539, 0.5
      %v607 = vmul.f32 %v541, 0.5
      %v608 = vmul.f32 %v590, 0.5
      %v609 = vmul.f32 %v592, 0.5
      %v610 = vmul.f32 %v543, 0.5
      %v611 = vmul.f32 %v545, 0.5
      %v612 = vmul.f32 %v594, 0.5
      %v613 = vmul.f32 %v596, 0.5
      %v614 = vmul.f32 %v549, 0.5
      %v615 = vmul.f32 %v551, 0.5
      %v616 = vmul.f32 %v600, 0.5
      %v617 = vmul.f32 %v602, 0.5
      %v618 = vmul.f32 %v539, 0.70710677
      %v619 = vmul.f32 %v541, 0.70710677
      %v620 = vmul.f32 %v590, 0.70710677
      %v621 = vmul.f32 %v592, 0.70710677
      %v622 = vmul.f32 %v543, 0.70710677
      %v623 = vmul.f32 %v545, 0.70710677
      %v624 = vmul.f32 %v594, 0.70710677
      %v625 = vmul.f32 %v596, 0.70710677
      %v626 = vmul.f32 %v549, 0.70710677
      %v627 = vmul.f32 %v551, 0.70710677
      %v628 = vmul.f32 %v600, 0.70710677
      %v629 = vmul.f32 %v602, 0.70710677
      %v630 = verf.f32.pop %v618
      %v631 = verf.f32.pop %v619
      %v632 = verf.f32.pop %v620
      %v633 = verf.f32.pop %v621
      %v634 = verf.f32.pop %v622
      %v635 = verf.f32.pop %v623
      %v636 = verf.f32.pop %v624
      %v637 = verf.f32.pop %v625
      %v638 = verf.f32.pop %v626
      %v639 = verf.f32.pop %v627
      %v640 = verf.f32.pop %v628
      %v641 = verf.f32.pop %v629
      %v642 = vadd.f32 %v630, 1.0
      %v643 = vadd.f32 %v631, 1.0
      %v644 = vadd.f32 %v632, 1.0
      %v645 = vadd.f32 %v633, 1.0
      %v646 = vadd.f32 %v634, 1.0
      %v647 = vadd.f32 %v635, 1.0
      %v648 = vadd.f32 %v636, 1.0
      %v649 = vadd.f32 %v637, 1.0
      %v650 = vadd.f32 %v638, 1.0
      %v651 = vadd.f32 %v639, 1.0
      %v652 = vadd.f32 %v640, 1.0
      %v653 = vadd.f32 %v641, 1.0
      %v654 = vmul.f32 %v606, %v642
      %v655 = vmul.f32 %v607, %v643
      %v656 = vmul.f32 %v608, %v644
      %v657 = vmul.f32 %v609, %v645
      %v658 = vmul.f32 %v610, %v646
      %v659 = vmul.f32 %v611, %v647
      %v660 = vmul.f32 %v612, %v648
      %v661 = vmul.f32 %v613, %v649
      %v662 = vmul.f32 %v614, %v650
      %v663 = vmul.f32 %v615, %v651
      %v664 = vmul.f32 %v616, %v652
      %v665 = vmul.f32 %v617, %v653
      %v666 = vpack.c.bf16 %v658, %v654
      %v667 = vpack.c.bf16 %v659, %v655
      %v668 = vpack.c.bf16 %v660, %v656
      %v669 = vpack.c.bf16 %v661, %v657
      %v670 = vpack.c.bf16 %v662, %v662
      %v671 = vpack.c.bf16 %v663, %v663
      %v672 = vpack.c.bf16 %v664, %v664
      %v673 = vpack.c.bf16 %v665, %v665
      %v682 = vunpack.c.l.b16 %v666
      %v683 = vunpack.c.l.b16 %v667
      %v684 = vunpack.c.l.b16 %v668
      %v685 = vunpack.c.l.b16 %v669
      %v686 = vunpack.c.h.b16 %v666
      %v687 = vunpack.c.h.b16 %v667
      %v688 = vunpack.c.h.b16 %v668
      %v689 = vunpack.c.h.b16 %v669
      %v690 = vunpack.c.l.b16 %v670
      %v691 = vunpack.c.l.b16 %v671
      %v692 = vunpack.c.l.b16 %v672
      %v693 = vunpack.c.l.b16 %v673
      %v694 = vpack.c.b16 %v683, %v682
      %v695 = vpack.c.b16 %v685, %v684
      %v696 = vpack.c.b16 %v687, %v686
      %v697 = vpack.c.b16 %v689, %v688
      %v698 = vpack.c.b16 %v691, %v690
      %v699 = vpack.c.b16 %v693, %v692
      %706 = vst [vmem:[%s228] sm:$0xff] %v694
      %707 = vst [vmem:[%s228 + $0x8] sm:$0xff] %v695
      %708 = vst [vmem:[%s228 + $0x10] sm:$0xff] %v696
      %709 = vst [vmem:[%s228 + $0x18] sm:$0xff] %v697
      %710 = vst [vmem:[%s228 + $0x20] sm:$0xff] %v698
      %711 = vst [vmem:[%s228 + $0x28] sm:$0xff] %v699
      %s712 = smul.u32 3, %s16
      %p713 = scmp.lt.s32.totalorder %s712, 5
      %s714 = scalar_select %p713, %s712, 5
      %s715 = smul.addr %s714, 4
      %s716 = smul.addr %s715, 4
      %s717 = scalar_lea.vmem %s5, %s716
      // Predicated region
      $region41: #{vit_forward.16} parent=39 // pred_check
        %p718 = pneg %p144
      $region42: #{vit_forward.16} parent=39 // pred_check_branch
        %720 = sbr.rel (%p718) target = $region44
      $region43: #{vit_forward.16} parent=39 // pred_region
        %s721 = smul.u32 3, %s16
      $region44: #{vit_forward.16} parent=39 // pred_fallthru
        _
    $region40: #{vit_forward.16} parent=5 // pred_fallthru
      _
    %p722 = scmp.le.s32.totalorder 2, %s11
    // Predicated region
    $region45: #{vit_forward.16} parent=5 // pred_check
      %p723 = pneg %p722
    $region46: #{vit_forward.16} parent=5 // pred_check_branch
      %725 = sbr.rel (%p723) target = $region48
    $region47: #{vit_forward.16} parent=5 // pred_region
      %s726 = ssub.s32 %s11, 2
      // Predicated region
      $region49: #{vit_forward.16} parent=47 // pred_check
        %p727 = pneg %p150
      $region50: #{vit_forward.16} parent=47 // pred_check_branch
        %729 = sbr.rel (%p727) target = $region52
      $region51: #{vit_forward.16} parent=47 // pred_region
        %s730 = smul.u32 3, %s17
        %p731 = scmp.lt.s32.totalorder %s730, 5
        %s732 = scalar_select %p731, %s730, 5
        %s733 = smul.addr %s732, 4
        %s734 = smul.addr %s733, 4
        %s735 = scalar_lea.vmem %s5, %s734
      $region52: #{vit_forward.16} parent=47 // pred_fallthru
        _
    $region48: #{vit_forward.16} parent=5 // pred_fallthru
      _
  $region6: #{vit_forward.16} parent=0 // loop_footer
    %s15 = sadd.s32 1, %s11
  $region7: #{vit_forward.16} parent=0 // loop_footer_branch
    %10 = sbr.rel target = $region3
  $region8: #{vit_forward.16} parent=0 // loop_exit
    _

// kernel: vit_forward.17
$region0: #{vit_forward.17}
  #allocation0 [shape = 'u32[]', space=smem, size = 0x4, offset = 0x4, fixed_abs, tag = 'smem constant byte address 0x4 - core index']
  #allocation1 [shape = 'u32[144,128]{1,0:T(1,128)}', space=vmem, size = 0x12000, scoped, tag = 'internal scratch']
  %s0 = inlined_call_operand.vmem [shape: bf16[48,512], index: 0, kind: input, shape index: {}]
  %s1 = inlined_call_operand.vmem [shape: bf16[512,128], index: 1, kind: input, shape index: {}]
  %s2 = inlined_call_operand.vmem [shape: f32[1,128], index: 2, kind: input, shape index: {}]
  %s3 = inlined_call_operand.vmem [shape: f32[48,128], index: 3, kind: input, shape index: {}]
  %s4 = inlined_call_operand.vmem [shape: f32[48,128], index: 4, kind: output, shape index: {}]
  %s5 = sld [smem:[#allocation0]]
  $region49: #{vit_forward.17} parent=0
    _
  %s7 = ssub.s32 1, %s5
  %s8 = scalar_select 0, %s7, %s5
  loop: start=0, step=1, limit=4
  $region2: #{vit_forward.17} parent=0 // loop_pre_header
    _
  $region3: #{vit_forward.17} parent=0 // loop_header
    %s10 = sphi 0, %s14
    %p11 = scmp.ge.s32.totalorder %s10, 4
    %s20 = sphi 0, %s22
    %s23 = sphi 0, %s20
    %s24 = sphi 0, %s23
    %s40 = sphi 0, %s24
    %s44 = sphi 0, %s44
    %s46 = sphi 0, %s44
    %s47 = sphi 0, %s46
    %s61 = sphi 0, %s47
    %s65 = sphi 0, %s65
    %s67 = sphi 0, %s65
    %s68 = sphi 0, %s67
    %s82 = sphi 0, %s68
    %s88 = sphi 0, %s90
    %s91 = sphi 0, %s88
    %s92 = sphi 0, %s91
    %s108 = sphi 0, %s92
    %s114 = sphi 0, %s116
    %s117 = sphi 0, %s114
    %s118 = sphi 0, %s117
    %s134 = sphi 0, %s118
  $region4: #{vit_forward.17} parent=0 // loop_header_branch
    %13 = sbr.rel (%p11) target = $region8
  $region5: #{vit_forward.17} parent=0 // loop_body
    %s15 = ssub.s32 %s10, 1
    %s16 = ssub.s32 %s10, 2
    %s17 = sadd.s32 %s10, 1
    %s18 = ssub.s32 %s10, %s17
    %p19 = scmp.eq.s32.totalorder %s18, 0
    %s21 = sadd.s32 %s20, 1
    %s22 = scalar_select %p19, %s20, %s21
    %p25 = pneg %p19
    %p26 = scmp.eq.s32.totalorder %s10, 1
    %p27 = por %p25, %p26
    %p28 = scmp.ne.s32.totalorder %s20, %s23
    %p29 = scmp.eq.s32.totalorder %s10, 0
    %p30 = por %p28, %p29
    %p31 = scmp.ne.s32.totalorder %s20, %s23
    %p32 = scmp.eq.s32.totalorder %s15, 1
    %p33 = por %p31, %p32
    %p34 = scmp.ne.s32.totalorder %s23, %s24
    %p35 = scmp.eq.s32.totalorder %s15, 0
    %p36 = por %p34, %p35
    %p37 = scmp.ne.s32.totalorder %s23, %s24
    %p38 = scmp.eq.s32.totalorder %s16, 1
    %p39 = por %p37, %p38
    %p41 = scmp.ne.s32.totalorder %s24, %s40
    %p42 = scmp.eq.s32.totalorder %s16, 0
    %p43 = por %p41, %p42
    %s45 = sadd.s32 %s44, 1
    %p48 = scmp.eq.s32.totalorder %s10, 1
    %p49 = scmp.ne.s32.totalorder %s44, %s46
    %p50 = scmp.eq.s32.totalorder %s10, 0
    %p51 = por %p49, %p50
    %p52 = scmp.ne.s32.totalorder %s44, %s46
    %p53 = scmp.eq.s32.totalorder %s15, 1
    %p54 = por %p52, %p53
    %p55 = scmp.ne.s32.totalorder %s46, %s47
    %p56 = scmp.eq.s32.totalorder %s15, 0
    %p57 = por %p55, %p56
    %p58 = scmp.ne.s32.totalorder %s46, %s47
    %p59 = scmp.eq.s32.totalorder %s16, 1
    %p60 = por %p58, %p59
    %p62 = scmp.ne.s32.totalorder %s47, %s61
    %p63 = scmp.eq.s32.totalorder %s16, 0
    %p64 = por %p62, %p63
    %s66 = sadd.s32 %s65, 1
    %p69 = scmp.eq.s32.totalorder %s10, 1
    %p70 = scmp.ne.s32.totalorder %s65, %s67
    %p71 = scmp.eq.s32.totalorder %s10, 0
    %p72 = por %p70, %p71
    %p73 = scmp.ne.s32.totalorder %s65, %s67
    %p74 = scmp.eq.s32.totalorder %s15, 1
    %p75 = por %p73, %p74
    %p76 = scmp.ne.s32.totalorder %s67, %s68
    %p77 = scmp.eq.s32.totalorder %s15, 0
    %p78 = por %p76, %p77
    %p79 = scmp.ne.s32.totalorder %s67, %s68
    %p80 = scmp.eq.s32.totalorder %s16, 1
    %p81 = por %p79, %p80
    %p83 = scmp.ne.s32.totalorder %s68, %s82
    %p84 = scmp.eq.s32.totalorder %s16, 0
    %p85 = por %p83, %p84
    %s86 = ssub.s32 %s10, %s17
    %p87 = scmp.eq.s32.totalorder %s86, 0
    %s89 = sadd.s32 %s88, 1
    %s90 = scalar_select %p87, %s88, %s89
    %p93 = pneg %p87
    %p94 = scmp.eq.s32.totalorder %s10, 1
    %p95 = por %p93, %p94
    %p96 = scmp.ne.s32.totalorder %s88, %s91
    %p97 = scmp.eq.s32.totalorder %s10, 0
    %p98 = por %p96, %p97
    %p99 = scmp.ne.s32.totalorder %s88, %s91
    %p100 = scmp.eq.s32.totalorder %s15, 1
    %p101 = por %p99, %p100
    %p102 = scmp.ne.s32.totalorder %s91, %s92
    %p103 = scmp.eq.s32.totalorder %s15, 0
    %p104 = por %p102, %p103
    %p105 = scmp.ne.s32.totalorder %s91, %s92
    %p106 = scmp.eq.s32.totalorder %s16, 1
    %p107 = por %p105, %p106
    %p109 = scmp.ne.s32.totalorder %s92, %s108
    %p110 = scmp.eq.s32.totalorder %s16, 0
    %p111 = por %p109, %p110
    %s112 = ssub.s32 %s10, %s17
    %p113 = scmp.eq.s32.totalorder %s112, 0
    %s115 = sadd.s32 %s114, 1
    %s116 = scalar_select %p113, %s114, %s115
    %p119 = pneg %p113
    %p120 = scmp.eq.s32.totalorder %s10, 1
    %p121 = por %p119, %p120
    %p122 = scmp.ne.s32.totalorder %s114, %s117
    %p123 = scmp.eq.s32.totalorder %s10, 0
    %p124 = por %p122, %p123
    %p125 = scmp.ne.s32.totalorder %s114, %s117
    %p126 = scmp.eq.s32.totalorder %s15, 1
    %p127 = por %p125, %p126
    %p128 = scmp.ne.s32.totalorder %s117, %s118
    %p129 = scmp.eq.s32.totalorder %s15, 0
    %p130 = por %p128, %p129
    %p131 = scmp.ne.s32.totalorder %s117, %s118
    %p132 = scmp.eq.s32.totalorder %s16, 1
    %p133 = por %p131, %p132
    %p135 = scmp.ne.s32.totalorder %s118, %s134
    %p136 = scmp.eq.s32.totalorder %s16, 0
    %p137 = por %p135, %p136
    %p138 = scmp.le.s32.totalorder 1, %s10
    %p139 = scmp.lt.s32.totalorder %s10, 3
    %p140 = pnand %p138, %p139
    %p141 = pneg %p140
    // Predicated region
    $region9: #{vit_forward.17} parent=5 // pred_check
      _
    $region10: #{vit_forward.17} parent=5 // pred_check_branch
      %143 = sbr.rel (%p140) target = $region12
    $region11: #{vit_forward.17} parent=5 // pred_region
      %s144 = ssub.s32 %s10, 1
      // Predicated region
      $region13: #{vit_forward.17} parent=11 // pred_check
        %p145 = pneg %p57
      $region14: #{vit_forward.17} parent=11 // pred_check_branch
        %147 = sbr.rel (%p145) target = $region16
      $region15: #{vit_forward.17} parent=11 // pred_region
        _
      $region16: #{vit_forward.17} parent=11 // pred_fallthru
        _
      // Predicated region
      $region17: #{vit_forward.17} parent=11 // pred_check
        %p148 = pneg %p78
      $region18: #{vit_forward.17} parent=11 // pred_check_branch
        %150 = sbr.rel (%p148) target = $region20
      $region19: #{vit_forward.17} parent=11 // pred_region
        _
      $region20: #{vit_forward.17} parent=11 // pred_fallthru
        _
    $region12: #{vit_forward.17} parent=5 // pred_fallthru
      _
    %p151 = scmp.lt.s32.totalorder %s10, 2
    // Predicated region
    $region21: #{vit_forward.17} parent=5 // pred_check
      %p152 = pneg %p151
    $region22: #{vit_forward.17} parent=5 // pred_check_branch
      %154 = sbr.rel (%p152) target = $region24
    $region23: #{vit_forward.17} parent=5 // pred_region
      // Predicated region
      $region25: #{vit_forward.17} parent=23 // pred_check
        %p155 = pneg %p30
      $region26: #{vit_forward.17} parent=23 // pred_check_branch
        %157 = sbr.rel (%p155) target = $region28
      $region27: #{vit_forward.17} parent=23 // pred_region
        %s158 = smul.u32 3, %s10
        %p159 = scmp.lt.s32.totalorder %s158, 5
        %s160 = scalar_select %p159, %s158, 5
        %s161 = smul.addr %s160, 4
        %s162 = smul.addr %s161, 4
        %s163 = scalar_lea.vmem %s0, %s162
        %s164 = smul.u32 3, %s10
      $region28: #{vit_forward.17} parent=23 // pred_fallthru
        _
      // Predicated region
      $region29: #{vit_forward.17} parent=23 // pred_check
        %p165 = pneg %p98
      $region30: #{vit_forward.17} parent=23 // pred_check_branch
        %167 = sbr.rel (%p165) target = $region32
      $region31: #{vit_forward.17} parent=23 // pred_region
        %s168 = smul.u32 3, %s10
        %p169 = scmp.lt.s32.totalorder %s168, 5
        %s170 = scalar_select %p169, %s168, 5
        %s171 = smul.addr %s170, 8
        %s172 = scalar_lea.vmem %s3, %s171
        %s173 = smul.u32 3, %s10
      $region32: #{vit_forward.17} parent=23 // pred_fallthru
        _
    $region24: #{vit_forward.17} parent=5 // pred_fallthru
      _
    %p174 = scmp.le.s32.totalorder 1, %s10
    %p175 = scmp.lt.s32.totalorder %s10, 3
    %p176 = pnand %p174, %p175
    %p177 = pneg %p176
    // Predicated region
    $region33: #{vit_forward.17} parent=5 // pred_check
      _
    $region34: #{vit_forward.17} parent=5 // pred_check_branch
      %179 = sbr.rel (%p176) target = $region36
    $region35: #{vit_forward.17} parent=5 // pred_region
      %s180 = ssub.s32 %s10, 1
      %s181 = smul.u32 3, %s15
      %p182 = scmp.lt.s32.totalorder %s181, 5
      %s183 = scalar_select %p182, %s181, 5
      %s184 = smul.addr %s183, 4
      %s185 = smul.addr %s184, 4
      %s186 = scalar_lea.vmem %s0, %s185
      %p187 = pneg %p36
      %p188 = pneg %p33
      %p189 = pneg %p57
      %p190 = pneg %p54
      %p191 = pneg %p78
      %p192 = pneg %p75
      %s193 = smul.u32 3, %s15
      %p194 = scmp.lt.s32.totalorder %s193, 5
      %s195 = scalar_select %p194, %s193, 5
      %s196 = smul.addr %s195, 8
      %s197 = scalar_lea.vmem %s3, %s196
      %p198 = pneg %p104
      %p199 = pneg %p101
      %p200 = pneg %p130
      %p201 = pneg %p127
      %s202 = smul.u32 3, %s15
      %p203 = scmp.lt.s32.totalorder %s202, 5
      %s204 = scalar_select %p203, %s202, 5
      %s205 = smul.addr %s204, 8
      %s206 = scalar_lea.vmem %s4, %s205
      %s207 = smul.u32 3, %s15
      %p208 = scmp.lt.s32.totalorder %s207, 5
      %s209 = scalar_select %p208, %s207, 5
      %s210 = smul.addr %s209, 4
      %s211 = smul.addr %s210, 4
      %s212 = scalar_lea.vmem %s0, %s211
      %s213 = smul.u32 3, %s15
      %s214 = smul.u32 3, %s15
      %p215 = scmp.lt.s32.totalorder %s214, 5
      %s216 = scalar_select %p215, %s214, 5
      %s217 = smul.addr %s216, 8
      %s218 = scalar_lea.vmem %s3, %s217
      %s219 = smul.u32 3, %s15
      %s220 = smul.u32 3, %s15
      %p221 = scmp.lt.s32.totalorder %s220, 5
      %s222 = scalar_select %p221, %s220, 5
      %s223 = smul.addr %s222, 8
      %s224 = scalar_lea.vmem %s4, %s223
      %s225 = smul.u32 3, %s15
      %v227 = vld [vmem:[%s212] sm:$0xff]
      %v228 = vld [vmem:[%s212 + $0x8] sm:$0xff]
      %v229 = vld [vmem:[%s212 + $0x10] sm:$0xff]
      %v230 = vld [vmem:[%s212 + $0x18] sm:$0xff]
      %v231 = vld [vmem:[%s212 + $0x20] sm:$0xff]
      %v232 = vld [vmem:[%s212 + $0x28] sm:$0xff]
      %v233 = vld [vmem:[%s1] sm:$0xf]
      %v234 = vld [vmem:[%s1 + $0x4] sm:$0xf]
      %v235 = vld [vmem:[%s1 + $0x8] sm:$0xf]
      %v236 = vld [vmem:[%s1 + $0xc] sm:$0xf]
      %v237 = vld [vmem:[%s1 + $0x10] sm:$0xf]
      %v238 = vld [vmem:[%s1 + $0x14] sm:$0xf]
      %v239 = vld [vmem:[%s1 + $0x18] sm:$0xf]
      %v240 = vld [vmem:[%s1 + $0x1c] sm:$0xf]
      %v241 = vld [vmem:[%s1 + $0x20] sm:$0xf]
      %v242 = vld [vmem:[%s1 + $0x24] sm:$0xf]
      %v243 = vld [vmem:[%s1 + $0x28] sm:$0xf]
      %v244 = vld [vmem:[%s1 + $0x2c] sm:$0xf]
      %v245 = vld [vmem:[%s1 + $0x30] sm:$0xf]
      %v246 = vld [vmem:[%s1 + $0x34] sm:$0xf]
      %v247 = vld [vmem:[%s1 + $0x38] sm:$0xf]
      %v248 = vld [vmem:[%s1 + $0x3c] sm:$0xf]
      %v249 = vld [vmem:[%s1 + $0x40] sm:$0xf]
      %v250 = vld [vmem:[%s1 + $0x44] sm:$0xf]
      %v251 = vld [vmem:[%s1 + $0x48] sm:$0xf]
      %v252 = vld [vmem:[%s1 + $0x4c] sm:$0xf]
      %v253 = vld [vmem:[%s1 + $0x50] sm:$0xf]
      %v254 = vld [vmem:[%s1 + $0x54] sm:$0xf]
      %v255 = vld [vmem:[%s1 + $0x58] sm:$0xf]
      %v256 = vld [vmem:[%s1 + $0x5c] sm:$0xf]
      %v257 = vld [vmem:[%s1 + $0x60] sm:$0xf]
      %v258 = vld [vmem:[%s1 + $0x64] sm:$0xf]
      %v259 = vld [vmem:[%s1 + $0x68] sm:$0xf]
      %v260 = vld [vmem:[%s1 + $0x6c] sm:$0xf]
      %v261 = vld [vmem:[%s1 + $0x70] sm:$0xf]
      %v262 = vld [vmem:[%s1 + $0x74] sm:$0xf]
      %v263 = vld [vmem:[%s1 + $0x78] sm:$0xf]
      %v264 = vld [vmem:[%s1 + $0x7c] sm:$0xf]
      %v265 = vld [vmem:[%s1 + $0x80] sm:$0xf]
      %v266 = vld [vmem:[%s1 + $0x84] sm:$0xf]
      %v267 = vld [vmem:[%s1 + $0x88] sm:$0xf]
      %v268 = vld [vmem:[%s1 + $0x8c] sm:$0xf]
      %v269 = vld [vmem:[%s1 + $0x90] sm:$0xf]
      %v270 = vld [vmem:[%s1 + $0x94] sm:$0xf]
      %v271 = vld [vmem:[%s1 + $0x98] sm:$0xf]
      %v272 = vld [vmem:[%s1 + $0x9c] sm:$0xf]
      %v273 = vld [vmem:[%s1 + $0xa0] sm:$0xf]
      %v274 = vld [vmem:[%s1 + $0xa4] sm:$0xf]
      %v275 = vld [vmem:[%s1 + $0xa8] sm:$0xf]
      %v276 = vld [vmem:[%s1 + $0xac] sm:$0xf]
      %v277 = vld [vmem:[%s1 + $0xb0] sm:$0xf]
      %v278 = vld [vmem:[%s1 + $0xb4] sm:$0xf]
      %v279 = vld [vmem:[%s1 + $0xb8] sm:$0xf]
      %v280 = vld [vmem:[%s1 + $0xbc] sm:$0xf]
      %v281 = vld [vmem:[%s1 + $0xc0] sm:$0xf]
      %v282 = vld [vmem:[%s1 + $0xc4] sm:$0xf]
      %v283 = vld [vmem:[%s1 + $0xc8] sm:$0xf]
      %v284 = vld [vmem:[%s1 + $0xcc] sm:$0xf]
      %v285 = vld [vmem:[%s1 + $0xd0] sm:$0xf]
      %v286 = vld [vmem:[%s1 + $0xd4] sm:$0xf]
      %v287 = vld [vmem:[%s1 + $0xd8] sm:$0xf]
      %v288 = vld [vmem:[%s1 + $0xdc] sm:$0xf]
      %v289 = vld [vmem:[%s1 + $0xe0] sm:$0xf]
      %v290 = vld [vmem:[%s1 + $0xe4] sm:$0xf]
      %v291 = vld [vmem:[%s1 + $0xe8] sm:$0xf]
      %v292 = vld [vmem:[%s1 + $0xec] sm:$0xf]
      %v293 = vld [vmem:[%s1 + $0xf0] sm:$0xf]
      %v294 = vld [vmem:[%s1 + $0xf4] sm:$0xf]
      %v295 = vld [vmem:[%s1 + $0xf8] sm:$0xf]
      %v296 = vld [vmem:[%s1 + $0xfc] sm:$0xf]
      %v297 = vld [vmem:[%s2] sm:$0x1]
      %v299 = vlaneseq
      %v300 = vshrl.u32 %v299, 7
      %v301 = vsub.s32 0, %v300
      %v302 = vrot.slane %v297, %v301
      %v310 = vunpack.c.l.b16 %v227
      %v311 = vunpack.c.h.b16 %v227
      %v312 = vunpack.c.l.b16 %v228
      %v313 = vunpack.c.h.b16 %v228
      %v314 = vunpack.c.l.b16 %v229
      %v315 = vunpack.c.h.b16 %v229
      %v316 = vunpack.c.l.b16 %v230
      %v317 = vunpack.c.h.b16 %v230
      %v318 = vunpack.c.l.b16 %v231
      %v319 = vunpack.c.h.b16 %v231
      %v320 = vunpack.c.l.b16 %v232
      %v321 = vunpack.c.h.b16 %v232
      %v322 = vpack.c.b16 %v314, %v310
      %v323 = vpack.c.b16 %v315, %v311
      %v324 = vpack.c.b16 %v316, %v312
      %v325 = vpack.c.b16 %v317, %v313
      %v326 = vpack.c.b16 %v318, %v318
      %v327 = vpack.c.b16 %v319, %v319
      %v328 = vpack.c.b16 %v320, %v320
      %v329 = vpack.c.b16 %v321, %v321
      %v402 = vunpack.c.l.b16 %v233
      %v403 = vunpack.c.l.b16 %v234
      %v404 = vunpack.c.l.b16 %v235
      %v405 = vunpack.c.l.b16 %v236
      %v406 = vunpack.c.l.b16 %v237
      %v407 = vunpack.c.l.b16 %v238
      %v408 = vunpack.c.l.b16 %v239
      %v409 = vunpack.c.l.b16 %v240
      %v410 = vunpack.c.l.b16 %v241
      %v411 = vunpack.c.l.b16 %v242
      %v412 = vunpack.c.l.b16 %v243
      %v413 = vunpack.c.l.b16 %v244
      %v414 = vunpack.c.l.b16 %v245
      %v415 = vunpack.c.l.b16 %v246
      %v416 = vunpack.c.l.b16 %v247
      %v417 = vunpack.c.l.b16 %v248
      %v418 = vunpack.c.l.b16 %v249
      %v419 = vunpack.c.l.b16 %v250
      %v420 = vunpack.c.l.b16 %v251
      %v421 = vunpack.c.l.b16 %v252
      %v422 = vunpack.c.l.b16 %v253
      %v423 = vunpack.c.l.b16 %v254
      %v424 = vunpack.c.l.b16 %v255
      %v425 = vunpack.c.l.b16 %v256
      %v426 = vunpack.c.l.b16 %v257
      %v427 = vunpack.c.l.b16 %v258
      %v428 = vunpack.c.l.b16 %v259
      %v429 = vunpack.c.l.b16 %v260
      %v430 = vunpack.c.l.b16 %v261
      %v431 = vunpack.c.l.b16 %v262
      %v432 = vunpack.c.l.b16 %v263
      %v433 = vunpack.c.l.b16 %v264
      %v434 = vunpack.c.l.b16 %v265
      %v435 = vunpack.c.l.b16 %v266
      %v436 = vunpack.c.l.b16 %v267
      %v437 = vunpack.c.l.b16 %v268
      %v438 = vunpack.c.l.b16 %v269
      %v439 = vunpack.c.l.b16 %v270
      %v440 = vunpack.c.l.b16 %v271
      %v441 = vunpack.c.l.b16 %v272
      %v442 = vunpack.c.l.b16 %v273
      %v443 = vunpack.c.l.b16 %v274
      %v444 = vunpack.c.l.b16 %v275
      %v445 = vunpack.c.l.b16 %v276
      %v446 = vunpack.c.l.b16 %v277
      %v447 = vunpack.c.l.b16 %v278
      %v448 = vunpack.c.l.b16 %v279
      %v449 = vunpack.c.l.b16 %v280
      %v450 = vunpack.c.l.b16 %v281
      %v451 = vunpack.c.l.b16 %v282
      %v452 = vunpack.c.l.b16 %v283
      %v453 = vunpack.c.l.b16 %v284
      %v454 = vunpack.c.l.b16 %v285
      %v455 = vunpack.c.l.b16 %v286
      %v456 = vunpack.c.l.b16 %v287
      %v457 = vunpack.c.l.b16 %v288
      %v458 = vunpack.c.l.b16 %v289
      %v459 = vunpack.c.l.b16 %v290
      %v460 = vunpack.c.l.b16 %v291
      %v461 = vunpack.c.l.b16 %v292
      %v462 = vunpack.c.l.b16 %v293
      %v463 = vunpack.c.l.b16 %v294
      %v464 = vunpack.c.l.b16 %v295
      %v465 = vunpack.c.l.b16 %v296
      %v466 = vpack.c.b16 %v403, %v402
      %v467 = vpack.c.b16 %v405, %v404
      %v468 = vpack.c.b16 %v407, %v406
      %v469 = vpack.c.b16 %v409, %v408
      %v470 = vpack.c.b16 %v411, %v410
      %v471 = vpack.c.b16 %v413, %v412
      %v472 = vpack.c.b16 %v415, %v414
      %v473 = vpack.c.b16 %v417, %v416
      %v474 = vpack.c.b16 %v419, %v418
      %v475 = vpack.c.b16 %v421, %v420
      %v476 = vpack.c.b16 %v423, %v422
      %v477 = vpack.c.b16 %v425, %v424
      %v478 = vpack.c.b16 %v427, %v426
      %v479 = vpack.c.b16 %v429, %v428
      %v480 = vpack.c.b16 %v431, %v430
      %v481 = vpack.c.b16 %v433, %v432
      %v482 = vpack.c.b16 %v435, %v434
      %v483 = vpack.c.b16 %v437, %v436
      %v484 = vpack.c.b16 %v439, %v438
      %v485 = vpack.c.b16 %v441, %v440
      %v486 = vpack.c.b16 %v443, %v442
      %v487 = vpack.c.b16 %v445, %v444
      %v488 = vpack.c.b16 %v447, %v446
      %v489 = vpack.c.b16 %v449, %v448
      %v490 = vpack.c.b16 %v451, %v450
      %v491 = vpack.c.b16 %v453, %v452
      %v492 = vpack.c.b16 %v455, %v454
      %v493 = vpack.c.b16 %v457, %v456
      %v494 = vpack.c.b16 %v459, %v458
      %v495 = vpack.c.b16 %v461, %v460
      %v496 = vpack.c.b16 %v463, %v462
      %v497 = vpack.c.b16 %v465, %v464
      %530 = vmatprep.subr.bf16.mxu0 0
      %531 = vmatpush1.bf16.msra.mxu0 %v466
      %532 = vmatprep.subr.bf16.mxu0 0
      %533 = vmatpush1.bf16.msra.mxu0 %v467
      %534 = vmatprep.subr.bf16.mxu0 0
      %535 = vmatpush1.bf16.msra.mxu0 %v468
      %536 = vmatprep.subr.bf16.mxu0 0
      %537 = vmatpush1.bf16.msra.mxu0 %v469
      %538 = vmatprep.subr.bf16.mxu0 0
      %539 = vmatpush1.bf16.msra.mxu0 %v470
      %540 = vmatprep.subr.bf16.mxu0 0
      %541 = vmatpush1.bf16.msra.mxu0 %v471
      %542 = vmatprep.subr.bf16.mxu0 0
      %543 = vmatpush1.bf16.msra.mxu0 %v472
      %544 = vmatprep.subr.bf16.mxu0 0
      %545 = vmatpush1.bf16.msra.mxu0 %v473
      %546 = vmatprep.subr.bf16.mxu0 0
      %547 = vmatpush1.bf16.msra.mxu0 %v474
      %548 = vmatprep.subr.bf16.mxu0 0
      %549 = vmatpush1.bf16.msra.mxu0 %v475
      %550 = vmatprep.subr.bf16.mxu0 0
      %551 = vmatpush1.bf16.msra.mxu0 %v476
      %552 = vmatprep.subr.bf16.mxu0 0
      %553 = vmatpush1.bf16.msra.mxu0 %v477
      %554 = vmatprep.subr.bf16.mxu0 0
      %555 = vmatpush1.bf16.msra.mxu0 %v478
      %556 = vmatprep.subr.bf16.mxu0 0
      %557 = vmatpush1.bf16.msra.mxu0 %v479
      %558 = vmatprep.subr.bf16.mxu0 0
      %559 = vmatpush1.bf16.msra.mxu0 %v480
      %560 = vmatprep.subr.bf16.mxu0 0
      %561 = vmatpush1.bf16.msra.mxu0 %v481
      %562 = vmatprep.mubr.bf16.mxu0 %v323
      %563 = vmatmul.mubr.bf16.gmra.mrb[0].mxu0 %v322
      %v564 = vpop.f32.mrb[0].mxu0
      %v565 = vadd.f32 %v302, %v564
      %v566 = vpop.f32.mrb[0].mxu0
      %v567 = vpop.f32.mrb[0].mxu0
      %v568 = vadd.f32 %v302, %v567
      %v569 = vpop.f32.mrb[0].mxu0
      %570 = vmatprep.mubr.bf16.mxu0 %v327
      %571 = vmatmul.mubr.bf16.gmra.mrb[0].mxu0 %v326
      %v572 = vpop.f32.mrb[0].mxu0
      %v573 = vadd.f32 %v302, %v572
      %v574 = vpop.f32.mrb[0].mxu0
      %v575 = vpop.f32.mrb[0].mxu0
      %v576 = vpop.f32.mrb[0].mxu0
      %577 = vdwg.mxu0
      %578 = vmatprep.subr.bf16.mxu0 0
      %579 = vmatpush1.bf16.msra.mxu0 %v482
      %580 = vmatprep.subr.bf16.mxu0 0
      %581 = vmatpush1.bf16.msra.mxu0 %v483
      %582 = vmatprep.subr.bf16.mxu0 0
      %583 = vmatpush1.bf16.msra.mxu0 %v484
      %584 = vmatprep.subr.bf16.mxu0 0
      %585 = vmatpush1.bf16.msra.mxu0 %v485
      %586 = vmatprep.subr.bf16.mxu0 0
      %587 = vmatpush1.bf16.msra.mxu0 %v486
      %588 = vmatprep.subr.bf16.mxu0 0
      %589 = vmatpush1.bf16.msra.mxu0 %v487
      %590 = vmatprep.subr.bf16.mxu0 0
      %591 = vmatpush1.bf16.msra.mxu0 %v488
      %592 = vmatprep.subr.bf16.mxu0 0
      %593 = vmatpush1.bf16.msra.mxu0 %v489
      %594 = vmatprep.subr.bf16.mxu0 0
      %595 = vmatpush1.bf16.msra.mxu0 %v490
      %596 = vmatprep.subr.bf16.mxu0 0
      %597 = vmatpush1.bf16.msra.mxu0 %v491
      %598 = vmatprep.subr.bf16.mxu0 0
      %599 = vmatpush1.bf16.msra.mxu0 %v492
      %600 = vmatprep.subr.bf16.mxu0 0
      %601 = vmatpush1.bf16.msra.mxu0 %v493
      %602 = vmatprep.subr.bf16.mxu0 0
      %603 = vmatpush1.bf16.msra.mxu0 %v494
      %604 = vmatprep.subr.bf16.mxu0 0
      %605 = vmatpush1.bf16.msra.mxu0 %v495
      %606 = vmatprep.subr.bf16.mxu0 0
      %607 = vmatpush1.bf16.msra.mxu0 %v496
      %608 = vmatprep.subr.bf16.mxu0 0
      %609 = vmatpush1.bf16.msra.mxu0 %v497
      %610 = vmatprep.mubr.bf16.mxu0 %v325
      %611 = vmatmul.mubr.bf16.gmra.mrb[0].mxu0 %v324
      %v612 = vpop.f32.mrb[0].mxu0
      %v613 = vadd.f32 %v565, %v612
      %v614 = vpop.f32.mrb[0].mxu0
      %v615 = vpop.f32.mrb[0].mxu0
      %v616 = vadd.f32 %v568, %v615
      %v617 = vpop.f32.mrb[0].mxu0
      %618 = vmatprep.mubr.bf16.mxu0 %v329
      %619 = vmatmul.mubr.bf16.gmra.mrb[0].mxu0 %v328
      %v620 = vpop.f32.mrb[0].mxu0
      %v621 = vadd.f32 %v573, %v620
      %v622 = vpop.f32.mrb[0].mxu0
      %v623 = vpop.f32.mrb[0].mxu0
      %v624 = vpop.f32.mrb[0].mxu0
      %625 = vdwg.mxu0
      %v626 = vld [vmem:[%s218] sm:$0xff]
      %v627 = vld [vmem:[%s218 + $0x8] sm:$0xff]
      %v628 = vld [vmem:[%s218 + $0x10] sm:$0xff]
      %v629 = vadd.f32 %v613, %v626
      %v630 = vadd.f32 %v616, %v627
      %v631 = vadd.f32 %v621, %v628
      %632 = vst [vmem:[%s224] sm:$0xff] %v629
      %633 = vst [vmem:[%s224 + $0x8] sm:$0xff] %v630
      %634 = vst [vmem:[%s224 + $0x10] sm:$0xff] %v631
      %s635 = smul.u32 3, %s15
      %p636 = scmp.lt.s32.totalorder %s635, 5
      %s637 = scalar_select %p636, %s635, 5
      %s638 = smul.addr %s637, 8
      %s639 = scalar_lea.vmem %s4, %s638
      // Predicated region
      $region37: #{vit_forward.17} parent=35 // pred_check
        %p640 = pneg %p127
      $region38: #{vit_forward.17} parent=35 // pred_check_branch
        %642 = sbr.rel (%p640) target = $region40
      $region39: #{vit_forward.17} parent=35 // pred_region
        %s643 = smul.u32 3, %s15
      $region40: #{vit_forward.17} parent=35 // pred_fallthru
        _
    $region36: #{vit_forward.17} parent=5 // pred_fallthru
      _
    %p644 = scmp.le.s32.totalorder 2, %s10
    // Predicated region
    $region41: #{vit_forward.17} parent=5 // pred_check
      %p645 = pneg %p644
    $region42: #{vit_forward.17} parent=5 // pred_check_branch
      %647 = sbr.rel (%p645) target = $region44
    $region43: #{vit_forward.17} parent=5 // pred_region
      %s648 = ssub.s32 %s10, 2
      // Predicated region
      $region45: #{vit_forward.17} parent=43 // pred_check
        %p649 = pneg %p133
      $region46: #{vit_forward.17} parent=43 // pred_check_branch
        %651 = sbr.rel (%p649) target = $region48
      $region47: #{vit_forward.17} parent=43 // pred_region
        %s652 = smul.u32 3, %s16
        %p653 = scmp.lt.s32.totalorder %s652, 5
        %s654 = scalar_select %p653, %s652, 5
        %s655 = smul.addr %s654, 8
        %s656 = scalar_lea.vmem %s4, %s655
      $region48: #{vit_forward.17} parent=43 // pred_fallthru
        _
    $region44: #{vit_forward.17} parent=5 // pred_fallthru
      _
  $region6: #{vit_forward.17} parent=0 // loop_footer
    %s14 = sadd.s32 1, %s10
  $region7: #{vit_forward.17} parent=0 // loop_footer_branch
    %9 = sbr.rel target = $region3
  $region8: #{vit_forward.17} parent=0 // loop_exit
    _

// kernel: vit_forward.23
$region0: #{vit_forward.23}
  #allocation0 [shape = 'u32[]', space=smem, size = 0x4, offset = 0x4, fixed_abs, tag = 'smem constant byte address 0x4 - core index']
  #allocation1 [shape = 'u32[144,128]{1,0:T(1,128)}', space=vmem, size = 0x12000, scoped, tag = 'internal scratch']
  %s0 = inlined_call_operand.vmem [shape: f32[2,24,128], index: 0, kind: input, shape index: {}]
  %s1 = inlined_call_operand.vmem [shape: f32[1,128], index: 1, kind: input, shape index: {}]
  %s2 = inlined_call_operand.vmem [shape: f32[1,128], index: 2, kind: input, shape index: {}]
  %s3 = inlined_call_operand.vmem [shape: bf16[128,16], index: 3, kind: input, shape index: {}]
  %s4 = inlined_call_operand.vmem [shape: f32[1,16], index: 4, kind: input, shape index: {}]
  %s5 = inlined_call_operand.hbm [shape: f32[2,16], index: 5, kind: output, shape index: {}]
  %s6 = sld [smem:[#allocation0]]
  $region30: #{vit_forward.23} parent=0
    _
  %s8 = ssub.s32 1, %s6
  %s9 = scalar_select 0, %s8, %s6
  $region1: #{vit_forward.23} parent=0
    #allocation2 [shape = 'u8[1024]{0}', space=vmem, size = 0x400, scoped, tag = 'output window, operand 0, single buffered']
    #allocation3 [shape = 's32[1]{0}', space=sflag, size = 0x4, scoped, tag = 'scoped memory for vit_forward.23']
    %10 = vsyncpa [#allocation3], 0
    // Predicated region
    $region2: #{vit_forward.23} parent=1 // pred_check
      _
    $region3: #{vit_forward.23} parent=1 // pred_check_branch
      %12 = sbr.rel (0) target = $region5
    $region4: #{vit_forward.23} parent=1 // pred_region
      _
    $region5: #{vit_forward.23} parent=1 // pred_fallthru
      _
    // Predicated region
    $region6: #{vit_forward.23} parent=1 // pred_check
      _
    $region7: #{vit_forward.23} parent=1 // pred_check_branch
      %14 = sbr.rel (0) target = $region9
    $region8: #{vit_forward.23} parent=1 // pred_region
      _
    $region9: #{vit_forward.23} parent=1 // pred_fallthru
      _
    // Predicated region
    $region10: #{vit_forward.23} parent=1 // pred_check
      _
    $region11: #{vit_forward.23} parent=1 // pred_check_branch
      %16 = sbr.rel (0) target = $region13
    $region12: #{vit_forward.23} parent=1 // pred_region
      _
    $region13: #{vit_forward.23} parent=1 // pred_fallthru
      _
    // Predicated region
    $region14: #{vit_forward.23} parent=1 // pred_check
      _
    $region15: #{vit_forward.23} parent=1 // pred_check_branch
      %18 = sbr.rel (0) target = $region17
    $region16: #{vit_forward.23} parent=1 // pred_region
      _
    $region17: #{vit_forward.23} parent=1 // pred_fallthru
      _
    // Predicated region
    $region18: #{vit_forward.23} parent=1 // pred_check
      _
    $region19: #{vit_forward.23} parent=1 // pred_check_branch
      %20 = sbr.rel (0) target = $region21
    $region20: #{vit_forward.23} parent=1 // pred_region
      _
    $region21: #{vit_forward.23} parent=1 // pred_fallthru
      _
    %v22 = vld [vmem:[%s0] sm:$0xff]
    %v23 = vld [vmem:[%s0 + $0x8] sm:$0xff]
    %v24 = vld [vmem:[%s0 + $0x10] sm:$0xff]
    %v25 = vld [vmem:[%s0 + $0x18] sm:$0xff]
    %v26 = vld [vmem:[%s0 + $0x20] sm:$0xff]
    %v27 = vld [vmem:[%s0 + $0x28] sm:$0xff]
    %28 = vadd.xlane.f32.xlu0 %v22
    %v29 = vpop.xlane.xlu0 %28
    %30 = vadd.xlane.f32.xlu0 %v23
    %v31 = vpop.xlane.xlu0 %30
    %32 = vadd.xlane.f32.xlu0 %v24
    %v33 = vpop.xlane.xlu0 %32
    %34 = vadd.xlane.f32.xlu0 %v25
    %v35 = vpop.xlane.xlu0 %34
    %36 = vadd.xlane.f32.xlu0 %v26
    %v37 = vpop.xlane.xlu0 %36
    %38 = vadd.xlane.f32.xlu0 %v27
    %v39 = vpop.xlane.xlu0 %38
    %v40 = vrcp.pop 128.0
    %v41 = vmul.f32 %v29, %v40
    %v42 = vmul.f32 %v31, %v40
    %v43 = vmul.f32 %v33, %v40
    %v44 = vmul.f32 %v35, %v40
    %v45 = vmul.f32 %v37, %v40
    %v46 = vmul.f32 %v39, %v40
    %v47 = vsub.f32 %v22, %v41
    %v48 = vsub.f32 %v23, %v42
    %v49 = vsub.f32 %v24, %v43
    %v50 = vsub.f32 %v25, %v44
    %v51 = vsub.f32 %v26, %v45
    %v52 = vsub.f32 %v27, %v46
    %v53 = vmul.f32 %v47, %v47
    %v54 = vmul.f32 %v48, %v48
    %v55 = vmul.f32 %v49, %v49
    %v56 = vmul.f32 %v50, %v50
    %v57 = vmul.f32 %v51, %v51
    %v58 = vmul.f32 %v52, %v52
    %59 = vadd.xlane.f32.xlu0 %v53
    %v60 = vpop.xlane.xlu0 %59
    %61 = vadd.xlane.f32.xlu0 %v54
    %v62 = vpop.xlane.xlu0 %61
    %63 = vadd.xlane.f32.xlu0 %v55
    %v64 = vpop.xlane.xlu0 %63
    %65 = vadd.xlane.f32.xlu0 %v56
    %v66 = vpop.xlane.xlu0 %65
    %67 = vadd.xlane.f32.xlu0 %v57
    %v68 = vpop.xlane.xlu0 %67
    %69 = vadd.xlane.f32.xlu0 %v58
    %v70 = vpop.xlane.xlu0 %69
    %v71 = vmul.f32 %v60, %v40
    %v72 = vmul.f32 %v62, %v40
    %v73 = vmul.f32 %v64, %v40
    %v74 = vmul.f32 %v66, %v40
    %v75 = vmul.f32 %v68, %v40
    %v76 = vmul.f32 %v70, %v40
    %v77 = vadd.f32 %v71, 1e-05
    %v78 = vadd.f32 %v72, 1e-05
    %v79 = vadd.f32 %v73, 1e-05
    %v80 = vadd.f32 %v74, 1e-05
    %v81 = vadd.f32 %v75, 1e-05
    %v82 = vadd.f32 %v76, 1e-05
    %v83 = vrsqrt.pop %v77
    %v84 = vrsqrt.pop %v78
    %v85 = vrsqrt.pop %v79
    %v86 = vrsqrt.pop %v80
    %v87 = vrsqrt.pop %v81
    %v88 = vrsqrt.pop %v82
    %v89 = vmul.f32 %v47, %v83
    %v90 = vmul.f32 %v48, %v84
    %v91 = vmul.f32 %v49, %v85
    %v92 = vmul.f32 %v50, %v86
    %v93 = vmul.f32 %v51, %v87
    %v94 = vmul.f32 %v52, %v88
    %v95 = vld [vmem:[%s1] sm:$0x1]
    %v97 = vlaneseq
    %v98 = vshrl.u32 %v97, 7
    %v99 = vsub.s32 0, %v98
    %v100 = vrot.slane %v95, %v99
    %v102 = vmul.f32 %v89, %v100
    %v103 = vmul.f32 %v90, %v100
    %v104 = vmul.f32 %v91, %v100
    %v105 = vmul.f32 %v92, %v100
    %v106 = vmul.f32 %v93, %v100
    %v107 = vmul.f32 %v94, %v100
    %v108 = vld [vmem:[%s2] sm:$0x1]
    %v110 = vlaneseq
    %v111 = vshrl.u32 %v110, 7
    %v112 = vsub.s32 0, %v111
    %v113 = vrot.slane %v108, %v112
    %v115 = vadd.f32 %v102, %v113
    %v116 = vadd.f32 %v103, %v113
    %v117 = vadd.f32 %v104, %v113
    %v118 = vadd.f32 %v105, %v113
    %v119 = vadd.f32 %v106, %v113
    %v120 = vadd.f32 %v107, %v113
    %v121 = vlaneseq
    %v122 = vshrl.u32 %v121, 7
    %v123 = vadd.s32 %v122, 8
    %v124 = vadd.s32 %v122, 16
    %vm125 = vcmp.lt.s32.totalorder %v122, 17
    %vm126 = vcmp.lt.s32.totalorder %v123, 17
    %vm127 = vcmp.lt.s32.totalorder %v124, 17
    %v128 = vsel %vm125, 1, 0
    %v129 = vsel %vm126, 1, 0
    %v130 = vsel %vm127, 1, 0
    %vm131 = vcmp.eq.s32.totalorder %v128, 1
    %vm132 = vcmp.eq.s32.totalorder %v129, 1
    %vm133 = vcmp.eq.s32.totalorder %v130, 1
    %v134 = vsel %vm131, %v115, 0.0
    %v135 = vsel %vm132, %v116, 0.0
    %v136 = vsel %vm133, %v117, 0.0
    %v137 = vsel %vm131, %v118, 0.0
    %v138 = vsel %vm132, %v119, 0.0
    %v139 = vsel %vm133, %v120, 0.0
    %v140 = vadd.f32 %v134, %v135
    %v141 = vadd.f32 %v140, %v136
    %v142 = vrot.slane %v141, 4
    %v143 = vadd.f32 %v141, %v142
    %v144 = vrot.slane %v143, 2
    %v145 = vadd.f32 %v143, %v144
    %v146 = vrot.slane %v145, 1
    %v147 = vadd.f32 %v145, %v146
    %v148 = vadd.f32 %v137, %v138
    %v149 = vadd.f32 %v148, %v139
    %v150 = vrot.slane %v149, 4
    %v151 = vadd.f32 %v149, %v150
    %v152 = vrot.slane %v151, 2
    %v153 = vadd.f32 %v151, %v152
    %v154 = vrot.slane %v153, 1
    %v155 = vadd.f32 %v153, %v154
    %v156 = vmul.f32 %v147, 0.05882353
    %v157 = vmul.f32 %v155, 0.05882353
    %v158 = vpack.c.bf16 %v156, %v156
    %v159 = vpack.c.bf16 %v157, %v157
    %v160 = vld [vmem:[%s3] sm:$0xf]
    %v161 = vld [vmem:[%s3 + $0x4] sm:$0xf]
    %v162 = vld [vmem:[%s3 + $0x8] sm:$0xf]
    %v163 = vld [vmem:[%s3 + $0xc] sm:$0xf]
    %v164 = vld [vmem:[%s3 + $0x10] sm:$0xf]
    %v165 = vld [vmem:[%s3 + $0x14] sm:$0xf]
    %v166 = vld [vmem:[%s3 + $0x18] sm:$0xf]
    %v167 = vld [vmem:[%s3 + $0x1c] sm:$0xf]
    %v168 = vld [vmem:[%s3 + $0x20] sm:$0xf]
    %v169 = vld [vmem:[%s3 + $0x24] sm:$0xf]
    %v170 = vld [vmem:[%s3 + $0x28] sm:$0xf]
    %v171 = vld [vmem:[%s3 + $0x2c] sm:$0xf]
    %v172 = vld [vmem:[%s3 + $0x30] sm:$0xf]
    %v173 = vld [vmem:[%s3 + $0x34] sm:$0xf]
    %v174 = vld [vmem:[%s3 + $0x38] sm:$0xf]
    %v175 = vld [vmem:[%s3 + $0x3c] sm:$0xf]
    %v176 = vld [vmem:[%s4] sm:$0x1]
    %v178 = vlaneseq
    %v179 = vshrl.u32 %v178, 7
    %v180 = vsub.s32 0, %v179
    %v181 = vrot.slane %v176, %v180
    %v185 = vunpack.c.l.b16 %v158
    %v186 = vunpack.c.l.b16 %v159
    %vm187 = vcmask 1041409
    %v188 = vsel %vm187, %v186, %v185
    %v189 = vpack.c.b16 %v188, %v188
    %v207 = vunpack.c.l.b16 %v160
    %v208 = vunpack.c.l.b16 %v161
    %v209 = vunpack.c.l.b16 %v162
    %v210 = vunpack.c.l.b16 %v163
    %v211 = vunpack.c.l.b16 %v164
    %v212 = vunpack.c.l.b16 %v165
    %v213 = vunpack.c.l.b16 %v166
    %v214 = vunpack.c.l.b16 %v167
    %v215 = vunpack.c.l.b16 %v168
    %v216 = vunpack.c.l.b16 %v169
    %v217 = vunpack.c.l.b16 %v170
    %v218 = vunpack.c.l.b16 %v171
    %v219 = vunpack.c.l.b16 %v172
    %v220 = vunpack.c.l.b16 %v173
    %v221 = vunpack.c.l.b16 %v174
    %v222 = vunpack.c.l.b16 %v175
    %v223 = vpack.c.b16 %v208, %v207
    %v224 = vpack.c.b16 %v210, %v209
    %v225 = vpack.c.b16 %v212, %v211
    %v226 = vpack.c.b16 %v214, %v213
    %v227 = vpack.c.b16 %v216, %v215
    %v228 = vpack.c.b16 %v218, %v217
    %v229 = vpack.c.b16 %v220, %v219
    %v230 = vpack.c.b16 %v222, %v221
    %239 = vmatprep.subr.bf16.mxu0 0
    %240 = vmatpush1.bf16.msra.mxu0 %v223
    %241 = vmatprep.subr.bf16.mxu0 0
    %242 = vmatpush1.bf16.msra.mxu0 %v224
    %243 = vmatprep.subr.bf16.mxu0 0
    %244 = vmatpush1.bf16.msra.mxu0 %v225
    %245 = vmatprep.subr.bf16.mxu0 0
    %246 = vmatpush1.bf16.msra.mxu0 %v226
    %247 = vmatprep.subr.bf16.mxu0 0
    %248 = vmatpush1.bf16.msra.mxu0 %v227
    %249 = vmatprep.subr.bf16.mxu0 0
    %250 = vmatpush1.bf16.msra.mxu0 %v228
    %251 = vmatprep.subr.bf16.mxu0 0
    %252 = vmatpush1.bf16.msra.mxu0 %v229
    %253 = vmatprep.subr.bf16.mxu0 0
    %254 = vmatpush1.bf16.msra.mxu0 %v230
    %255 = vmatprep.subr.bf16.mxu0 0
    %256 = vmatpush1.bf16.msra.mxu0 0
    %257 = vmatprep.subr.bf16.mxu0 0
    %258 = vmatpush1.bf16.msra.mxu0 0
    %259 = vmatprep.subr.bf16.mxu0 0
    %260 = vmatpush1.bf16.msra.mxu0 0
    %261 = vmatprep.subr.bf16.mxu0 0
    %262 = vmatpush1.bf16.msra.mxu0 0
    %263 = vmatprep.subr.bf16.mxu0 0
    %264 = vmatpush1.bf16.msra.mxu0 0
    %265 = vmatprep.subr.bf16.mxu0 0
    %266 = vmatpush1.bf16.msra.mxu0 0
    %267 = vmatprep.subr.bf16.mxu0 0
    %268 = vmatpush1.bf16.msra.mxu0 0
    %269 = vmatprep.subr.bf16.mxu0 0
    %270 = vmatpush1.bf16.msra.mxu0 0
    %271 = vmatprep.mubr.bf16.mxu0 0
    %272 = vmatmul.mubr.bf16.gmra.mrb[0].mxu0 %v189
    %v273 = vpop.f32.mrb[0].mxu0
    %v274 = vadd.f32 %v181, %v273
    %v275 = vpop.f32.mrb[0].mxu0
    %v276 = vpop.f32.mrb[0].mxu0
    %v277 = vpop.f32.mrb[0].mxu0
    %278 = vdwg.mxu0
    %vm279 = vcmask 123904
    %280 = vst.msk [vmem:[#allocation2] sm:$0x3] %vm279, %v274
    // Predicated region
    $region22: #{vit_forward.23} parent=1 // pred_check
      _
    $region23: #{vit_forward.23} parent=1 // pred_check_branch
      %282 = sbr.rel (0) target = $region25
    $region24: #{vit_forward.23} parent=1 // pred_region
      %s284 = ssub.s32 32, 32
      %285 = vsyncadd [#allocation3], %s284
      %s287 = sshll.u32 [#allocation2], 4
      %s288 = int_to_ptr.vmem [resolvable:$true] %s287
      %290 = dma.vmem_to_hbm [thread:$0]  %s288, 32, %s5, [#allocation3]
    $region25: #{vit_forward.23} parent=1 // pred_fallthru
      _
    // Predicated region
    $region26: #{vit_forward.23} parent=1 // pred_check
      _
    $region27: #{vit_forward.23} parent=1 // pred_check_branch
      %292 = sbr.rel (0) target = $region29
    $region28: #{vit_forward.23} parent=1 // pred_region
      %293 = dma.done [#allocation3], 32
    $region29: #{vit_forward.23} parent=1 // pred_fallthru
      _
    %294 = vsyncpa [#allocation3], 1

</llo_original>
